<compile_context>
chip_gen: v5e
topology: v5e:2x2
jax: 0.10.0
libtpu: 0.0.40
codegen_flags: <defaults>
</compile_context>

<pallas_src>
import functools

import jax
import jax.numpy as jnp
from jax import lax
from jax.experimental import pallas as pl
from jax.experimental.pallas import tpu as pltpu


def _tem_scse_kernel(xh_ref, xt_ref, cse_ref, ws_ref, bs_ref, w3_ref,
                     bns_ref, bnb_ref, o_ref, acc_ref, *, TH, W):
    """One (batch, row-tile) block per grid step.

    xh_ref:  (1, TH+2, W, C)  bf16  xs rows with +/-1 halo row (zero padded at edges)
    xt_ref:  (1, TH*W, C)     bf16  xt rows for this tile (flattened spatial)
    cse_ref: (1, 1, C)        f32   per-batch cSE gate (already sigmoided)
    ws_ref:  (1, C)           f32   sSE 1x1-conv weight as a row
    bs_ref:  (1, 1)           f32   sSE bias
    w3_ref:  (3, 3, C, C)     bf16  3x3 conv weight (HWIO)
    bns/bnb: (1, C)           f32   folded BatchNorm scale / bias
    o_ref:   (1, TH*W, C)     f32
    acc_ref: (TH*W, C)        f32   VMEM scratch accumulator
    """
    f32 = jnp.float32
    bf16 = jnp.bfloat16
    C = o_ref.shape[-1]
    THW = TH * W
    HALO = (TH + 2) * W

    # ---- 3x3 conv (padding=1, no bias) + folded BN + ReLU on xs ------------
    xflat = xh_ref[0].astype(f32).reshape(HALO, C)          # haloed xs rows, f32

    # dx-shifted views of the whole tile, built once (roll lands on the XLU
    # slot); the column mask zeroes the taps that fall outside the image.
    col = lax.broadcasted_iota(jnp.int32, (HALO, 1), 0) % W
    zero = jnp.zeros_like(xflat)
    x_left = jnp.where(col >= 1, pltpu.roll(xflat, 1, axis=0), zero)
    x_right = jnp.where(col <= W - 2, pltpu.roll(xflat, HALO - 1, axis=0), zero)
    # bf16 operands for the MXU; accumulation stays f32.
    taps = (x_left.astype(bf16), xflat.astype(bf16), x_right.astype(bf16))

    first = True
    for dy in range(3):
        lo = dy * W                                          # row-aligned slice
        for dx in range(3):
            patch = taps[dx][lo:lo + THW]                    # (THW, C) bf16
            part = jnp.dot(patch, w3_ref[dy, dx],
                           preferred_element_type=f32)
            if first:
                acc_ref[...] = part
                first = False
            else:
                acc_ref[...] += part

    conv = jnp.maximum(acc_ref[...] * bns_ref[...] + bnb_ref[...], 0.0)

    # ---- sSE: per-pixel <xt, ws> on VPU + lane reduce (no lane-1 matmul) ---
    xt = xt_ref[0].astype(f32)                               # (THW, C)
    sse = jax.nn.sigmoid(
        jnp.sum(xt * ws_ref[...], axis=-1, keepdims=True) + bs_ref[...])  # (THW, 1)

    # ---- cSE gate was precomputed per batch element in the wrapper --------
    cse = cse_ref[0]                                         # (1, C)

    # ---- factored epilogue in f32 ------------------------------------------
    xs_int = xflat[W:W + THW]                                # interior rows
    o_ref[0] = (xs_int * (cse + sse) + conv).astype(o_ref.dtype)


def _choose_row_tile(H, W, C, max_tile_bytes=2 * 1024 * 1024):
    """Pick a row-tile height TH (divisor of H).

    Keeps the flattened (TH*W) row dim a multiple of 8 (block constraint),
    caps the f32 output tile at ~2 MiB (v7x 64 MiB VMEM friendly), and prefers
    >= 2 spatial tiles so there is pipeline depth / work for a 2nd TensorCore.
    """
    divisors = [d for d in range(1, H + 1) if H % d == 0]
    cands = [d for d in divisors if (d * W) % 8 == 0] or [H]
    per_row = W * C * 4
    fitting = [d for d in cands if (d + 2) * per_row <= max_tile_bytes]
    if not fitting:
        return cands[0]
    th = fitting[-1]
    if th == H and len(fitting) >= 2:
        th = fitting[-2]
    return th


def tem_scse_module3(xs_nchw, xt_nchw, params, eps=1e-5):
    """xs_nchw, xt_nchw: [N, C, H, W] float32 (PyTorch convention)."""
    xs = jnp.transpose(xs_nchw, (0, 2, 3, 1)).astype(jnp.float32)   # NHWC
    xt = jnp.transpose(xt_nchw, (0, 2, 3, 1)).astype(jnp.float32)
    N, H, W, C = xs.shape
    HW = H * W

    TH = _choose_row_tile(H, W, C)
    nH = H // TH
    THW = TH * W

    # ---- cSE gate: global avg pool + tiny MLP + sigmoid (global reduction,
    #      negligible FLOPs -> computed in plain JAX, broadcast per tile).
    pooled = jnp.mean(xt, axis=(1, 2))                               # (N, C)
    h1 = jax.nn.relu(pooled @ params["w1"] + params["b1"])
    cse = jax.nn.sigmoid(h1 @ params["w2"] + params["b2"])           # (N, C)
    cse = cse.reshape(N, 1, C).astype(jnp.float32)

    # ---- fold BatchNorm2d (inference) into per-channel scale / bias
    bn_scale = (params["bn_gamma"] / jnp.sqrt(params["bn_var"] + eps))
    bn_bias = params["bn_beta"] - params["bn_mean"] * bn_scale

    # ---- bf16 H-haloed, row-tiled xs: single shipment of xs (plus 2 halo
    #      rows per tile), instead of xs + a full padded duplicate.
    xs_padh = jnp.pad(xs, ((0, 0), (1, 1), (0, 0), (0, 0))).astype(jnp.bfloat16)
    row_ids = jnp.arange(nH)[:, None] * TH + jnp.arange(TH + 2)[None, :]
    xs_halo = xs_padh[:, row_ids].reshape(N * nH, TH + 2, W, C)       # bf16

    xt_flat = xt.reshape(N, HW, C).astype(jnp.bfloat16)

    w3 = params["w3"].astype(jnp.bfloat16)                            # (3,3,C,C) HWIO
    ws_row = params["ws"].reshape(1, C).astype(jnp.float32)
    bs = params["bs"].reshape(1, 1).astype(jnp.float32)

    kernel = functools.partial(_tem_scse_kernel, TH=TH, W=W)

    out_flat = pl.pallas_call(
        kernel,
        out_shape=jax.ShapeDtypeStruct((N, HW, C), jnp.float32),
        grid_spec=pltpu.PrefetchScalarGridSpec(
            num_scalar_prefetch=0,
            grid=(N, nH),
            in_specs=[
                pl.BlockSpec((1, TH + 2, W, C),
                             lambda n, h: (n * nH + h, 0, 0, 0)),     # xs halo tile
                pl.BlockSpec((1, THW, C), lambda n, h: (n, h, 0)),    # xt tile
                pl.BlockSpec((1, 1, C), lambda n, h: (n, 0, 0)),      # cSE gate
                pl.BlockSpec((1, C), lambda n, h: (0, 0)),            # ws row
                pl.BlockSpec((1, 1), lambda n, h: (0, 0)),            # bs
                pl.BlockSpec((3, 3, C, C), lambda n, h: (0, 0, 0, 0)),  # w3
                pl.BlockSpec((1, C), lambda n, h: (0, 0)),            # bn scale
                pl.BlockSpec((1, C), lambda n, h: (0, 0)),            # bn bias
            ],
            out_specs=pl.BlockSpec((1, THW, C), lambda n, h: (n, h, 0)),
            scratch_shapes=[pltpu.VMEM((THW, C), jnp.float32)],
        ),
        compiler_params=pltpu.CompilerParams(
            dimension_semantics=("parallel", "parallel"),
            vmem_limit_bytes=48 * 1024 * 1024,
        ),
    )(
        xs_halo, xt_flat, cse, ws_row, bs, w3,
        bn_scale.reshape(1, C).astype(jnp.float32),
        bn_bias.reshape(1, C).astype(jnp.float32),
    )

    out = out_flat.reshape(N, H, W, C)
    return jnp.transpose(out, (0, 3, 1, 2))     # back to NCHW


def init_params(key, C, reduction=16):
    """Deterministic synthetic parameters matching the PyTorch module shapes."""
    Cmid = max(C // reduction, 1)
    ks = jax.random.split(key, 11)

    def rnd(k, shape, scale):
        return jax.random.normal(k, shape, jnp.float32) * scale

    return {
        # cSE: Conv2d(C, Cmid, 1) / Conv2d(Cmid, C, 1)  (weights stored as [cin, cout])
        "w1": rnd(ks[0], (C, Cmid), 1.0 / float(C) ** 0.5),
        "b1": rnd(ks[1], (Cmid,), 0.1),
        "w2": rnd(ks[2], (Cmid, C), 1.0 / float(Cmid) ** 0.5),
        "b2": rnd(ks[3], (C,), 0.1),
        # sSE: Conv2d(C, 1, 1)
        "ws": rnd(ks[4], (C, 1), 1.0 / float(C) ** 0.5),
        "bs": rnd(ks[5], (1,), 0.1),
        # Conv2dReLU: Conv2d(C, C, 3, pad=1, bias=False) stored as HWIO
        "w3": rnd(ks[6], (3, 3, C, C), 1.0 / float(9 * C) ** 0.5),
        # BatchNorm2d(C) running stats + affine
        "bn_gamma": 1.0 + rnd(ks[7], (C,), 0.1),
        "bn_beta": rnd(ks[8], (C,), 0.1),
        "bn_mean": rnd(ks[9], (C,), 0.1),
        "bn_var": jnp.abs(rnd(ks[10], (C,), 0.5)) + 1.0,
    }


def reference_nhwc(xs, xt, params, eps=1e-5):
    """Pure-XLA f32 reference in NHWC for validation."""
    pooled = jnp.mean(xt, axis=(1, 2), keepdims=True)                       # [N,1,1,C]
    h1 = jax.nn.relu(jnp.einsum("nhwc,cd->nhwd", pooled, params["w1"]) + params["b1"])
    cse = jax.nn.sigmoid(jnp.einsum("nhwd,dc->nhwc", h1, params["w2"]) + params["b2"])
    sse = jax.nn.sigmoid(jnp.einsum("nhwc,co->nhwo", xt, params["ws"]) + params["bs"])
    conv = lax.conv_general_dilated(xs, params["w3"], (1, 1), "SAME",
                                    dimension_numbers=("NHWC", "HWIO", "NHWC"))
    scale = params["bn_gamma"] / jnp.sqrt(params["bn_var"] + eps)
    bias = params["bn_beta"] - params["bn_mean"] * scale
    conv = jax.nn.relu(conv * scale + bias)
    return xs * cse + xs * sse + conv


if __name__ == "__main__":
    key = jax.random.PRNGKey(0)
    # C=128 keeps the channel (lane) axis dense; reduction=16 -> Cmid=8.
    N, C, H, W = 2, 128, 16, 16
    k1, k2, k3 = jax.random.split(key, 3)
    xs = jax.random.normal(k1, (N, C, H, W), jnp.float32)
    xt = jax.random.normal(k2, (N, C, H, W), jnp.float32)
    params = init_params(k3, C, reduction=16)

    out = jax.jit(tem_scse_module3)(xs, xt, params)
    out = jax.block_until_ready(out)
    assert out.shape == (N, C, H, W)

    # sanity check against a pure-JAX/XLA f32 reference; bf16 activation /
    # weight shipping for the MXU introduces ~1e-3-level rounding.
    xs_nhwc = jnp.transpose(xs, (0, 2, 3, 1))
    xt_nhwc = jnp.transpose(xt, (0, 2, 3, 1))
    ref = jnp.transpose(reference_nhwc(xs_nhwc, xt_nhwc, params), (0, 3, 1, 2))
    err = float(jnp.max(jnp.abs(out - ref)))
    assert jnp.allclose(out, ref, rtol=2e-2, atol=2e-2), f"max abs err {err}"

    print("KERNEL_OK")
</pallas_src>

<mosaic_0001>
module attributes {stable_mosaic.version = 11 : i64} {
  func.func @_tem_scse_kernel(%arg0: i32, %arg1: i32, %arg2: memref<1x10x16x128xbf16, #tpu.memory_space<vmem>>, %arg3: memref<1x128x128xbf16, #tpu.memory_space<vmem>>, %arg4: memref<1x1x128xf32, #tpu.memory_space<vmem>>, %arg5: memref<1x128xf32, #tpu.memory_space<vmem>>, %arg6: memref<1x1xf32, #tpu.memory_space<vmem>>, %arg7: memref<3x3x128x128xbf16, #tpu.memory_space<vmem>>, %arg8: memref<1x128xf32, #tpu.memory_space<vmem>>, %arg9: memref<1x128xf32, #tpu.memory_space<vmem>>, %arg10: memref<1x128x128xf32, #tpu.memory_space<vmem>>, %arg11: memref<128x128xf32, #tpu.memory_space<vmem>>) attributes {dimension_semantics = [#tpu.dimension_semantics<parallel>, #tpu.dimension_semantics<parallel>], iteration_bounds = array<i64: 2, 2>, scalar_prefetch = 0 : i64, scratch_operands = 1 : i64, tpu.core_type = #tpu.core_type<tc>, window_params = [{transform_indices = @transform_0, window_bounds = array<i64: 1, 10, 16, 128>}, {transform_indices = @transform_1, window_bounds = array<i64: 1, 128, 128>}, {transform_indices = @transform_2, window_bounds = array<i64: 1, 1, 128>}, {pipeline_mode = #tpu.pipeline_mode<synchronous>, transform_indices = @transform_3, window_bounds = array<i64: 1, 128>}, {pipeline_mode = #tpu.pipeline_mode<synchronous>, transform_indices = @transform_4, window_bounds = array<i64: 1, 1>}, {pipeline_mode = #tpu.pipeline_mode<synchronous>, transform_indices = @transform_5, window_bounds = array<i64: 3, 3, 128, 128>}, {pipeline_mode = #tpu.pipeline_mode<synchronous>, transform_indices = @transform_6, window_bounds = array<i64: 1, 128>}, {pipeline_mode = #tpu.pipeline_mode<synchronous>, transform_indices = @transform_7, window_bounds = array<i64: 1, 128>}, {transform_indices = @transform_8, window_bounds = array<i64: 1, 128, 128>}]} {
    %c0 = arith.constant 0 : index
    %c0_0 = arith.constant 0 : index
    %c0_1 = arith.constant 0 : index
    %c0_2 = arith.constant 0 : index
    %0 = vector.load %arg2[%c0, %c0_0, %c0_1, %c0_2] : memref<1x10x16x128xbf16, #tpu.memory_space<vmem>>, vector<1x10x16x128xbf16>
    %1 = vector.shape_cast %0 : vector<1x10x16x128xbf16> to vector<10x16x128xbf16>
    %2 = arith.extf %1 : vector<10x16x128xbf16> to vector<10x16x128xf32>
    %3 = vector.shape_cast %2 : vector<10x16x128xf32> to vector<160x128xf32>
    %4 = tpu.iota {dimensions = array<i32: 0>} : vector<160x1xi32>
    %c16_i32 = arith.constant 16 : i32
    %c0_i32 = arith.constant 0 : i32
    %5 = arith.cmpi eq, %c16_i32, %c0_i32 : i32
    %c1_i32 = arith.constant 1 : i32
    %6 = arith.select %5, %c1_i32, %c16_i32 : i32
    %7 = vector.broadcast %6 : i32 to vector<160x1xi32>
    %8 = arith.remsi %4, %7 : vector<160x1xi32>
    %c0_i32_3 = arith.constant 0 : i32
    %9 = vector.broadcast %c0_i32_3 : i32 to vector<160x1xi32>
    %10 = arith.cmpi ne, %8, %9 : vector<160x1xi32>
    %c0_i32_4 = arith.constant 0 : i32
    %11 = vector.broadcast %c0_i32_4 : i32 to vector<160x1xi32>
    %12 = arith.cmpi slt, %8, %11 : vector<160x1xi32>
    %c0_i32_5 = arith.constant 0 : i32
    %13 = arith.cmpi slt, %6, %c0_i32_5 : i32
    %14 = vector.broadcast %13 : i1 to vector<160x1xi1>
    %15 = vector.broadcast %14 : vector<160x1xi1> to vector<160x1xi1>
    %16 = arith.xori %12, %15 : vector<160x1xi1>
    %17 = arith.andi %16, %10 : vector<160x1xi1>
    %18 = vector.broadcast %6 : i32 to vector<160x1xi32>
    %19 = arith.addi %8, %18 : vector<160x1xi32>
    %20 = arith.select %17, %19, %8 : vector<160x1xi1>, vector<160x1xi32>
    %cst = arith.constant 0.000000e+00 : f32
    %21 = vector.broadcast %cst : f32 to vector<160x128xf32>
    %c1_i32_6 = arith.constant 1 : i32
    %22 = vector.broadcast %c1_i32_6 : i32 to vector<160x1xi32>
    %23 = arith.cmpi sge, %20, %22 : vector<160x1xi32>
    %c1_i32_7 = arith.constant 1 : i32
    %24 = tpu.dynamic_rotate %3 by %c1_i32_7 dim 0 : vector<160x128xf32>, i32 -> vector<160x128xf32>
    %25 = vector.shape_cast %23 : vector<160x1xi1> to vector<160x1xi1>
    %26 = vector.broadcast %25 : vector<160x1xi1> to vector<160x128xi1>
    %27 = arith.select %26, %24, %21 : vector<160x128xi1>, vector<160x128xf32>
    %c14_i32 = arith.constant 14 : i32
    %28 = vector.broadcast %c14_i32 : i32 to vector<160x1xi32>
    %29 = arith.cmpi sle, %20, %28 : vector<160x1xi32>
    %c159_i32 = arith.constant 159 : i32
    %30 = tpu.dynamic_rotate %3 by %c159_i32 dim 0 : vector<160x128xf32>, i32 -> vector<160x128xf32>
    %31 = vector.shape_cast %29 : vector<160x1xi1> to vector<160x1xi1>
    %32 = vector.broadcast %31 : vector<160x1xi1> to vector<160x128xi1>
    %33 = arith.select %32, %30, %21 : vector<160x128xi1>, vector<160x128xf32>
    %34 = arith.truncf %27 : vector<160x128xf32> to vector<160x128xbf16>
    %35 = arith.truncf %3 : vector<160x128xf32> to vector<160x128xbf16>
    %36 = arith.truncf %33 : vector<160x128xf32> to vector<160x128xbf16>
    %37 = vector.extract_strided_slice %34 {offsets = [0, 0], sizes = [128, 128], strides = [1, 1]} : vector<160x128xbf16> to vector<128x128xbf16>
    %c0_8 = arith.constant 0 : index
    %c0_9 = arith.constant 0 : index
    %c0_10 = arith.constant 0 : index
    %c0_11 = arith.constant 0 : index
    %38 = vector.load %arg7[%c0_8, %c0_9, %c0_10, %c0_11] : memref<3x3x128x128xbf16, #tpu.memory_space<vmem>>, vector<1x1x128x128xbf16>
    %39 = vector.shape_cast %38 : vector<1x1x128x128xbf16> to vector<128x128xbf16>
    %cst_12 = arith.constant dense<0.000000e+00> : vector<128x128xf32>
    %40 = tpu.matmul %37, %39, %cst_12 {dimension_numbers = #tpu.dot_dimension_numbers<[1], [0], [0], [1], [0, 0, 1, 1], [], []>} : vector<128x128xbf16>, vector<128x128xbf16>, vector<128x128xf32> -> vector<128x128xf32>
    %c0_13 = arith.constant 0 : index
    %c0_14 = arith.constant 0 : index
    %41 = vector.load %arg11[%c0_13, %c0_14] : memref<128x128xf32, #tpu.memory_space<vmem>>, vector<128x128xf32>
    tpu.vector_store %arg11[%c0_13, %c0_14], %40 {strides = array<i32>} : memref<128x128xf32, #tpu.memory_space<vmem>>, vector<128x128xf32>,
    %42 = vector.extract_strided_slice %35 {offsets = [0, 0], sizes = [128, 128], strides = [1, 1]} : vector<160x128xbf16> to vector<128x128xbf16>
    %c0_15 = arith.constant 0 : index
    %c1 = arith.constant 1 : index
    %c0_16 = arith.constant 0 : index
    %c0_17 = arith.constant 0 : index
    %43 = vector.load %arg7[%c0_15, %c1, %c0_16, %c0_17] : memref<3x3x128x128xbf16, #tpu.memory_space<vmem>>, vector<1x1x128x128xbf16>
    %44 = vector.shape_cast %43 : vector<1x1x128x128xbf16> to vector<128x128xbf16>
    %cst_18 = arith.constant dense<0.000000e+00> : vector<128x128xf32>
    %45 = tpu.matmul %42, %44, %cst_18 {dimension_numbers = #tpu.dot_dimension_numbers<[1], [0], [0], [1], [0, 0, 1, 1], [], []>} : vector<128x128xbf16>, vector<128x128xbf16>, vector<128x128xf32> -> vector<128x128xf32>
    %c0_19 = arith.constant 0 : index
    %c0_20 = arith.constant 0 : index
    %46 = vector.load %arg11[%c0_19, %c0_20] : memref<128x128xf32, #tpu.memory_space<vmem>>, vector<128x128xf32>
    %47 = arith.addf %46, %45 : vector<128x128xf32>
    %c0_21 = arith.constant 0 : index
    %c0_22 = arith.constant 0 : index
    %48 = vector.load %arg11[%c0_21, %c0_22] : memref<128x128xf32, #tpu.memory_space<vmem>>, vector<128x128xf32>
    tpu.vector_store %arg11[%c0_21, %c0_22], %47 {strides = array<i32>} : memref<128x128xf32, #tpu.memory_space<vmem>>, vector<128x128xf32>,
    %49 = vector.extract_strided_slice %36 {offsets = [0, 0], sizes = [128, 128], strides = [1, 1]} : vector<160x128xbf16> to vector<128x128xbf16>
    %c0_23 = arith.constant 0 : index
    %c2 = arith.constant 2 : index
    %c0_24 = arith.constant 0 : index
    %c0_25 = arith.constant 0 : index
    %50 = vector.load %arg7[%c0_23, %c2, %c0_24, %c0_25] : memref<3x3x128x128xbf16, #tpu.memory_space<vmem>>, vector<1x1x128x128xbf16>
    %51 = vector.shape_cast %50 : vector<1x1x128x128xbf16> to vector<128x128xbf16>
    %cst_26 = arith.constant dense<0.000000e+00> : vector<128x128xf32>
    %52 = tpu.matmul %49, %51, %cst_26 {dimension_numbers = #tpu.dot_dimension_numbers<[1], [0], [0], [1], [0, 0, 1, 1], [], []>} : vector<128x128xbf16>, vector<128x128xbf16>, vector<128x128xf32> -> vector<128x128xf32>
    %c0_27 = arith.constant 0 : index
    %c0_28 = arith.constant 0 : index
    %53 = vector.load %arg11[%c0_27, %c0_28] : memref<128x128xf32, #tpu.memory_space<vmem>>, vector<128x128xf32>
    %54 = arith.addf %53, %52 : vector<128x128xf32>
    %c0_29 = arith.constant 0 : index
    %c0_30 = arith.constant 0 : index
    %55 = vector.load %arg11[%c0_29, %c0_30] : memref<128x128xf32, #tpu.memory_space<vmem>>, vector<128x128xf32>
    tpu.vector_store %arg11[%c0_29, %c0_30], %54 {strides = array<i32>} : memref<128x128xf32, #tpu.memory_space<vmem>>, vector<128x128xf32>,
    %56 = vector.extract_strided_slice %34 {offsets = [16, 0], sizes = [128, 128], strides = [1, 1]} : vector<160x128xbf16> to vector<128x128xbf16>
    %c1_31 = arith.constant 1 : index
    %c0_32 = arith.constant 0 : index
    %c0_33 = arith.constant 0 : index
    %c0_34 = arith.constant 0 : index
    %57 = vector.load %arg7[%c1_31, %c0_32, %c0_33, %c0_34] : memref<3x3x128x128xbf16, #tpu.memory_space<vmem>>, vector<1x1x128x128xbf16>
    %58 = vector.shape_cast %57 : vector<1x1x128x128xbf16> to vector<128x128xbf16>
    %cst_35 = arith.constant dense<0.000000e+00> : vector<128x128xf32>
    %59 = tpu.matmul %56, %58, %cst_35 {dimension_numbers = #tpu.dot_dimension_numbers<[1], [0], [0], [1], [0, 0, 1, 1], [], []>} : vector<128x128xbf16>, vector<128x128xbf16>, vector<128x128xf32> -> vector<128x128xf32>
    %c0_36 = arith.constant 0 : index
    %c0_37 = arith.constant 0 : index
    %60 = vector.load %arg11[%c0_36, %c0_37] : memref<128x128xf32, #tpu.memory_space<vmem>>, vector<128x128xf32>
    %61 = arith.addf %60, %59 : vector<128x128xf32>
    %c0_38 = arith.constant 0 : index
    %c0_39 = arith.constant 0 : index
    %62 = vector.load %arg11[%c0_38, %c0_39] : memref<128x128xf32, #tpu.memory_space<vmem>>, vector<128x128xf32>
    tpu.vector_store %arg11[%c0_38, %c0_39], %61 {strides = array<i32>} : memref<128x128xf32, #tpu.memory_space<vmem>>, vector<128x128xf32>,
    %63 = vector.extract_strided_slice %35 {offsets = [16, 0], sizes = [128, 128], strides = [1, 1]} : vector<160x128xbf16> to vector<128x128xbf16>
    %c1_40 = arith.constant 1 : index
    %c1_41 = arith.constant 1 : index
    %c0_42 = arith.constant 0 : index
    %c0_43 = arith.constant 0 : index
    %64 = vector.load %arg7[%c1_40, %c1_41, %c0_42, %c0_43] : memref<3x3x128x128xbf16, #tpu.memory_space<vmem>>, vector<1x1x128x128xbf16>
    %65 = vector.shape_cast %64 : vector<1x1x128x128xbf16> to vector<128x128xbf16>
    %cst_44 = arith.constant dense<0.000000e+00> : vector<128x128xf32>
    %66 = tpu.matmul %63, %65, %cst_44 {dimension_numbers = #tpu.dot_dimension_numbers<[1], [0], [0], [1], [0, 0, 1, 1], [], []>} : vector<128x128xbf16>, vector<128x128xbf16>, vector<128x128xf32> -> vector<128x128xf32>
    %c0_45 = arith.constant 0 : index
    %c0_46 = arith.constant 0 : index
    %67 = vector.load %arg11[%c0_45, %c0_46] : memref<128x128xf32, #tpu.memory_space<vmem>>, vector<128x128xf32>
    %68 = arith.addf %67, %66 : vector<128x128xf32>
    %c0_47 = arith.constant 0 : index
    %c0_48 = arith.constant 0 : index
    %69 = vector.load %arg11[%c0_47, %c0_48] : memref<128x128xf32, #tpu.memory_space<vmem>>, vector<128x128xf32>
    tpu.vector_store %arg11[%c0_47, %c0_48], %68 {strides = array<i32>} : memref<128x128xf32, #tpu.memory_space<vmem>>, vector<128x128xf32>,
    %70 = vector.extract_strided_slice %36 {offsets = [16, 0], sizes = [128, 128], strides = [1, 1]} : vector<160x128xbf16> to vector<128x128xbf16>
    %c1_49 = arith.constant 1 : index
    %c2_50 = arith.constant 2 : index
    %c0_51 = arith.constant 0 : index
    %c0_52 = arith.constant 0 : index
    %71 = vector.load %arg7[%c1_49, %c2_50, %c0_51, %c0_52] : memref<3x3x128x128xbf16, #tpu.memory_space<vmem>>, vector<1x1x128x128xbf16>
    %72 = vector.shape_cast %71 : vector<1x1x128x128xbf16> to vector<128x128xbf16>
    %cst_53 = arith.constant dense<0.000000e+00> : vector<128x128xf32>
    %73 = tpu.matmul %70, %72, %cst_53 {dimension_numbers = #tpu.dot_dimension_numbers<[1], [0], [0], [1], [0, 0, 1, 1], [], []>} : vector<128x128xbf16>, vector<128x128xbf16>, vector<128x128xf32> -> vector<128x128xf32>
    %c0_54 = arith.constant 0 : index
    %c0_55 = arith.constant 0 : index
    %74 = vector.load %arg11[%c0_54, %c0_55] : memref<128x128xf32, #tpu.memory_space<vmem>>, vector<128x128xf32>
    %75 = arith.addf %74, %73 : vector<128x128xf32>
    %c0_56 = arith.constant 0 : index
    %c0_57 = arith.constant 0 : index
    %76 = vector.load %arg11[%c0_56, %c0_57] : memref<128x128xf32, #tpu.memory_space<vmem>>, vector<128x128xf32>
    tpu.vector_store %arg11[%c0_56, %c0_57], %75 {strides = array<i32>} : memref<128x128xf32, #tpu.memory_space<vmem>>, vector<128x128xf32>,
    %77 = vector.extract_strided_slice %34 {offsets = [32, 0], sizes = [128, 128], strides = [1, 1]} : vector<160x128xbf16> to vector<128x128xbf16>
    %c2_58 = arith.constant 2 : index
    %c0_59 = arith.constant 0 : index
    %c0_60 = arith.constant 0 : index
    %c0_61 = arith.constant 0 : index
    %78 = vector.load %arg7[%c2_58, %c0_59, %c0_60, %c0_61] : memref<3x3x128x128xbf16, #tpu.memory_space<vmem>>, vector<1x1x128x128xbf16>
    %79 = vector.shape_cast %78 : vector<1x1x128x128xbf16> to vector<128x128xbf16>
    %cst_62 = arith.constant dense<0.000000e+00> : vector<128x128xf32>
    %80 = tpu.matmul %77, %79, %cst_62 {dimension_numbers = #tpu.dot_dimension_numbers<[1], [0], [0], [1], [0, 0, 1, 1], [], []>} : vector<128x128xbf16>, vector<128x128xbf16>, vector<128x128xf32> -> vector<128x128xf32>
    %c0_63 = arith.constant 0 : index
    %c0_64 = arith.constant 0 : index
    %81 = vector.load %arg11[%c0_63, %c0_64] : memref<128x128xf32, #tpu.memory_space<vmem>>, vector<128x128xf32>
    %82 = arith.addf %81, %80 : vector<128x128xf32>
    %c0_65 = arith.constant 0 : index
    %c0_66 = arith.constant 0 : index
    %83 = vector.load %arg11[%c0_65, %c0_66] : memref<128x128xf32, #tpu.memory_space<vmem>>, vector<128x128xf32>
    tpu.vector_store %arg11[%c0_65, %c0_66], %82 {strides = array<i32>} : memref<128x128xf32, #tpu.memory_space<vmem>>, vector<128x128xf32>,
    %84 = vector.extract_strided_slice %35 {offsets = [32, 0], sizes = [128, 128], strides = [1, 1]} : vector<160x128xbf16> to vector<128x128xbf16>
    %c2_67 = arith.constant 2 : index
    %c1_68 = arith.constant 1 : index
    %c0_69 = arith.constant 0 : index
    %c0_70 = arith.constant 0 : index
    %85 = vector.load %arg7[%c2_67, %c1_68, %c0_69, %c0_70] : memref<3x3x128x128xbf16, #tpu.memory_space<vmem>>, vector<1x1x128x128xbf16>
    %86 = vector.shape_cast %85 : vector<1x1x128x128xbf16> to vector<128x128xbf16>
    %cst_71 = arith.constant dense<0.000000e+00> : vector<128x128xf32>
    %87 = tpu.matmul %84, %86, %cst_71 {dimension_numbers = #tpu.dot_dimension_numbers<[1], [0], [0], [1], [0, 0, 1, 1], [], []>} : vector<128x128xbf16>, vector<128x128xbf16>, vector<128x128xf32> -> vector<128x128xf32>
    %c0_72 = arith.constant 0 : index
    %c0_73 = arith.constant 0 : index
    %88 = vector.load %arg11[%c0_72, %c0_73] : memref<128x128xf32, #tpu.memory_space<vmem>>, vector<128x128xf32>
    %89 = arith.addf %88, %87 : vector<128x128xf32>
    %c0_74 = arith.constant 0 : index
    %c0_75 = arith.constant 0 : index
    %90 = vector.load %arg11[%c0_74, %c0_75] : memref<128x128xf32, #tpu.memory_space<vmem>>, vector<128x128xf32>
    tpu.vector_store %arg11[%c0_74, %c0_75], %89 {strides = array<i32>} : memref<128x128xf32, #tpu.memory_space<vmem>>, vector<128x128xf32>,
    %91 = vector.extract_strided_slice %36 {offsets = [32, 0], sizes = [128, 128], strides = [1, 1]} : vector<160x128xbf16> to vector<128x128xbf16>
    %c2_76 = arith.constant 2 : index
    %c2_77 = arith.constant 2 : index
    %c0_78 = arith.constant 0 : index
    %c0_79 = arith.constant 0 : index
    %92 = vector.load %arg7[%c2_76, %c2_77, %c0_78, %c0_79] : memref<3x3x128x128xbf16, #tpu.memory_space<vmem>>, vector<1x1x128x128xbf16>
    %93 = vector.shape_cast %92 : vector<1x1x128x128xbf16> to vector<128x128xbf16>
    %cst_80 = arith.constant dense<0.000000e+00> : vector<128x128xf32>
    %94 = tpu.matmul %91, %93, %cst_80 {dimension_numbers = #tpu.dot_dimension_numbers<[1], [0], [0], [1], [0, 0, 1, 1], [], []>} : vector<128x128xbf16>, vector<128x128xbf16>, vector<128x128xf32> -> vector<128x128xf32>
    %c0_81 = arith.constant 0 : index
    %c0_82 = arith.constant 0 : index
    %95 = vector.load %arg11[%c0_81, %c0_82] : memref<128x128xf32, #tpu.memory_space<vmem>>, vector<128x128xf32>
    %96 = arith.addf %95, %94 : vector<128x128xf32>
    %c0_83 = arith.constant 0 : index
    %c0_84 = arith.constant 0 : index
    %97 = vector.load %arg11[%c0_83, %c0_84] : memref<128x128xf32, #tpu.memory_space<vmem>>, vector<128x128xf32>
    tpu.vector_store %arg11[%c0_83, %c0_84], %96 {strides = array<i32>} : memref<128x128xf32, #tpu.memory_space<vmem>>, vector<128x128xf32>,
    %c0_85 = arith.constant 0 : index
    %c0_86 = arith.constant 0 : index
    %98 = vector.load %arg11[%c0_85, %c0_86] : memref<128x128xf32, #tpu.memory_space<vmem>>, vector<128x128xf32>
    %c0_87 = arith.constant 0 : index
    %c0_88 = arith.constant 0 : index
    %99 = vector.load %arg8[%c0_87, %c0_88] : memref<1x128xf32, #tpu.memory_space<vmem>>, vector<1x128xf32>
    %100 = vector.broadcast %99 : vector<1x128xf32> to vector<128x128xf32>
    %101 = arith.mulf %98, %100 : vector<128x128xf32>
    %c0_89 = arith.constant 0 : index
    %c0_90 = arith.constant 0 : index
    %102 = vector.load %arg9[%c0_89, %c0_90] : memref<1x128xf32, #tpu.memory_space<vmem>>, vector<1x128xf32>
    %103 = vector.broadcast %102 : vector<1x128xf32> to vector<128x128xf32>
    %104 = arith.addf %101, %103 : vector<128x128xf32>
    %cst_91 = arith.constant 0.000000e+00 : f32
    %105 = vector.broadcast %cst_91 : f32 to vector<128x128xf32>
    %106 = arith.maximumf %104, %105 : vector<128x128xf32>
    %c0_92 = arith.constant 0 : index
    %c0_93 = arith.constant 0 : index
    %c0_94 = arith.constant 0 : index
    %107 = vector.load %arg3[%c0_92, %c0_93, %c0_94] : memref<1x128x128xbf16, #tpu.memory_space<vmem>>, vector<1x128x128xbf16>
    %108 = vector.shape_cast %107 : vector<1x128x128xbf16> to vector<128x128xbf16>
    %109 = arith.extf %108 : vector<128x128xbf16> to vector<128x128xf32>
    %c0_95 = arith.constant 0 : index
    %c0_96 = arith.constant 0 : index
    %110 = vector.load %arg5[%c0_95, %c0_96] : memref<1x128xf32, #tpu.memory_space<vmem>>, vector<1x128xf32>
    %111 = vector.broadcast %110 : vector<1x128xf32> to vector<128x128xf32>
    %112 = arith.mulf %109, %111 : vector<128x128xf32>
    %cst_97 = arith.constant dense<0.000000e+00> : vector<128xf32>
    %113 = vector.multi_reduction <add>, %112, %cst_97 [1] : vector<128x128xf32> to vector<128xf32>
    %114 = vector.shape_cast %113 : vector<128xf32> to vector<128x1xf32>
    %c0_98 = arith.constant 0 : index
    %c0_99 = arith.constant 0 : index
    %115 = vector.load %arg6[%c0_98, %c0_99] : memref<1x1xf32, #tpu.memory_space<vmem>>, vector<1x1xf32>
    %116 = vector.broadcast %115 : vector<1x1xf32> to vector<128x1xf32>
    %117 = arith.addf %114, %116 : vector<128x1xf32>
    %118 = arith.negf %117 : vector<128x1xf32>
    %119 = math.exp %118 : vector<128x1xf32>
    %cst_100 = arith.constant 1.000000e+00 : f32
    %120 = vector.broadcast %cst_100 : f32 to vector<128x1xf32>
    %121 = arith.addf %120, %119 : vector<128x1xf32>
    %122 = arith.divf %120, %121 : vector<128x1xf32>
    %c0_101 = arith.constant 0 : index
    %c0_102 = arith.constant 0 : index
    %c0_103 = arith.constant 0 : index
    %123 = vector.load %arg4[%c0_101, %c0_102, %c0_103] : memref<1x1x128xf32, #tpu.memory_space<vmem>>, vector<1x1x128xf32>
    %124 = vector.shape_cast %123 : vector<1x1x128xf32> to vector<1x128xf32>
    %125 = vector.extract_strided_slice %3 {offsets = [16, 0], sizes = [128, 128], strides = [1, 1]} : vector<160x128xf32> to vector<128x128xf32>
    %126 = vector.broadcast %124 : vector<1x128xf32> to vector<128x128xf32>
    %127 = vector.broadcast %122 : vector<128x1xf32> to vector<128x128xf32>
    %128 = arith.addf %126, %127 : vector<128x128xf32>
    %129 = arith.mulf %125, %128 : vector<128x128xf32>
    %130 = arith.addf %129, %106 : vector<128x128xf32>
    %c0_104 = arith.constant 0 : index
    %c0_105 = arith.constant 0 : index
    %c0_106 = arith.constant 0 : index
    %131 = vector.load %arg10[%c0_104, %c0_105, %c0_106] : memref<1x128x128xf32, #tpu.memory_space<vmem>>, vector<1x128x128xf32>
    %132 = vector.shape_cast %131 : vector<1x128x128xf32> to vector<128x128xf32>
    %133 = vector.shape_cast %130 : vector<128x128xf32> to vector<1x128x128xf32>
    tpu.vector_store %arg10[%c0_104, %c0_105, %c0_106], %133 {strides = array<i32>} : memref<1x128x128xf32, #tpu.memory_space<vmem>>, vector<1x128x128xf32>,
    return
  }
  func.func @transform_0(%arg0: i32, %arg1: i32) -> (i32, i32, i32, i32) {
    %c2_i32 = arith.constant 2 : i32
    %0 = arith.muli %arg0, %c2_i32 : i32
    %1 = arith.addi %0, %arg1 : i32
    %c0_i32 = arith.constant 0 : i32
    %c0_i32_0 = arith.constant 0 : i32
    %c0_i32_1 = arith.constant 0 : i32
    %c0_i32_2 = arith.constant 0 : i32
    return %1, %c0_i32, %c0_i32_0, %c0_i32_1 : i32, i32, i32, i32
  }
  func.func @transform_1(%arg0: i32, %arg1: i32) -> (i32, i32, i32) {
    %c0_i32 = arith.constant 0 : i32
    %c0_i32_0 = arith.constant 0 : i32
    return %arg0, %arg1, %c0_i32 : i32, i32, i32
  }
  func.func @transform_2(%arg0: i32, %arg1: i32) -> (i32, i32, i32) {
    %c0_i32 = arith.constant 0 : i32
    %c0_i32_0 = arith.constant 0 : i32
    %c0_i32_1 = arith.constant 0 : i32
    return %arg0, %c0_i32, %c0_i32_0 : i32, i32, i32
  }
  func.func @transform_3(%arg0: i32, %arg1: i32) -> (i32, i32) {
    %c0_i32 = arith.constant 0 : i32
    %c0_i32_0 = arith.constant 0 : i32
    %c0_i32_1 = arith.constant 0 : i32
    return %c0_i32, %c0_i32_0 : i32, i32
  }
  func.func @transform_4(%arg0: i32, %arg1: i32) -> (i32, i32) {
    %c0_i32 = arith.constant 0 : i32
    %c0_i32_0 = arith.constant 0 : i32
    %c0_i32_1 = arith.constant 0 : i32
    return %c0_i32, %c0_i32_0 : i32, i32
  }
  func.func @transform_5(%arg0: i32, %arg1: i32) -> (i32, i32, i32, i32) {
    %c0_i32 = arith.constant 0 : i32
    %c0_i32_0 = arith.constant 0 : i32
    %c0_i32_1 = arith.constant 0 : i32
    %c0_i32_2 = arith.constant 0 : i32
    %c0_i32_3 = arith.constant 0 : i32
    return %c0_i32, %c0_i32_0, %c0_i32_1, %c0_i32_2 : i32, i32, i32, i32
  }
  func.func @transform_6(%arg0: i32, %arg1: i32) -> (i32, i32) {
    %c0_i32 = arith.constant 0 : i32
    %c0_i32_0 = arith.constant 0 : i32
    %c0_i32_1 = arith.constant 0 : i32
    return %c0_i32, %c0_i32_0 : i32, i32
  }
  func.func @transform_7(%arg0: i32, %arg1: i32) -> (i32, i32) {
    %c0_i32 = arith.constant 0 : i32
    %c0_i32_0 = arith.constant 0 : i32
    %c0_i32_1 = arith.constant 0 : i32
    return %c0_i32, %c0_i32_0 : i32, i32
  }
  func.func @transform_8(%arg0: i32, %arg1: i32) -> (i32, i32, i32) {
    %c0_i32 = arith.constant 0 : i32
    %c0_i32_0 = arith.constant 0 : i32
    return %arg0, %arg1, %c0_i32 : i32, i32, i32
  }
}

</mosaic_0001>

<llo_original>
// kernel: tem_scse_module3.1
$region0: #{tem_scse_module3.1}
  #allocation0 [shape = 'u32[]', space=smem, size = 0x4, offset = 0x4, fixed_abs, tag = 'smem constant byte address 0x4 - core index']
  #allocation1 [shape = 'u32[72,128]{1,0:T(1,128)}', space=vmem, size = 0x9000, scoped, tag = 'internal scratch']
  #allocation2 [shape = 'f32[128,128]{1,0:T(8,128)}', space=vmem, size = 0x10000, scoped, tag = 'scratch operand']
  #allocation3 [shape = 'f32[1,1]{1,0:T(1,128)S(1)}', space=vmem, size = 0x200, scoped, tag = 'scoped memory for tem_scse_module3.1']
  %s0 = inlined_call_operand.vmem [shape: bf16[4,10,16,128], index: 0, kind: input, shape index: {}]
  %s1 = inlined_call_operand.vmem [shape: bf16[2,256,128], index: 1, kind: input, shape index: {}]
  %s2 = inlined_call_operand.vmem [shape: f32[2,1,128], index: 2, kind: input, shape index: {}]
  %s3 = inlined_call_operand.vmem [shape: f32[1,128], index: 3, kind: input, shape index: {}]
  %s4 = inlined_call_operand.<no memory space> [shape: f32[1,1], index: 4, kind: input, shape index: {}]
  %s5 = inlined_call_operand.vmem [shape: bf16[3,3,128,128], index: 5, kind: input, shape index: {}]
  %s6 = inlined_call_operand.vmem [shape: f32[1,128], index: 6, kind: input, shape index: {}]
  %s7 = inlined_call_operand.vmem [shape: f32[1,128], index: 7, kind: input, shape index: {}]
  %s8 = inlined_call_operand.hbm [shape: f32[2,256,128], index: 8, kind: output, shape index: {}]
  %s9 = sld [smem:[#allocation0]]
  $region65: #{tem_scse_module3.1} parent=0
    _
  %s11 = ssub.s32 1, %s9
  %s12 = scalar_select 0, %s11, %s9
  %v13 = vstv %s4
  %14 = vst [vmem:[#allocation3] sm:$0x1] %v13
  $region1: #{tem_scse_module3.1} parent=0
    #allocation4 [shape = 'u8[131072]{0}', space=vmem, size = 0x20000, scoped, tag = 'output window, operand 0']
    #allocation5 [shape = 's32[2]{0}', space=sflag, size = 0x8, scoped, tag = 'scoped memory for tem_scse_module3.1']
    %15 = vsyncpa [#allocation5], 0
    %s16 = scalar_lea.sflag [#allocation5], 1
    %17 = vsyncpa %s16, 0
    loop: start=0, step=1, limit=6
    $region2: #{tem_scse_module3.1} parent=1 // loop_pre_header
      _
    $region3: #{tem_scse_module3.1} parent=1 // loop_header
      %s19 = sphi 0, %s23
      %p20 = scmp.ge.s32.totalorder %s19, 6
      %s26 = sphi 0, %s38
      %s27 = sphi 0, %s34
      %s28 = sphi 0, %s26
      %s29 = sphi 0, %s27
      %s30 = sphi 0, %s28
      %s31 = sphi 0, %s29
      %s45 = sphi 0, %s47
      %s48 = sphi 0, %s45
      %s49 = sphi 0, %s48
      %s65 = sphi 0, %s49
      %s73 = sphi 0, %s75
      %s76 = sphi 0, %s73
      %s77 = sphi 0, %s76
      %s93 = sphi 0, %s77
      %s99 = sphi 0, %s101
      %s102 = sphi 0, %s99
      %s103 = sphi 0, %s102
      %s119 = sphi 0, %s103
      %s123 = sphi 0, %s123
      %s125 = sphi 0, %s123
      %s126 = sphi 0, %s125
      %s140 = sphi 0, %s126
      %s144 = sphi 0, %s144
      %s146 = sphi 0, %s144
      %s147 = sphi 0, %s146
      %s161 = sphi 0, %s147
      %s165 = sphi 0, %s165
      %s167 = sphi 0, %s165
      %s168 = sphi 0, %s167
      %s182 = sphi 0, %s168
      %s186 = sphi 0, %s186
      %s188 = sphi 0, %s186
      %s189 = sphi 0, %s188
      %s203 = sphi 0, %s189
      %s207 = sphi 0, %s207
      %s209 = sphi 0, %s207
      %s210 = sphi 0, %s209
      %s224 = sphi 0, %s210
      %s232 = sphi 0, %s234
      %s235 = sphi 0, %s232
      %s236 = sphi 0, %s235
      %s252 = sphi 0, %s236
    $region4: #{tem_scse_module3.1} parent=1 // loop_header_branch
      %22 = sbr.rel (%p20) target = $region8
    $region5: #{tem_scse_module3.1} parent=1 // loop_body
      %s24 = ssub.s32 %s19, 1
      %s25 = ssub.s32 %s19, 2
      %s32 = sadd.s32 1, %s27
      %p33 = scmp.ge.s32.totalorder %s32, 2
      %s34 = scalar_select %p33, 0, %s32
      %s35 = sadd.s32 1, %s26
      %s36 = scalar_select %p33, %s35, %s26
      %p37 = scmp.ge.s32.totalorder %s36, 2
      %s38 = scalar_select %p37, 0, %s36
      %s39 = smul.u32 %s26, 2
      %s40 = sadd.s32 %s39, %s27
      %s41 = smul.u32 %s38, 2
      %s42 = sadd.s32 %s41, %s34
      %s43 = ssub.s32 %s40, %s42
      %p44 = scmp.eq.s32.totalorder %s43, 0
      %s46 = sadd.s32 %s45, 1
      %s47 = scalar_select %p44, %s45, %s46
      %p50 = pneg %p44
      %p51 = scmp.eq.s32.totalorder %s19, 3
      %p52 = por %p50, %p51
      %p53 = scmp.ne.s32.totalorder %s45, %s48
      %p54 = scmp.eq.s32.totalorder %s19, 0
      %p55 = por %p53, %p54
      %p56 = scmp.ne.s32.totalorder %s45, %s48
      %p57 = scmp.eq.s32.totalorder %s24, 3
      %p58 = por %p56, %p57
      %p59 = scmp.ne.s32.totalorder %s48, %s49
      %p60 = scmp.eq.s32.totalorder %s24, 0
      %p61 = por %p59, %p60
      %p62 = scmp.ne.s32.totalorder %s48, %s49
      %p63 = scmp.eq.s32.totalorder %s25, 3
      %p64 = por %p62, %p63
      %p66 = scmp.ne.s32.totalorder %s49, %s65
      %p67 = scmp.eq.s32.totalorder %s25, 0
      %p68 = por %p66, %p67
      %s69 = ssub.s32 %s26, %s38
      %s70 = ssub.s32 %s27, %s34
      %s71 = sor.u32 %s69, %s70
      %p72 = scmp.eq.s32.totalorder %s71, 0
      %s74 = sadd.s32 %s73, 1
      %s75 = scalar_select %p72, %s73, %s74
      %p78 = pneg %p72
      %p79 = scmp.eq.s32.totalorder %s19, 3
      %p80 = por %p78, %p79
      %p81 = scmp.ne.s32.totalorder %s73, %s76
      %p82 = scmp.eq.s32.totalorder %s19, 0
      %p83 = por %p81, %p82
      %p84 = scmp.ne.s32.totalorder %s73, %s76
      %p85 = scmp.eq.s32.totalorder %s24, 3
      %p86 = por %p84, %p85
      %p87 = scmp.ne.s32.totalorder %s76, %s77
      %p88 = scmp.eq.s32.totalorder %s24, 0
      %p89 = por %p87, %p88
      %p90 = scmp.ne.s32.totalorder %s76, %s77
      %p91 = scmp.eq.s32.totalorder %s25, 3
      %p92 = por %p90, %p91
      %p94 = scmp.ne.s32.totalorder %s77, %s93
      %p95 = scmp.eq.s32.totalorder %s25, 0
      %p96 = por %p94, %p95
      %s97 = ssub.s32 %s26, %s38
      %p98 = scmp.eq.s32.totalorder %s97, 0
      %s100 = sadd.s32 %s99, 1
      %s101 = scalar_select %p98, %s99, %s100
      %p104 = pneg %p98
      %p105 = scmp.eq.s32.totalorder %s19, 3
      %p106 = por %p104, %p105
      %p107 = scmp.ne.s32.totalorder %s99, %s102
      %p108 = scmp.eq.s32.totalorder %s19, 0
      %p109 = por %p107, %p108
      %p110 = scmp.ne.s32.totalorder %s99, %s102
      %p111 = scmp.eq.s32.totalorder %s24, 3
      %p112 = por %p110, %p111
      %p113 = scmp.ne.s32.totalorder %s102, %s103
      %p114 = scmp.eq.s32.totalorder %s24, 0
      %p115 = por %p113, %p114
      %p116 = scmp.ne.s32.totalorder %s102, %s103
      %p117 = scmp.eq.s32.totalorder %s25, 3
      %p118 = por %p116, %p117
      %p120 = scmp.ne.s32.totalorder %s103, %s119
      %p121 = scmp.eq.s32.totalorder %s25, 0
      %p122 = por %p120, %p121
      %s124 = sadd.s32 %s123, 1
      %p127 = scmp.eq.s32.totalorder %s19, 3
      %p128 = scmp.ne.s32.totalorder %s123, %s125
      %p129 = scmp.eq.s32.totalorder %s19, 0
      %p130 = por %p128, %p129
      %p131 = scmp.ne.s32.totalorder %s123, %s125
      %p132 = scmp.eq.s32.totalorder %s24, 3
      %p133 = por %p131, %p132
      %p134 = scmp.ne.s32.totalorder %s125, %s126
      %p135 = scmp.eq.s32.totalorder %s24, 0
      %p136 = por %p134, %p135
      %p137 = scmp.ne.s32.totalorder %s125, %s126
      %p138 = scmp.eq.s32.totalorder %s25, 3
      %p139 = por %p137, %p138
      %p141 = scmp.ne.s32.totalorder %s126, %s140
      %p142 = scmp.eq.s32.totalorder %s25, 0
      %p143 = por %p141, %p142
      %s145 = sadd.s32 %s144, 1
      %p148 = scmp.eq.s32.totalorder %s19, 3
      %p149 = scmp.ne.s32.totalorder %s144, %s146
      %p150 = scmp.eq.s32.totalorder %s19, 0
      %p151 = por %p149, %p150
      %p152 = scmp.ne.s32.totalorder %s144, %s146
      %p153 = scmp.eq.s32.totalorder %s24, 3
      %p154 = por %p152, %p153
      %p155 = scmp.ne.s32.totalorder %s146, %s147
      %p156 = scmp.eq.s32.totalorder %s24, 0
      %p157 = por %p155, %p156
      %p158 = scmp.ne.s32.totalorder %s146, %s147
      %p159 = scmp.eq.s32.totalorder %s25, 3
      %p160 = por %p158, %p159
      %p162 = scmp.ne.s32.totalorder %s147, %s161
      %p163 = scmp.eq.s32.totalorder %s25, 0
      %p164 = por %p162, %p163
      %s166 = sadd.s32 %s165, 1
      %p169 = scmp.eq.s32.totalorder %s19, 3
      %p170 = scmp.ne.s32.totalorder %s165, %s167
      %p171 = scmp.eq.s32.totalorder %s19, 0
      %p172 = por %p170, %p171
      %p173 = scmp.ne.s32.totalorder %s165, %s167
      %p174 = scmp.eq.s32.totalorder %s24, 3
      %p175 = por %p173, %p174
      %p176 = scmp.ne.s32.totalorder %s167, %s168
      %p177 = scmp.eq.s32.totalorder %s24, 0
      %p178 = por %p176, %p177
      %p179 = scmp.ne.s32.totalorder %s167, %s168
      %p180 = scmp.eq.s32.totalorder %s25, 3
      %p181 = por %p179, %p180
      %p183 = scmp.ne.s32.totalorder %s168, %s182
      %p184 = scmp.eq.s32.totalorder %s25, 0
      %p185 = por %p183, %p184
      %s187 = sadd.s32 %s186, 1
      %p190 = scmp.eq.s32.totalorder %s19, 3
      %p191 = scmp.ne.s32.totalorder %s186, %s188
      %p192 = scmp.eq.s32.totalorder %s19, 0
      %p193 = por %p191, %p192
      %p194 = scmp.ne.s32.totalorder %s186, %s188
      %p195 = scmp.eq.s32.totalorder %s24, 3
      %p196 = por %p194, %p195
      %p197 = scmp.ne.s32.totalorder %s188, %s189
      %p198 = scmp.eq.s32.totalorder %s24, 0
      %p199 = por %p197, %p198
      %p200 = scmp.ne.s32.totalorder %s188, %s189
      %p201 = scmp.eq.s32.totalorder %s25, 3
      %p202 = por %p200, %p201
      %p204 = scmp.ne.s32.totalorder %s189, %s203
      %p205 = scmp.eq.s32.totalorder %s25, 0
      %p206 = por %p204, %p205
      %s208 = sadd.s32 %s207, 1
      %p211 = scmp.eq.s32.totalorder %s19, 3
      %p212 = scmp.ne.s32.totalorder %s207, %s209
      %p213 = scmp.eq.s32.totalorder %s19, 0
      %p214 = por %p212, %p213
      %p215 = scmp.ne.s32.totalorder %s207, %s209
      %p216 = scmp.eq.s32.totalorder %s24, 3
      %p217 = por %p215, %p216
      %p218 = scmp.ne.s32.totalorder %s209, %s210
      %p219 = scmp.eq.s32.totalorder %s24, 0
      %p220 = por %p218, %p219
      %p221 = scmp.ne.s32.totalorder %s209, %s210
      %p222 = scmp.eq.s32.totalorder %s25, 3
      %p223 = por %p221, %p222
      %p225 = scmp.ne.s32.totalorder %s210, %s224
      %p226 = scmp.eq.s32.totalorder %s25, 0
      %p227 = por %p225, %p226
      %s228 = ssub.s32 %s26, %s38
      %s229 = ssub.s32 %s27, %s34
      %s230 = sor.u32 %s228, %s229
      %p231 = scmp.eq.s32.totalorder %s230, 0
      %s233 = sadd.s32 %s232, 1
      %s234 = scalar_select %p231, %s232, %s233
      %p237 = pneg %p231
      %p238 = scmp.eq.s32.totalorder %s19, 3
      %p239 = por %p237, %p238
      %p240 = scmp.ne.s32.totalorder %s232, %s235
      %p241 = scmp.eq.s32.totalorder %s19, 0
      %p242 = por %p240, %p241
      %p243 = scmp.ne.s32.totalorder %s232, %s235
      %p244 = scmp.eq.s32.totalorder %s24, 3
      %p245 = por %p243, %p244
      %p246 = scmp.ne.s32.totalorder %s235, %s236
      %p247 = scmp.eq.s32.totalorder %s24, 0
      %p248 = por %p246, %p247
      %p249 = scmp.ne.s32.totalorder %s235, %s236
      %p250 = scmp.eq.s32.totalorder %s25, 3
      %p251 = por %p249, %p250
      %p253 = scmp.ne.s32.totalorder %s236, %s252
      %p254 = scmp.eq.s32.totalorder %s25, 0
      %p255 = por %p253, %p254
      %p256 = scmp.le.s32.totalorder 1, %s19
      %p257 = scmp.lt.s32.totalorder %s19, 5
      %p258 = pnand %p256, %p257
      %p259 = pneg %p258
      // Predicated region
      $region9: #{tem_scse_module3.1} parent=5 // pred_check
        _
      $region10: #{tem_scse_module3.1} parent=5 // pred_check_branch
        %261 = sbr.rel (%p258) target = $region12
      $region11: #{tem_scse_module3.1} parent=5 // pred_region
        %s262 = ssub.s32 %s19, 1
        // Predicated region
        $region13: #{tem_scse_module3.1} parent=11 // pred_check
          %p263 = pneg %p136
        $region14: #{tem_scse_module3.1} parent=11 // pred_check_branch
          %265 = sbr.rel (%p263) target = $region16
        $region15: #{tem_scse_module3.1} parent=11 // pred_region
          _
        $region16: #{tem_scse_module3.1} parent=11 // pred_fallthru
          _
        // Predicated region
        $region17: #{tem_scse_module3.1} parent=11 // pred_check
          %p266 = pneg %p157
        $region18: #{tem_scse_module3.1} parent=11 // pred_check_branch
          %268 = sbr.rel (%p266) target = $region20
        $region19: #{tem_scse_module3.1} parent=11 // pred_region
          _
        $region20: #{tem_scse_module3.1} parent=11 // pred_fallthru
          _
        // Predicated region
        $region21: #{tem_scse_module3.1} parent=11 // pred_check
          %p269 = pneg %p178
        $region22: #{tem_scse_module3.1} parent=11 // pred_check_branch
          %271 = sbr.rel (%p269) target = $region24
        $region23: #{tem_scse_module3.1} parent=11 // pred_region
          _
        $region24: #{tem_scse_module3.1} parent=11 // pred_fallthru
          _
        // Predicated region
        $region25: #{tem_scse_module3.1} parent=11 // pred_check
          %p272 = pneg %p199
        $region26: #{tem_scse_module3.1} parent=11 // pred_check_branch
          %274 = sbr.rel (%p272) target = $region28
        $region27: #{tem_scse_module3.1} parent=11 // pred_region
          _
        $region28: #{tem_scse_module3.1} parent=11 // pred_fallthru
          _
        // Predicated region
        $region29: #{tem_scse_module3.1} parent=11 // pred_check
          %p275 = pneg %p220
        $region30: #{tem_scse_module3.1} parent=11 // pred_check_branch
          %277 = sbr.rel (%p275) target = $region32
        $region31: #{tem_scse_module3.1} parent=11 // pred_region
          _
        $region32: #{tem_scse_module3.1} parent=11 // pred_fallthru
          _
      $region12: #{tem_scse_module3.1} parent=5 // pred_fallthru
        _
      %p278 = scmp.lt.s32.totalorder %s19, 4
      // Predicated region
      $region33: #{tem_scse_module3.1} parent=5 // pred_check
        %p279 = pneg %p278
      $region34: #{tem_scse_module3.1} parent=5 // pred_check_branch
        %281 = sbr.rel (%p279) target = $region36
      $region35: #{tem_scse_module3.1} parent=5 // pred_region
        // Predicated region
        $region37: #{tem_scse_module3.1} parent=35 // pred_check
          %p282 = pneg %p55
        $region38: #{tem_scse_module3.1} parent=35 // pred_check_branch
          %284 = sbr.rel (%p282) target = $region40
        $region39: #{tem_scse_module3.1} parent=35 // pred_region
          %s285 = smul.u32 %s26, 2
          %s286 = sadd.s32 %s285, %s27
          %p287 = scmp.lt.s32.totalorder %s286, 3
          %s288 = scalar_select %p287, %s286, 3
          %s289 = smul.addr %s288, 20
          %s290 = smul.addr %s289, 4
          %s291 = scalar_lea.vmem %s0, %s290
          %s292 = smul.u32 %s26, 2
          %s293 = sadd.s32 %s292, %s27
        $region40: #{tem_scse_module3.1} parent=35 // pred_fallthru
          _
        // Predicated region
        $region41: #{tem_scse_module3.1} parent=35 // pred_check
          %p294 = pneg %p83
        $region42: #{tem_scse_module3.1} parent=35 // pred_check_branch
          %296 = sbr.rel (%p294) target = $region44
        $region43: #{tem_scse_module3.1} parent=35 // pred_region
          %s297 = smul.u32 16, %s27
          %p298 = scmp.lt.s32.totalorder %s26, 1
          %s299 = scalar_select %p298, %s26, 1
          %p300 = scmp.lt.s32.totalorder %s297, 31
          %s301 = scalar_select %p300, %s297, 31
          %s302 = smul.addr %s299, 32
          %s303 = sadd.s32 %s301, %s302
          %s304 = smul.addr %s303, 4
          %s305 = scalar_lea.vmem %s1, %s304
          %s306 = smul.u32 16, %s27
        $region44: #{tem_scse_module3.1} parent=35 // pred_fallthru
          _
        // Predicated region
        $region45: #{tem_scse_module3.1} parent=35 // pred_check
          %p307 = pneg %p109
        $region46: #{tem_scse_module3.1} parent=35 // pred_check_branch
          %309 = sbr.rel (%p307) target = $region48
        $region47: #{tem_scse_module3.1} parent=35 // pred_region
          %p310 = scmp.lt.s32.totalorder %s26, 1
          %s311 = scalar_select %p310, %s26, 1
          %s312 = scalar_lea.vmem %s2, %s311
        $region48: #{tem_scse_module3.1} parent=35 // pred_fallthru
          _
      $region36: #{tem_scse_module3.1} parent=5 // pred_fallthru
        _
      %p313 = scmp.le.s32.totalorder 1, %s19
      %p314 = scmp.lt.s32.totalorder %s19, 5
      %p315 = pnand %p313, %p314
      %p316 = pneg %p315
      // Predicated region
      $region49: #{tem_scse_module3.1} parent=5 // pred_check
        _
      $region50: #{tem_scse_module3.1} parent=5 // pred_check_branch
        %318 = sbr.rel (%p315) target = $region52
      $region51: #{tem_scse_module3.1} parent=5 // pred_region
        %s319 = ssub.s32 %s19, 1
        %s320 = smul.u32 %s28, 2
        %s321 = sadd.s32 %s320, %s29
        %p322 = scmp.lt.s32.totalorder %s321, 3
        %s323 = scalar_select %p322, %s321, 3
        %s324 = smul.addr %s323, 20
        %s325 = smul.addr %s324, 4
        %s326 = scalar_lea.vmem %s0, %s325
        %p327 = pneg %p61
        %p328 = pneg %p58
        %s329 = smul.u32 16, %s29
        %p330 = scmp.lt.s32.totalorder %s28, 1
        %s331 = scalar_select %p330, %s28, 1
        %p332 = scmp.lt.s32.totalorder %s329, 31
        %s333 = scalar_select %p332, %s329, 31
        %s334 = smul.addr %s331, 32
        %s335 = sadd.s32 %s333, %s334
        %s336 = smul.addr %s335, 4
        %s337 = scalar_lea.vmem %s1, %s336
        %p338 = pneg %p89
        %p339 = pneg %p86
        %p340 = scmp.lt.s32.totalorder %s28, 1
        %s341 = scalar_select %p340, %s28, 1
        %s342 = scalar_lea.vmem %s2, %s341
        %p343 = pneg %p115
        %p344 = pneg %p112
        %p345 = pneg %p136
        %p346 = pneg %p133
        %p347 = pneg %p157
        %p348 = pneg %p154
        %p349 = pneg %p178
        %p350 = pneg %p175
        %p351 = pneg %p199
        %p352 = pneg %p196
        %p353 = pneg %p220
        %p354 = pneg %p217
        %p355 = pneg %p248
        %p356 = pneg %p245
        %s357 = sand.u32 %s235, 1
        %s358 = scalar_lea.sflag [#allocation5], %s357
        %s359 = sand.u32 %s235, 1
        %s360 = smul.addr %s359, 128
        %s361 = scalar_lea.vmem [#allocation4], %s360
        %s362 = smul.u32 %s28, 2
        %s363 = sadd.s32 %s362, %s29
        %p364 = scmp.lt.s32.totalorder %s363, 3
        %s365 = scalar_select %p364, %s363, 3
        %s366 = smul.addr %s365, 20
        %s367 = smul.addr %s366, 4
        %s368 = scalar_lea.vmem %s0, %s367
        %s369 = smul.u32 %s28, 2
        %s370 = sadd.s32 %s369, %s29
        %s371 = smul.u32 16, %s29
        %p372 = scmp.lt.s32.totalorder %s28, 1
        %s373 = scalar_select %p372, %s28, 1
        %p374 = scmp.lt.s32.totalorder %s371, 31
        %s375 = scalar_select %p374, %s371, 31
        %s376 = smul.addr %s373, 32
        %s377 = sadd.s32 %s375, %s376
        %s378 = smul.addr %s377, 4
        %s379 = scalar_lea.vmem %s1, %s378
        %s380 = smul.u32 16, %s29
        %p381 = scmp.lt.s32.totalorder %s28, 1
        %s382 = scalar_select %p381, %s28, 1
        %s383 = scalar_lea.vmem %s2, %s382
        %s384 = smul.u32 16, %s29
        %v385 = vld [vmem:[%s368] sm:$0xf]
        %v386 = vld [vmem:[%s368 + $0x4] sm:$0xf]
        %v387 = vld [vmem:[%s368 + $0x8] sm:$0xf]
        %v388 = vld [vmem:[%s368 + $0xc] sm:$0xf]
        %v389 = vld [vmem:[%s368 + $0x10] sm:$0xf]
        %v390 = vld [vmem:[%s368 + $0x14] sm:$0xf]
        %v391 = vld [vmem:[%s368 + $0x18] sm:$0xf]
        %v392 = vld [vmem:[%s368 + $0x1c] sm:$0xf]
        %v393 = vld [vmem:[%s368 + $0x20] sm:$0xf]
        %v394 = vld [vmem:[%s368 + $0x24] sm:$0xf]
        %v395 = vld [vmem:[%s368 + $0x28] sm:$0xf]
        %v396 = vld [vmem:[%s368 + $0x2c] sm:$0xf]
        %v397 = vld [vmem:[%s368 + $0x30] sm:$0xf]
        %v398 = vld [vmem:[%s368 + $0x34] sm:$0xf]
        %v399 = vld [vmem:[%s368 + $0x38] sm:$0xf]
        %v400 = vld [vmem:[%s368 + $0x3c] sm:$0xf]
        %v401 = vld [vmem:[%s368 + $0x40] sm:$0xf]
        %v402 = vld [vmem:[%s368 + $0x44] sm:$0xf]
        %v403 = vld [vmem:[%s368 + $0x48] sm:$0xf]
        %v404 = vld [vmem:[%s368 + $0x4c] sm:$0xf]
        %v405 = vunpack.c.l.bf16 %v385
        %v406 = vunpack.c.l.bf16 %v386
        %v407 = vunpack.c.l.bf16 %v387
        %v408 = vunpack.c.l.bf16 %v388
        %v409 = vunpack.c.l.bf16 %v389
        %v410 = vunpack.c.l.bf16 %v390
        %v411 = vunpack.c.l.bf16 %v391
        %v412 = vunpack.c.l.bf16 %v392
        %v413 = vunpack.c.l.bf16 %v393
        %v414 = vunpack.c.l.bf16 %v394
        %v415 = vunpack.c.l.bf16 %v395
        %v416 = vunpack.c.l.bf16 %v396
        %v417 = vunpack.c.l.bf16 %v397
        %v418 = vunpack.c.l.bf16 %v398
        %v419 = vunpack.c.l.bf16 %v399
        %v420 = vunpack.c.l.bf16 %v400
        %v421 = vunpack.c.l.bf16 %v401
        %v422 = vunpack.c.l.bf16 %v402
        %v423 = vunpack.c.l.bf16 %v403
        %v424 = vunpack.c.l.bf16 %v404
        %v425 = vlaneseq
        %v426 = vshrl.u32 %v425, 7
        %v427 = vadd.s32 %v426, 8
        %v428 = vadd.s32 %v426, 16
        %v429 = vadd.s32 %v426, 24
        %v430 = vadd.s32 %v426, 32
        %v431 = vadd.s32 %v426, 40
        %v432 = vadd.s32 %v426, 48
        %v433 = vadd.s32 %v426, 56
        %v434 = vadd.s32 %v426, 64
        %v435 = vadd.s32 %v426, 72
        %v436 = vadd.s32 %v426, 80
        %v437 = vadd.s32 %v426, 88
        %v438 = vadd.s32 %v426, 96
        %v439 = vadd.s32 %v426, 104
        %v440 = vadd.s32 %v426, 112
        %v441 = vadd.s32 %v426, 120
        %v442 = vadd.s32 %v426, 128
        %v443 = vadd.s32 %v426, 136
        %v444 = vadd.s32 %v426, 144
        %v445 = vadd.s32 %v426, 152
        %vm446 = vcmp.lt.s32.totalorder %v426, 0
        %v447 = vsub.s32 0, %v426
        %v448 = vsel %vm446, %v447, %v426
        %v449 = vshrl.u32 %v448, 4
        %v450 = vand.u32 %v448, 15
        %v451 = vsub.s32 0, %v450
        %v452 = vsel %vm446, %v451, %v450
        %vm453 = vcmp.lt.s32.totalorder %v427, 0
        %v454 = vsub.s32 0, %v427
        %v455 = vsel %vm453, %v454, %v427
        %v456 = vshrl.u32 %v455, 4
        %v457 = vand.u32 %v455, 15
        %v458 = vsub.s32 0, %v457
        %v459 = vsel %vm453, %v458, %v457
        %vm460 = vcmp.lt.s32.totalorder %v428, 0
        %v461 = vsub.s32 0, %v428
        %v462 = vsel %vm460, %v461, %v428
        %v463 = vshrl.u32 %v462, 4
        %v464 = vand.u32 %v462, 15
        %v465 = vsub.s32 0, %v464
        %v466 = vsel %vm460, %v465, %v464
        %vm467 = vcmp.lt.s32.totalorder %v429, 0
        %v468 = vsub.s32 0, %v429
        %v469 = vsel %vm467, %v468, %v429
        %v470 = vshrl.u32 %v469, 4
        %v471 = vand.u32 %v469, 15
        %v472 = vsub.s32 0, %v471
        %v473 = vsel %vm467, %v472, %v471
        %vm474 = vcmp.lt.s32.totalorder %v430, 0
        %v475 = vsub.s32 0, %v430
        %v476 = vsel %vm474, %v475, %v430
        %v477 = vshrl.u32 %v476, 4
        %v478 = vand.u32 %v476, 15
        %v479 = vsub.s32 0, %v478
        %v480 = vsel %vm474, %v479, %v478
        %vm481 = vcmp.lt.s32.totalorder %v431, 0
        %v482 = vsub.s32 0, %v431
        %v483 = vsel %vm481, %v482, %v431
        %v484 = vshrl.u32 %v483, 4
        %v485 = vand.u32 %v483, 15
        %v486 = vsub.s32 0, %v485
        %v487 = vsel %vm481, %v486, %v485
        %vm488 = vcmp.lt.s32.totalorder %v432, 0
        %v489 = vsub.s32 0, %v432
        %v490 = vsel %vm488, %v489, %v432
        %v491 = vshrl.u32 %v490, 4
        %v492 = vand.u32 %v490, 15
        %v493 = vsub.s32 0, %v492
        %v494 = vsel %vm488, %v493, %v492
        %vm495 = vcmp.lt.s32.totalorder %v433, 0
        %v496 = vsub.s32 0, %v433
        %v497 = vsel %vm495, %v496, %v433
        %v498 = vshrl.u32 %v497, 4
        %v499 = vand.u32 %v497, 15
        %v500 = vsub.s32 0, %v499
        %v501 = vsel %vm495, %v500, %v499
        %vm502 = vcmp.lt.s32.totalorder %v434, 0
        %v503 = vsub.s32 0, %v434
        %v504 = vsel %vm502, %v503, %v434
        %v505 = vshrl.u32 %v504, 4
        %v506 = vand.u32 %v504, 15
        %v507 = vsub.s32 0, %v506
        %v508 = vsel %vm502, %v507, %v506
        %vm509 = vcmp.lt.s32.totalorder %v435, 0
        %v510 = vsub.s32 0, %v435
        %v511 = vsel %vm509, %v510, %v435
        %v512 = vshrl.u32 %v511, 4
        %v513 = vand.u32 %v511, 15
        %v514 = vsub.s32 0, %v513
        %v515 = vsel %vm509, %v514, %v513
        %vm516 = vcmp.lt.s32.totalorder %v436, 0
        %v517 = vsub.s32 0, %v436
        %v518 = vsel %vm516, %v517, %v436
        %v519 = vshrl.u32 %v518, 4
        %v520 = vand.u32 %v518, 15
        %v521 = vsub.s32 0, %v520
        %v522 = vsel %vm516, %v521, %v520
        %vm523 = vcmp.lt.s32.totalorder %v437, 0
        %v524 = vsub.s32 0, %v437
        %v525 = vsel %vm523, %v524, %v437
        %v526 = vshrl.u32 %v525, 4
        %v527 = vand.u32 %v525, 15
        %v528 = vsub.s32 0, %v527
        %v529 = vsel %vm523, %v528, %v527
        %vm530 = vcmp.lt.s32.totalorder %v438, 0
        %v531 = vsub.s32 0, %v438
        %v532 = vsel %vm530, %v531, %v438
        %v533 = vshrl.u32 %v532, 4
        %v534 = vand.u32 %v532, 15
        %v535 = vsub.s32 0, %v534
        %v536 = vsel %vm530, %v535, %v534
        %vm537 = vcmp.lt.s32.totalorder %v439, 0
        %v538 = vsub.s32 0, %v439
        %v539 = vsel %vm537, %v538, %v439
        %v540 = vshrl.u32 %v539, 4
        %v541 = vand.u32 %v539, 15
        %v542 = vsub.s32 0, %v541
        %v543 = vsel %vm537, %v542, %v541
        %vm544 = vcmp.lt.s32.totalorder %v440, 0
        %v545 = vsub.s32 0, %v440
        %v546 = vsel %vm544, %v545, %v440
        %v547 = vshrl.u32 %v546, 4
        %v548 = vand.u32 %v546, 15
        %v549 = vsub.s32 0, %v548
        %v550 = vsel %vm544, %v549, %v548
        %vm551 = vcmp.lt.s32.totalorder %v441, 0
        %v552 = vsub.s32 0, %v441
        %v553 = vsel %vm551, %v552, %v441
        %v554 = vshrl.u32 %v553, 4
        %v555 = vand.u32 %v553, 15
        %v556 = vsub.s32 0, %v555
        %v557 = vsel %vm551, %v556, %v555
        %vm558 = vcmp.lt.s32.totalorder %v442, 0
        %v559 = vsub.s32 0, %v442
        %v560 = vsel %vm558, %v559, %v442
        %v561 = vshrl.u32 %v560, 4
        %v562 = vand.u32 %v560, 15
        %v563 = vsub.s32 0, %v562
        %v564 = vsel %vm558, %v563, %v562
        %vm565 = vcmp.lt.s32.totalorder %v443, 0
        %v566 = vsub.s32 0, %v443
        %v567 = vsel %vm565, %v566, %v443
        %v568 = vshrl.u32 %v567, 4
        %v569 = vand.u32 %v567, 15
        %v570 = vsub.s32 0, %v569
        %v571 = vsel %vm565, %v570, %v569
        %vm572 = vcmp.lt.s32.totalorder %v444, 0
        %v573 = vsub.s32 0, %v444
        %v574 = vsel %vm572, %v573, %v444
        %v575 = vshrl.u32 %v574, 4
        %v576 = vand.u32 %v574, 15
        %v577 = vsub.s32 0, %v576
        %v578 = vsel %vm572, %v577, %v576
        %vm579 = vcmp.lt.s32.totalorder %v445, 0
        %v580 = vsub.s32 0, %v445
        %v581 = vsel %vm579, %v580, %v445
        %v582 = vshrl.u32 %v581, 4
        %v583 = vand.u32 %v581, 15
        %v584 = vsub.s32 0, %v583
        %v585 = vsel %vm579, %v584, %v583
        %vm586 = vcmp.ne.s32.totalorder %v452, 0
        %vm587 = vcmp.ne.s32.totalorder %v459, 0
        %vm588 = vcmp.ne.s32.totalorder %v466, 0
        %vm589 = vcmp.ne.s32.totalorder %v473, 0
        %vm590 = vcmp.ne.s32.totalorder %v480, 0
        %vm591 = vcmp.ne.s32.totalorder %v487, 0
        %vm592 = vcmp.ne.s32.totalorder %v494, 0
        %vm593 = vcmp.ne.s32.totalorder %v501, 0
        %vm594 = vcmp.ne.s32.totalorder %v508, 0
        %vm595 = vcmp.ne.s32.totalorder %v515, 0
        %vm596 = vcmp.ne.s32.totalorder %v522, 0
        %vm597 = vcmp.ne.s32.totalorder %v529, 0
        %vm598 = vcmp.ne.s32.totalorder %v536, 0
        %vm599 = vcmp.ne.s32.totalorder %v543, 0
        %vm600 = vcmp.ne.s32.totalorder %v550, 0
        %vm601 = vcmp.ne.s32.totalorder %v557, 0
        %vm602 = vcmp.ne.s32.totalorder %v564, 0
        %vm603 = vcmp.ne.s32.totalorder %v571, 0
        %vm604 = vcmp.ne.s32.totalorder %v578, 0
        %vm605 = vcmp.ne.s32.totalorder %v585, 0
        %vm606 = vcmp.lt.s32.totalorder %v452, 0
        %vm607 = vcmp.lt.s32.totalorder %v459, 0
        %vm608 = vcmp.lt.s32.totalorder %v466, 0
        %vm609 = vcmp.lt.s32.totalorder %v473, 0
        %vm610 = vcmp.lt.s32.totalorder %v480, 0
        %vm611 = vcmp.lt.s32.totalorder %v487, 0
        %vm612 = vcmp.lt.s32.totalorder %v494, 0
        %vm613 = vcmp.lt.s32.totalorder %v501, 0
        %vm614 = vcmp.lt.s32.totalorder %v508, 0
        %vm615 = vcmp.lt.s32.totalorder %v515, 0
        %vm616 = vcmp.lt.s32.totalorder %v522, 0
        %vm617 = vcmp.lt.s32.totalorder %v529, 0
        %vm618 = vcmp.lt.s32.totalorder %v536, 0
        %vm619 = vcmp.lt.s32.totalorder %v543, 0
        %vm620 = vcmp.lt.s32.totalorder %v550, 0
        %vm621 = vcmp.lt.s32.totalorder %v557, 0
        %vm622 = vcmp.lt.s32.totalorder %v564, 0
        %vm623 = vcmp.lt.s32.totalorder %v571, 0
        %vm624 = vcmp.lt.s32.totalorder %v578, 0
        %vm625 = vcmp.lt.s32.totalorder %v585, 0
        %vm626 = vmand %vm606, %vm586
        %vm627 = vmand %vm607, %vm587
        %vm628 = vmand %vm608, %vm588
        %vm629 = vmand %vm609, %vm589
        %vm630 = vmand %vm610, %vm590
        %vm631 = vmand %vm611, %vm591
        %vm632 = vmand %vm612, %vm592
        %vm633 = vmand %vm613, %vm593
        %vm634 = vmand %vm614, %vm594
        %vm635 = vmand %vm615, %vm595
        %vm636 = vmand %vm616, %vm596
        %vm637 = vmand %vm617, %vm597
        %vm638 = vmand %vm618, %vm598
        %vm639 = vmand %vm619, %vm599
        %vm640 = vmand %vm620, %vm600
        %vm641 = vmand %vm621, %vm601
        %vm642 = vmand %vm622, %vm602
        %vm643 = vmand %vm623, %vm603
        %vm644 = vmand %vm624, %vm604
        %vm645 = vmand %vm625, %vm605
        %v646 = vadd.s32 %v452, 16
        %v647 = vadd.s32 %v459, 16
        %v648 = vadd.s32 %v466, 16
        %v649 = vadd.s32 %v473, 16
        %v650 = vadd.s32 %v480, 16
        %v651 = vadd.s32 %v487, 16
        %v652 = vadd.s32 %v494, 16
        %v653 = vadd.s32 %v501, 16
        %v654 = vadd.s32 %v508, 16
        %v655 = vadd.s32 %v515, 16
        %v656 = vadd.s32 %v522, 16
        %v657 = vadd.s32 %v529, 16
        %v658 = vadd.s32 %v536, 16
        %v659 = vadd.s32 %v543, 16
        %v660 = vadd.s32 %v550, 16
        %v661 = vadd.s32 %v557, 16
        %v662 = vadd.s32 %v564, 16
        %v663 = vadd.s32 %v571, 16
        %v664 = vadd.s32 %v578, 16
        %v665 = vadd.s32 %v585, 16
        %v666 = vsel %vm626, %v646, %v452
        %v667 = vsel %vm627, %v647, %v459
        %v668 = vsel %vm628, %v648, %v466
        %v669 = vsel %vm629, %v649, %v473
        %v670 = vsel %vm630, %v650, %v480
        %v671 = vsel %vm631, %v651, %v487
        %v672 = vsel %vm632, %v652, %v494
        %v673 = vsel %vm633, %v653, %v501
        %v674 = vsel %vm634, %v654, %v508
        %v675 = vsel %vm635, %v655, %v515
        %v676 = vsel %vm636, %v656, %v522
        %v677 = vsel %vm637, %v657, %v529
        %v678 = vsel %vm638, %v658, %v536
        %v679 = vsel %vm639, %v659, %v543
        %v680 = vsel %vm640, %v660, %v550
        %v681 = vsel %vm641, %v661, %v557
        %v682 = vsel %vm642, %v662, %v564
        %v683 = vsel %vm643, %v663, %v571
        %v684 = vsel %vm644, %v664, %v578
        %v685 = vsel %vm645, %v665, %v585
        %vm686 = vcmp.ge.s32.totalorder %v666, 1
        %vm687 = vcmp.ge.s32.totalorder %v667, 1
        %vm688 = vcmp.ge.s32.totalorder %v668, 1
        %vm689 = vcmp.ge.s32.totalorder %v669, 1
        %vm690 = vcmp.ge.s32.totalorder %v670, 1
        %vm691 = vcmp.ge.s32.totalorder %v671, 1
        %vm692 = vcmp.ge.s32.totalorder %v672, 1
        %vm693 = vcmp.ge.s32.totalorder %v673, 1
        %vm694 = vcmp.ge.s32.totalorder %v674, 1
        %vm695 = vcmp.ge.s32.totalorder %v675, 1
        %vm696 = vcmp.ge.s32.totalorder %v676, 1
        %vm697 = vcmp.ge.s32.totalorder %v677, 1
        %vm698 = vcmp.ge.s32.totalorder %v678, 1
        %vm699 = vcmp.ge.s32.totalorder %v679, 1
        %vm700 = vcmp.ge.s32.totalorder %v680, 1
        %vm701 = vcmp.ge.s32.totalorder %v681, 1
        %vm702 = vcmp.ge.s32.totalorder %v682, 1
        %vm703 = vcmp.ge.s32.totalorder %v683, 1
        %vm704 = vcmp.ge.s32.totalorder %v684, 1
        %vm705 = vcmp.ge.s32.totalorder %v685, 1
        %v706 = vrot.slane %v405, 7
        %v707 = vrot.slane %v406, 7
        %v708 = vrot.slane %v407, 7
        %v709 = vrot.slane %v408, 7
        %v710 = vrot.slane %v409, 7
        %v711 = vrot.slane %v410, 7
        %v712 = vrot.slane %v411, 7
        %v713 = vrot.slane %v412, 7
        %v714 = vrot.slane %v413, 7
        %v715 = vrot.slane %v414, 7
        %v716 = vrot.slane %v415, 7
        %v717 = vrot.slane %v416, 7
        %v718 = vrot.slane %v417, 7
        %v719 = vrot.slane %v418, 7
        %v720 = vrot.slane %v419, 7
        %v721 = vrot.slane %v420, 7
        %v722 = vrot.slane %v421, 7
        %v723 = vrot.slane %v422, 7
        %v724 = vrot.slane %v423, 7
        %v725 = vrot.slane %v424, 7
        %vm726 = vcmp.lt.s32.totalorder %v426, 1
        %v727 = vsel %vm726, %v724, %v725
        %v728 = vsel %vm726, %v723, %v724
        %v729 = vsel %vm726, %v722, %v723
        %v730 = vsel %vm726, %v721, %v722
        %v731 = vsel %vm726, %v720, %v721
        %v732 = vsel %vm726, %v719, %v720
        %v733 = vsel %vm726, %v718, %v719
        %v734 = vsel %vm726, %v717, %v718
        %v735 = vsel %vm726, %v716, %v717
        %v736 = vsel %vm726, %v715, %v716
        %v737 = vsel %vm726, %v714, %v715
        %v738 = vsel %vm726, %v713, %v714
        %v739 = vsel %vm726, %v712, %v713
        %v740 = vsel %vm726, %v711, %v712
        %v741 = vsel %vm726, %v710, %v711
        %v742 = vsel %vm726, %v709, %v710
        %v743 = vsel %vm726, %v708, %v709
        %v744 = vsel %vm726, %v707, %v708
        %v745 = vsel %vm726, %v706, %v707
        %v746 = vsel %vm726, %v725, %v706
        %v747 = vsel %vm686, 1, 0
        %v748 = vsel %vm687, 1, 0
        %v749 = vsel %vm688, 1, 0
        %v750 = vsel %vm689, 1, 0
        %v751 = vsel %vm690, 1, 0
        %v752 = vsel %vm691, 1, 0
        %v753 = vsel %vm692, 1, 0
        %v754 = vsel %vm693, 1, 0
        %v755 = vsel %vm694, 1, 0
        %v756 = vsel %vm695, 1, 0
        %v757 = vsel %vm696, 1, 0
        %v758 = vsel %vm697, 1, 0
        %v759 = vsel %vm698, 1, 0
        %v760 = vsel %vm699, 1, 0
        %v761 = vsel %vm700, 1, 0
        %v762 = vsel %vm701, 1, 0
        %v763 = vsel %vm702, 1, 0
        %v764 = vsel %vm703, 1, 0
        %v765 = vsel %vm704, 1, 0
        %v766 = vsel %vm705, 1, 0
        %vm767 = vcmp.eq.s32.totalorder %v747, 1
        %vm768 = vcmp.eq.s32.totalorder %v748, 1
        %vm769 = vcmp.eq.s32.totalorder %v749, 1
        %vm770 = vcmp.eq.s32.totalorder %v750, 1
        %vm771 = vcmp.eq.s32.totalorder %v751, 1
        %vm772 = vcmp.eq.s32.totalorder %v752, 1
        %vm773 = vcmp.eq.s32.totalorder %v753, 1
        %vm774 = vcmp.eq.s32.totalorder %v754, 1
        %vm775 = vcmp.eq.s32.totalorder %v755, 1
        %vm776 = vcmp.eq.s32.totalorder %v756, 1
        %vm777 = vcmp.eq.s32.totalorder %v757, 1
        %vm778 = vcmp.eq.s32.totalorder %v758, 1
        %vm779 = vcmp.eq.s32.totalorder %v759, 1
        %vm780 = vcmp.eq.s32.totalorder %v760, 1
        %vm781 = vcmp.eq.s32.totalorder %v761, 1
        %vm782 = vcmp.eq.s32.totalorder %v762, 1
        %vm783 = vcmp.eq.s32.totalorder %v763, 1
        %vm784 = vcmp.eq.s32.totalorder %v764, 1
        %vm785 = vcmp.eq.s32.totalorder %v765, 1
        %vm786 = vcmp.eq.s32.totalorder %v766, 1
        %v787 = vsel %vm767, %v746, 0.0
        %v788 = vsel %vm768, %v745, 0.0
        %v789 = vsel %vm769, %v744, 0.0
        %v790 = vsel %vm770, %v743, 0.0
        %v791 = vsel %vm771, %v742, 0.0
        %v792 = vsel %vm772, %v741, 0.0
        %v793 = vsel %vm773, %v740, 0.0
        %v794 = vsel %vm774, %v739, 0.0
        %v795 = vsel %vm775, %v738, 0.0
        %v796 = vsel %vm776, %v737, 0.0
        %v797 = vsel %vm777, %v736, 0.0
        %v798 = vsel %vm778, %v735, 0.0
        %v799 = vsel %vm779, %v734, 0.0
        %v800 = vsel %vm780, %v733, 0.0
        %v801 = vsel %vm781, %v732, 0.0
        %v802 = vsel %vm782, %v731, 0.0
        %v803 = vsel %vm783, %v730, 0.0
        %v804 = vsel %vm784, %v729, 0.0
        %v805 = vsel %vm785, %v728, 0.0
        %v806 = vsel %vm786, %v727, 0.0
        %vm807 = vcmp.le.s32.totalorder %v666, 14
        %vm808 = vcmp.le.s32.totalorder %v667, 14
        %vm809 = vcmp.le.s32.totalorder %v668, 14
        %vm810 = vcmp.le.s32.totalorder %v669, 14
        %vm811 = vcmp.le.s32.totalorder %v670, 14
        %vm812 = vcmp.le.s32.totalorder %v671, 14
        %vm813 = vcmp.le.s32.totalorder %v672, 14
        %vm814 = vcmp.le.s32.totalorder %v673, 14
        %vm815 = vcmp.le.s32.totalorder %v674, 14
        %vm816 = vcmp.le.s32.totalorder %v675, 14
        %vm817 = vcmp.le.s32.totalorder %v676, 14
        %vm818 = vcmp.le.s32.totalorder %v677, 14
        %vm819 = vcmp.le.s32.totalorder %v678, 14
        %vm820 = vcmp.le.s32.totalorder %v679, 14
        %vm821 = vcmp.le.s32.totalorder %v680, 14
        %vm822 = vcmp.le.s32.totalorder %v681, 14
        %vm823 = vcmp.le.s32.totalorder %v682, 14
        %vm824 = vcmp.le.s32.totalorder %v683, 14
        %vm825 = vcmp.le.s32.totalorder %v684, 14
        %vm826 = vcmp.le.s32.totalorder %v685, 14
        %v827 = vrot.slane %v405, 1
        %v828 = vrot.slane %v406, 1
        %v829 = vrot.slane %v407, 1
        %v830 = vrot.slane %v408, 1
        %v831 = vrot.slane %v409, 1
        %v832 = vrot.slane %v410, 1
        %v833 = vrot.slane %v411, 1
        %v834 = vrot.slane %v412, 1
        %v835 = vrot.slane %v413, 1
        %v836 = vrot.slane %v414, 1
        %v837 = vrot.slane %v415, 1
        %v838 = vrot.slane %v416, 1
        %v839 = vrot.slane %v417, 1
        %v840 = vrot.slane %v418, 1
        %v841 = vrot.slane %v419, 1
        %v842 = vrot.slane %v420, 1
        %v843 = vrot.slane %v421, 1
        %v844 = vrot.slane %v422, 1
        %v845 = vrot.slane %v423, 1
        %v846 = vrot.slane %v424, 1
        %vm847 = vcmp.lt.s32.totalorder %v426, 7
        %v848 = vsel %vm847, %v845, %v846
        %v849 = vsel %vm847, %v844, %v845
        %v850 = vsel %vm847, %v843, %v844
        %v851 = vsel %vm847, %v842, %v843
        %v852 = vsel %vm847, %v841, %v842
        %v853 = vsel %vm847, %v840, %v841
        %v854 = vsel %vm847, %v839, %v840
        %v855 = vsel %vm847, %v838, %v839
        %v856 = vsel %vm847, %v837, %v838
        %v857 = vsel %vm847, %v836, %v837
        %v858 = vsel %vm847, %v835, %v836
        %v859 = vsel %vm847, %v834, %v835
        %v860 = vsel %vm847, %v833, %v834
        %v861 = vsel %vm847, %v832, %v833
        %v862 = vsel %vm847, %v831, %v832
        %v863 = vsel %vm847, %v830, %v831
        %v864 = vsel %vm847, %v829, %v830
        %v865 = vsel %vm847, %v828, %v829
        %v866 = vsel %vm847, %v827, %v828
        %v867 = vsel %vm847, %v846, %v827
        %v868 = vsel %vm807, 1, 0
        %v869 = vsel %vm808, 1, 0
        %v870 = vsel %vm809, 1, 0
        %v871 = vsel %vm810, 1, 0
        %v872 = vsel %vm811, 1, 0
        %v873 = vsel %vm812, 1, 0
        %v874 = vsel %vm813, 1, 0
        %v875 = vsel %vm814, 1, 0
        %v876 = vsel %vm815, 1, 0
        %v877 = vsel %vm816, 1, 0
        %v878 = vsel %vm817, 1, 0
        %v879 = vsel %vm818, 1, 0
        %v880 = vsel %vm819, 1, 0
        %v881 = vsel %vm820, 1, 0
        %v882 = vsel %vm821, 1, 0
        %v883 = vsel %vm822, 1, 0
        %v884 = vsel %vm823, 1, 0
        %v885 = vsel %vm824, 1, 0
        %v886 = vsel %vm825, 1, 0
        %v887 = vsel %vm826, 1, 0
        %vm888 = vcmp.eq.s32.totalorder %v868, 1
        %vm889 = vcmp.eq.s32.totalorder %v869, 1
        %vm890 = vcmp.eq.s32.totalorder %v870, 1
        %vm891 = vcmp.eq.s32.totalorder %v871, 1
        %vm892 = vcmp.eq.s32.totalorder %v872, 1
        %vm893 = vcmp.eq.s32.totalorder %v873, 1
        %vm894 = vcmp.eq.s32.totalorder %v874, 1
        %vm895 = vcmp.eq.s32.totalorder %v875, 1
        %vm896 = vcmp.eq.s32.totalorder %v876, 1
        %vm897 = vcmp.eq.s32.totalorder %v877, 1
        %vm898 = vcmp.eq.s32.totalorder %v878, 1
        %vm899 = vcmp.eq.s32.totalorder %v879, 1
        %vm900 = vcmp.eq.s32.totalorder %v880, 1
        %vm901 = vcmp.eq.s32.totalorder %v881, 1
        %vm902 = vcmp.eq.s32.totalorder %v882, 1
        %vm903 = vcmp.eq.s32.totalorder %v883, 1
        %vm904 = vcmp.eq.s32.totalorder %v884, 1
        %vm905 = vcmp.eq.s32.totalorder %v885, 1
        %vm906 = vcmp.eq.s32.totalorder %v886, 1
        %vm907 = vcmp.eq.s32.totalorder %v887, 1
        %v908 = vsel %vm888, %v866, 0.0
        %v909 = vsel %vm889, %v865, 0.0
        %v910 = vsel %vm890, %v864, 0.0
        %v911 = vsel %vm891, %v863, 0.0
        %v912 = vsel %vm892, %v862, 0.0
        %v913 = vsel %vm893, %v861, 0.0
        %v914 = vsel %vm894, %v860, 0.0
        %v915 = vsel %vm895, %v859, 0.0
        %v916 = vsel %vm896, %v858, 0.0
        %v917 = vsel %vm897, %v857, 0.0
        %v918 = vsel %vm898, %v856, 0.0
        %v919 = vsel %vm899, %v855, 0.0
        %v920 = vsel %vm900, %v854, 0.0
        %v921 = vsel %vm901, %v853, 0.0
        %v922 = vsel %vm902, %v852, 0.0
        %v923 = vsel %vm903, %v851, 0.0
        %v924 = vsel %vm904, %v850, 0.0
        %v925 = vsel %vm905, %v849, 0.0
        %v926 = vsel %vm906, %v848, 0.0
        %v927 = vsel %vm907, %v867, 0.0
        %v928 = vpack.c.bf16 %v787, %v787
        %v929 = vpack.c.bf16 %v788, %v788
        %v930 = vpack.c.bf16 %v789, %v789
        %v931 = vpack.c.bf16 %v790, %v790
        %v932 = vpack.c.bf16 %v791, %v791
        %v933 = vpack.c.bf16 %v792, %v792
        %v934 = vpack.c.bf16 %v793, %v793
        %v935 = vpack.c.bf16 %v794, %v794
        %v936 = vpack.c.bf16 %v795, %v795
        %v937 = vpack.c.bf16 %v796, %v796
        %v938 = vpack.c.bf16 %v797, %v797
        %v939 = vpack.c.bf16 %v798, %v798
        %v940 = vpack.c.bf16 %v799, %v799
        %v941 = vpack.c.bf16 %v800, %v800
        %v942 = vpack.c.bf16 %v801, %v801
        %v943 = vpack.c.bf16 %v802, %v802
        %v944 = vpack.c.bf16 %v803, %v803
        %v945 = vpack.c.bf16 %v804, %v804
        %v946 = vpack.c.bf16 %v805, %v805
        %v947 = vpack.c.bf16 %v806, %v806
        %v948 = vpack.c.bf16 %v405, %v405
        %v949 = vpack.c.bf16 %v406, %v406
        %v950 = vpack.c.bf16 %v407, %v407
        %v951 = vpack.c.bf16 %v408, %v408
        %v952 = vpack.c.bf16 %v409, %v409
        %v953 = vpack.c.bf16 %v410, %v410
        %v954 = vpack.c.bf16 %v411, %v411
        %v955 = vpack.c.bf16 %v412, %v412
        %v956 = vpack.c.bf16 %v413, %v413
        %v957 = vpack.c.bf16 %v414, %v414
        %v958 = vpack.c.bf16 %v415, %v415
        %v959 = vpack.c.bf16 %v416, %v416
        %v960 = vpack.c.bf16 %v417, %v417
        %v961 = vpack.c.bf16 %v418, %v418
        %v962 = vpack.c.bf16 %v419, %v419
        %v963 = vpack.c.bf16 %v420, %v420
        %v964 = vpack.c.bf16 %v421, %v421
        %v965 = vpack.c.bf16 %v422, %v422
        %v966 = vpack.c.bf16 %v423, %v423
        %v967 = vpack.c.bf16 %v424, %v424
        %v968 = vpack.c.bf16 %v908, %v908
        %v969 = vpack.c.bf16 %v909, %v909
        %v970 = vpack.c.bf16 %v910, %v910
        %v971 = vpack.c.bf16 %v911, %v911
        %v972 = vpack.c.bf16 %v912, %v912
        %v973 = vpack.c.bf16 %v913, %v913
        %v974 = vpack.c.bf16 %v914, %v914
        %v975 = vpack.c.bf16 %v915, %v915
        %v976 = vpack.c.bf16 %v916, %v916
        %v977 = vpack.c.bf16 %v917, %v917
        %v978 = vpack.c.bf16 %v918, %v918
        %v979 = vpack.c.bf16 %v919, %v919
        %v980 = vpack.c.bf16 %v920, %v920
        %v981 = vpack.c.bf16 %v921, %v921
        %v982 = vpack.c.bf16 %v922, %v922
        %v983 = vpack.c.bf16 %v923, %v923
        %v984 = vpack.c.bf16 %v924, %v924
        %v985 = vpack.c.bf16 %v925, %v925
        %v986 = vpack.c.bf16 %v926, %v926
        %v987 = vpack.c.bf16 %v927, %v927
        %v988 = vld [vmem:[%s5] sm:$0xf]
        %v989 = vld [vmem:[%s5 + $0x4] sm:$0xf]
        %v990 = vld [vmem:[%s5 + $0x8] sm:$0xf]
        %v991 = vld [vmem:[%s5 + $0xc] sm:$0xf]
        %v992 = vld [vmem:[%s5 + $0x10] sm:$0xf]
        %v993 = vld [vmem:[%s5 + $0x14] sm:$0xf]
        %v994 = vld [vmem:[%s5 + $0x18] sm:$0xf]
        %v995 = vld [vmem:[%s5 + $0x1c] sm:$0xf]
        %v996 = vld [vmem:[%s5 + $0x20] sm:$0xf]
        %v997 = vld [vmem:[%s5 + $0x24] sm:$0xf]
        %v998 = vld [vmem:[%s5 + $0x28] sm:$0xf]
        %v999 = vld [vmem:[%s5 + $0x2c] sm:$0xf]
        %v1000 = vld [vmem:[%s5 + $0x30] sm:$0xf]
        %v1001 = vld [vmem:[%s5 + $0x34] sm:$0xf]
        %v1002 = vld [vmem:[%s5 + $0x38] sm:$0xf]
        %v1003 = vld [vmem:[%s5 + $0x3c] sm:$0xf]
        %v1020 = vunpack.c.l.b16 %v928
        %v1021 = vunpack.c.l.b16 %v929
        %v1022 = vunpack.c.l.b16 %v930
        %v1023 = vunpack.c.l.b16 %v931
        %v1024 = vunpack.c.l.b16 %v932
        %v1025 = vunpack.c.l.b16 %v933
        %v1026 = vunpack.c.l.b16 %v934
        %v1027 = vunpack.c.l.b16 %v935
        %v1028 = vunpack.c.l.b16 %v936
        %v1029 = vunpack.c.l.b16 %v937
        %v1030 = vunpack.c.l.b16 %v938
        %v1031 = vunpack.c.l.b16 %v939
        %v1032 = vunpack.c.l.b16 %v940
        %v1033 = vunpack.c.l.b16 %v941
        %v1034 = vunpack.c.l.b16 %v942
        %v1035 = vunpack.c.l.b16 %v943
        %v1036 = vpack.c.b16 %v1021, %v1020
        %v1037 = vpack.c.b16 %v1023, %v1022
        %v1038 = vpack.c.b16 %v1025, %v1024
        %v1039 = vpack.c.b16 %v1027, %v1026
        %v1040 = vpack.c.b16 %v1029, %v1028
        %v1041 = vpack.c.b16 %v1031, %v1030
        %v1042 = vpack.c.b16 %v1033, %v1032
        %v1043 = vpack.c.b16 %v1035, %v1034
        %v1068 = vunpack.c.l.b16 %v988
        %v1069 = vunpack.c.l.b16 %v989
        %v1070 = vunpack.c.l.b16 %v990
        %v1071 = vunpack.c.l.b16 %v991
        %v1072 = vunpack.c.l.b16 %v992
        %v1073 = vunpack.c.l.b16 %v993
        %v1074 = vunpack.c.l.b16 %v994
        %v1075 = vunpack.c.l.b16 %v995
        %v1076 = vunpack.c.l.b16 %v996
        %v1077 = vunpack.c.l.b16 %v997
        %v1078 = vunpack.c.l.b16 %v998
        %v1079 = vunpack.c.l.b16 %v999
        %v1080 = vunpack.c.l.b16 %v1000
        %v1081 = vunpack.c.l.b16 %v1001
        %v1082 = vunpack.c.l.b16 %v1002
        %v1083 = vunpack.c.l.b16 %v1003
        %v1084 = vpack.c.b16 %v1069, %v1068
        %v1085 = vpack.c.b16 %v1071, %v1070
        %v1086 = vpack.c.b16 %v1073, %v1072
        %v1087 = vpack.c.b16 %v1075, %v1074
        %v1088 = vpack.c.b16 %v1077, %v1076
        %v1089 = vpack.c.b16 %v1079, %v1078
        %v1090 = vpack.c.b16 %v1081, %v1080
        %v1091 = vpack.c.b16 %v1083, %v1082
        %1100 = vmatpush.bf16.msra.mxu0 %v1091
        %1101 = vmatpush.bf16.msra.mxu0 %v1090
        %1102 = vmatpush.bf16.msra.mxu0 %v1089
        %1103 = vmatpush.bf16.msra.mxu0 %v1088
        %1104 = vmatpush.bf16.msra.mxu0 %v1087
        %1105 = vmatpush.bf16.msra.mxu0 %v1086
        %1106 = vmatpush.bf16.msra.mxu0 %v1085
        %1107 = vmatpush.bf16.msra.mxu0 %v1084
        %1108 = vmatmul.bf16.gmra.mxu0 %v1036
        %v1109 = vpop.f32.mrf.mxu0
        %v1110 = vadd.f32 0.0, %v1109
        %v1111 = vpop.f32.mrf.mxu0
        %v1112 = vadd.f32 0.0, %v1111
        %1113 = vmatmul.bf16.gmra.mxu0 %v1037
        %v1114 = vpop.f32.mrf.mxu0
        %v1115 = vadd.f32 0.0, %v1114
        %v1116 = vpop.f32.mrf.mxu0
        %v1117 = vadd.f32 0.0, %v1116
        %1118 = vmatmul.bf16.gmra.mxu0 %v1038
        %v1119 = vpop.f32.mrf.mxu0
        %v1120 = vadd.f32 0.0, %v1119
        %v1121 = vpop.f32.mrf.mxu0
        %v1122 = vadd.f32 0.0, %v1121
        %1123 = vmatmul.bf16.gmra.mxu0 %v1039
        %v1124 = vpop.f32.mrf.mxu0
        %v1125 = vadd.f32 0.0, %v1124
        %v1126 = vpop.f32.mrf.mxu0
        %v1127 = vadd.f32 0.0, %v1126
        %1128 = vmatmul.bf16.gmra.mxu0 %v1040
        %v1129 = vpop.f32.mrf.mxu0
        %v1130 = vadd.f32 0.0, %v1129
        %v1131 = vpop.f32.mrf.mxu0
        %v1132 = vadd.f32 0.0, %v1131
        %1133 = vmatmul.bf16.gmra.mxu0 %v1041
        %v1134 = vpop.f32.mrf.mxu0
        %v1135 = vadd.f32 0.0, %v1134
        %v1136 = vpop.f32.mrf.mxu0
        %v1137 = vadd.f32 0.0, %v1136
        %1138 = vmatmul.bf16.gmra.mxu0 %v1042
        %v1139 = vpop.f32.mrf.mxu0
        %v1140 = vadd.f32 0.0, %v1139
        %v1141 = vpop.f32.mrf.mxu0
        %v1142 = vadd.f32 0.0, %v1141
        %1143 = vmatmul.bf16.gmra.mxu0 %v1043
        %v1144 = vpop.f32.mrf.mxu0
        %v1145 = vadd.f32 0.0, %v1144
        %v1146 = vpop.f32.mrf.mxu0
        %v1147 = vadd.f32 0.0, %v1146
        %1148 = vdwg.mxu0
        %1149 = vst [vmem:[#allocation2] sm:$0xff] %v1110
        %1150 = vst [vmem:[#allocation2 + $0x8] sm:$0xff] %v1112
        %1151 = vst [vmem:[#allocation2 + $0x10] sm:$0xff] %v1115
        %1152 = vst [vmem:[#allocation2 + $0x18] sm:$0xff] %v1117
        %1153 = vst [vmem:[#allocation2 + $0x20] sm:$0xff] %v1120
        %1154 = vst [vmem:[#allocation2 + $0x28] sm:$0xff] %v1122
        %1155 = vst [vmem:[#allocation2 + $0x30] sm:$0xff] %v1125
        %1156 = vst [vmem:[#allocation2 + $0x38] sm:$0xff] %v1127
        %1157 = vst [vmem:[#allocation2 + $0x40] sm:$0xff] %v1130
        %1158 = vst [vmem:[#allocation2 + $0x48] sm:$0xff] %v1132
        %1159 = vst [vmem:[#allocation2 + $0x50] sm:$0xff] %v1135
        %1160 = vst [vmem:[#allocation2 + $0x58] sm:$0xff] %v1137
        %1161 = vst [vmem:[#allocation2 + $0x60] sm:$0xff] %v1140
        %1162 = vst [vmem:[#allocation2 + $0x68] sm:$0xff] %v1142
        %1163 = vst [vmem:[#allocation2 + $0x70] sm:$0xff] %v1145
        %1164 = vst [vmem:[#allocation2 + $0x78] sm:$0xff] %v1147
        %s1165 = scalar_lea.vmem %s5, 64
        %v1166 = vld [vmem:[%s1165] sm:$0xf]
        %v1167 = vld [vmem:[%s1165 + $0x4] sm:$0xf]
        %v1168 = vld [vmem:[%s1165 + $0x8] sm:$0xf]
        %v1169 = vld [vmem:[%s1165 + $0xc] sm:$0xf]
        %v1170 = vld [vmem:[%s1165 + $0x10] sm:$0xf]
        %v1171 = vld [vmem:[%s1165 + $0x14] sm:$0xf]
        %v1172 = vld [vmem:[%s1165 + $0x18] sm:$0xf]
        %v1173 = vld [vmem:[%s1165 + $0x1c] sm:$0xf]
        %v1174 = vld [vmem:[%s1165 + $0x20] sm:$0xf]
        %v1175 = vld [vmem:[%s1165 + $0x24] sm:$0xf]
        %v1176 = vld [vmem:[%s1165 + $0x28] sm:$0xf]
        %v1177 = vld [vmem:[%s1165 + $0x2c] sm:$0xf]
        %v1178 = vld [vmem:[%s1165 + $0x30] sm:$0xf]
        %v1179 = vld [vmem:[%s1165 + $0x34] sm:$0xf]
        %v1180 = vld [vmem:[%s1165 + $0x38] sm:$0xf]
        %v1181 = vld [vmem:[%s1165 + $0x3c] sm:$0xf]
        %v1198 = vunpack.c.l.b16 %v948
        %v1199 = vunpack.c.l.b16 %v949
        %v1200 = vunpack.c.l.b16 %v950
        %v1201 = vunpack.c.l.b16 %v951
        %v1202 = vunpack.c.l.b16 %v952
        %v1203 = vunpack.c.l.b16 %v953
        %v1204 = vunpack.c.l.b16 %v954
        %v1205 = vunpack.c.l.b16 %v955
        %v1206 = vunpack.c.l.b16 %v956
        %v1207 = vunpack.c.l.b16 %v957
        %v1208 = vunpack.c.l.b16 %v958
        %v1209 = vunpack.c.l.b16 %v959
        %v1210 = vunpack.c.l.b16 %v960
        %v1211 = vunpack.c.l.b16 %v961
        %v1212 = vunpack.c.l.b16 %v962
        %v1213 = vunpack.c.l.b16 %v963
        %v1214 = vpack.c.b16 %v1199, %v1198
        %v1215 = vpack.c.b16 %v1201, %v1200
        %v1216 = vpack.c.b16 %v1203, %v1202
        %v1217 = vpack.c.b16 %v1205, %v1204
        %v1218 = vpack.c.b16 %v1207, %v1206
        %v1219 = vpack.c.b16 %v1209, %v1208
        %v1220 = vpack.c.b16 %v1211, %v1210
        %v1221 = vpack.c.b16 %v1213, %v1212
        %v1246 = vunpack.c.l.b16 %v1166
        %v1247 = vunpack.c.l.b16 %v1167
        %v1248 = vunpack.c.l.b16 %v1168
        %v1249 = vunpack.c.l.b16 %v1169
        %v1250 = vunpack.c.l.b16 %v1170
        %v1251 = vunpack.c.l.b16 %v1171
        %v1252 = vunpack.c.l.b16 %v1172
        %v1253 = vunpack.c.l.b16 %v1173
        %v1254 = vunpack.c.l.b16 %v1174
        %v1255 = vunpack.c.l.b16 %v1175
        %v1256 = vunpack.c.l.b16 %v1176
        %v1257 = vunpack.c.l.b16 %v1177
        %v1258 = vunpack.c.l.b16 %v1178
        %v1259 = vunpack.c.l.b16 %v1179
        %v1260 = vunpack.c.l.b16 %v1180
        %v1261 = vunpack.c.l.b16 %v1181
        %v1262 = vpack.c.b16 %v1247, %v1246
        %v1263 = vpack.c.b16 %v1249, %v1248
        %v1264 = vpack.c.b16 %v1251, %v1250
        %v1265 = vpack.c.b16 %v1253, %v1252
        %v1266 = vpack.c.b16 %v1255, %v1254
        %v1267 = vpack.c.b16 %v1257, %v1256
        %v1268 = vpack.c.b16 %v1259, %v1258
        %v1269 = vpack.c.b16 %v1261, %v1260
        %1278 = vmatpush.bf16.msra.mxu0 %v1269
        %1279 = vmatpush.bf16.msra.mxu0 %v1268
        %1280 = vmatpush.bf16.msra.mxu0 %v1267
        %1281 = vmatpush.bf16.msra.mxu0 %v1266
        %1282 = vmatpush.bf16.msra.mxu0 %v1265
        %1283 = vmatpush.bf16.msra.mxu0 %v1264
        %1284 = vmatpush.bf16.msra.mxu0 %v1263
        %1285 = vmatpush.bf16.msra.mxu0 %v1262
        %1286 = vmatmul.bf16.gmra.mxu0 %v1214
        %v1287 = vpop.f32.mrf.mxu0
        %v1288 = vadd.f32 0.0, %v1287
        %v1289 = vpop.f32.mrf.mxu0
        %v1290 = vadd.f32 0.0, %v1289
        %1291 = vmatmul.bf16.gmra.mxu0 %v1215
        %v1292 = vpop.f32.mrf.mxu0
        %v1293 = vadd.f32 0.0, %v1292
        %v1294 = vpop.f32.mrf.mxu0
        %v1295 = vadd.f32 0.0, %v1294
        %1296 = vmatmul.bf16.gmra.mxu0 %v1216
        %v1297 = vpop.f32.mrf.mxu0
        %v1298 = vadd.f32 0.0, %v1297
        %v1299 = vpop.f32.mrf.mxu0
        %v1300 = vadd.f32 0.0, %v1299
        %1301 = vmatmul.bf16.gmra.mxu0 %v1217
        %v1302 = vpop.f32.mrf.mxu0
        %v1303 = vadd.f32 0.0, %v1302
        %v1304 = vpop.f32.mrf.mxu0
        %v1305 = vadd.f32 0.0, %v1304
        %1306 = vmatmul.bf16.gmra.mxu0 %v1218
        %v1307 = vpop.f32.mrf.mxu0
        %v1308 = vadd.f32 0.0, %v1307
        %v1309 = vpop.f32.mrf.mxu0
        %v1310 = vadd.f32 0.0, %v1309
        %1311 = vmatmul.bf16.gmra.mxu0 %v1219
        %v1312 = vpop.f32.mrf.mxu0
        %v1313 = vadd.f32 0.0, %v1312
        %v1314 = vpop.f32.mrf.mxu0
        %v1315 = vadd.f32 0.0, %v1314
        %1316 = vmatmul.bf16.gmra.mxu0 %v1220
        %v1317 = vpop.f32.mrf.mxu0
        %v1318 = vadd.f32 0.0, %v1317
        %v1319 = vpop.f32.mrf.mxu0
        %v1320 = vadd.f32 0.0, %v1319
        %1321 = vmatmul.bf16.gmra.mxu0 %v1221
        %v1322 = vpop.f32.mrf.mxu0
        %v1323 = vadd.f32 0.0, %v1322
        %v1324 = vpop.f32.mrf.mxu0
        %v1325 = vadd.f32 0.0, %v1324
        %1326 = vdwg.mxu0
        %v1327 = vld [vmem:[#allocation2] sm:$0xff]
        %v1328 = vld [vmem:[#allocation2 + $0x8] sm:$0xff]
        %v1329 = vld [vmem:[#allocation2 + $0x10] sm:$0xff]
        %v1330 = vld [vmem:[#allocation2 + $0x18] sm:$0xff]
        %v1331 = vld [vmem:[#allocation2 + $0x20] sm:$0xff]
        %v1332 = vld [vmem:[#allocation2 + $0x28] sm:$0xff]
        %v1333 = vld [vmem:[#allocation2 + $0x30] sm:$0xff]
        %v1334 = vld [vmem:[#allocation2 + $0x38] sm:$0xff]
        %v1335 = vld [vmem:[#allocation2 + $0x40] sm:$0xff]
        %v1336 = vld [vmem:[#allocation2 + $0x48] sm:$0xff]
        %v1337 = vld [vmem:[#allocation2 + $0x50] sm:$0xff]
        %v1338 = vld [vmem:[#allocation2 + $0x58] sm:$0xff]
        %v1339 = vld [vmem:[#allocation2 + $0x60] sm:$0xff]
        %v1340 = vld [vmem:[#allocation2 + $0x68] sm:$0xff]
        %v1341 = vld [vmem:[#allocation2 + $0x70] sm:$0xff]
        %v1342 = vld [vmem:[#allocation2 + $0x78] sm:$0xff]
        %v1343 = vadd.f32 %v1327, %v1288
        %v1344 = vadd.f32 %v1328, %v1290
        %v1345 = vadd.f32 %v1329, %v1293
        %v1346 = vadd.f32 %v1330, %v1295
        %v1347 = vadd.f32 %v1331, %v1298
        %v1348 = vadd.f32 %v1332, %v1300
        %v1349 = vadd.f32 %v1333, %v1303
        %v1350 = vadd.f32 %v1334, %v1305
        %v1351 = vadd.f32 %v1335, %v1308
        %v1352 = vadd.f32 %v1336, %v1310
        %v1353 = vadd.f32 %v1337, %v1313
        %v1354 = vadd.f32 %v1338, %v1315
        %v1355 = vadd.f32 %v1339, %v1318
        %v1356 = vadd.f32 %v1340, %v1320
        %v1357 = vadd.f32 %v1341, %v1323
        %v1358 = vadd.f32 %v1342, %v1325
        %1359 = vst [vmem:[#allocation2] sm:$0xff] %v1343
        %1360 = vst [vmem:[#allocation2 + $0x8] sm:$0xff] %v1344
        %1361 = vst [vmem:[#allocation2 + $0x10] sm:$0xff] %v1345
        %1362 = vst [vmem:[#allocation2 + $0x18] sm:$0xff] %v1346
        %1363 = vst [vmem:[#allocation2 + $0x20] sm:$0xff] %v1347
        %1364 = vst [vmem:[#allocation2 + $0x28] sm:$0xff] %v1348
        %1365 = vst [vmem:[#allocation2 + $0x30] sm:$0xff] %v1349
        %1366 = vst [vmem:[#allocation2 + $0x38] sm:$0xff] %v1350
        %1367 = vst [vmem:[#allocation2 + $0x40] sm:$0xff] %v1351
        %1368 = vst [vmem:[#allocation2 + $0x48] sm:$0xff] %v1352
        %1369 = vst [vmem:[#allocation2 + $0x50] sm:$0xff] %v1353
        %1370 = vst [vmem:[#allocation2 + $0x58] sm:$0xff] %v1354
        %1371 = vst [vmem:[#allocation2 + $0x60] sm:$0xff] %v1355
        %1372 = vst [vmem:[#allocation2 + $0x68] sm:$0xff] %v1356
        %1373 = vst [vmem:[#allocation2 + $0x70] sm:$0xff] %v1357
        %1374 = vst [vmem:[#allocation2 + $0x78] sm:$0xff] %v1358
        %s1375 = scalar_lea.vmem %s5, 128
        %v1376 = vld [vmem:[%s1375] sm:$0xf]
        %v1377 = vld [vmem:[%s1375 + $0x4] sm:$0xf]
        %v1378 = vld [vmem:[%s1375 + $0x8] sm:$0xf]
        %v1379 = vld [vmem:[%s1375 + $0xc] sm:$0xf]
        %v1380 = vld [vmem:[%s1375 + $0x10] sm:$0xf]
        %v1381 = vld [vmem:[%s1375 + $0x14] sm:$0xf]
        %v1382 = vld [vmem:[%s1375 + $0x18] sm:$0xf]
        %v1383 = vld [vmem:[%s1375 + $0x1c] sm:$0xf]
        %v1384 = vld [vmem:[%s1375 + $0x20] sm:$0xf]
        %v1385 = vld [vmem:[%s1375 + $0x24] sm:$0xf]
        %v1386 = vld [vmem:[%s1375 + $0x28] sm:$0xf]
        %v1387 = vld [vmem:[%s1375 + $0x2c] sm:$0xf]
        %v1388 = vld [vmem:[%s1375 + $0x30] sm:$0xf]
        %v1389 = vld [vmem:[%s1375 + $0x34] sm:$0xf]
        %v1390 = vld [vmem:[%s1375 + $0x38] sm:$0xf]
        %v1391 = vld [vmem:[%s1375 + $0x3c] sm:$0xf]
        %v1408 = vunpack.c.l.b16 %v968
        %v1409 = vunpack.c.l.b16 %v969
        %v1410 = vunpack.c.l.b16 %v970
        %v1411 = vunpack.c.l.b16 %v971
        %v1412 = vunpack.c.l.b16 %v972
        %v1413 = vunpack.c.l.b16 %v973
        %v1414 = vunpack.c.l.b16 %v974
        %v1415 = vunpack.c.l.b16 %v975
        %v1416 = vunpack.c.l.b16 %v976
        %v1417 = vunpack.c.l.b16 %v977
        %v1418 = vunpack.c.l.b16 %v978
        %v1419 = vunpack.c.l.b16 %v979
        %v1420 = vunpack.c.l.b16 %v980
        %v1421 = vunpack.c.l.b16 %v981
        %v1422 = vunpack.c.l.b16 %v982
        %v1423 = vunpack.c.l.b16 %v983
        %v1424 = vpack.c.b16 %v1409, %v1408
        %v1425 = vpack.c.b16 %v1411, %v1410
        %v1426 = vpack.c.b16 %v1413, %v1412
        %v1427 = vpack.c.b16 %v1415, %v1414
        %v1428 = vpack.c.b16 %v1417, %v1416
        %v1429 = vpack.c.b16 %v1419, %v1418
        %v1430 = vpack.c.b16 %v1421, %v1420
        %v1431 = vpack.c.b16 %v1423, %v1422
        %v1456 = vunpack.c.l.b16 %v1376
        %v1457 = vunpack.c.l.b16 %v1377
        %v1458 = vunpack.c.l.b16 %v1378
        %v1459 = vunpack.c.l.b16 %v1379
        %v1460 = vunpack.c.l.b16 %v1380
        %v1461 = vunpack.c.l.b16 %v1381
        %v1462 = vunpack.c.l.b16 %v1382
        %v1463 = vunpack.c.l.b16 %v1383
        %v1464 = vunpack.c.l.b16 %v1384
        %v1465 = vunpack.c.l.b16 %v1385
        %v1466 = vunpack.c.l.b16 %v1386
        %v1467 = vunpack.c.l.b16 %v1387
        %v1468 = vunpack.c.l.b16 %v1388
        %v1469 = vunpack.c.l.b16 %v1389
        %v1470 = vunpack.c.l.b16 %v1390
        %v1471 = vunpack.c.l.b16 %v1391
        %v1472 = vpack.c.b16 %v1457, %v1456
        %v1473 = vpack.c.b16 %v1459, %v1458
        %v1474 = vpack.c.b16 %v1461, %v1460
        %v1475 = vpack.c.b16 %v1463, %v1462
        %v1476 = vpack.c.b16 %v1465, %v1464
        %v1477 = vpack.c.b16 %v1467, %v1466
        %v1478 = vpack.c.b16 %v1469, %v1468
        %v1479 = vpack.c.b16 %v1471, %v1470
        %1488 = vmatpush.bf16.msra.mxu0 %v1479
        %1489 = vmatpush.bf16.msra.mxu0 %v1478
        %1490 = vmatpush.bf16.msra.mxu0 %v1477
        %1491 = vmatpush.bf16.msra.mxu0 %v1476
        %1492 = vmatpush.bf16.msra.mxu0 %v1475
        %1493 = vmatpush.bf16.msra.mxu0 %v1474
        %1494 = vmatpush.bf16.msra.mxu0 %v1473
        %1495 = vmatpush.bf16.msra.mxu0 %v1472
        %1496 = vmatmul.bf16.gmra.mxu0 %v1424
        %v1497 = vpop.f32.mrf.mxu0
        %v1498 = vadd.f32 0.0, %v1497
        %v1499 = vpop.f32.mrf.mxu0
        %v1500 = vadd.f32 0.0, %v1499
        %1501 = vmatmul.bf16.gmra.mxu0 %v1425
        %v1502 = vpop.f32.mrf.mxu0
        %v1503 = vadd.f32 0.0, %v1502
        %v1504 = vpop.f32.mrf.mxu0
        %v1505 = vadd.f32 0.0, %v1504
        %1506 = vmatmul.bf16.gmra.mxu0 %v1426
        %v1507 = vpop.f32.mrf.mxu0
        %v1508 = vadd.f32 0.0, %v1507
        %v1509 = vpop.f32.mrf.mxu0
        %v1510 = vadd.f32 0.0, %v1509
        %1511 = vmatmul.bf16.gmra.mxu0 %v1427
        %v1512 = vpop.f32.mrf.mxu0
        %v1513 = vadd.f32 0.0, %v1512
        %v1514 = vpop.f32.mrf.mxu0
        %v1515 = vadd.f32 0.0, %v1514
        %1516 = vmatmul.bf16.gmra.mxu0 %v1428
        %v1517 = vpop.f32.mrf.mxu0
        %v1518 = vadd.f32 0.0, %v1517
        %v1519 = vpop.f32.mrf.mxu0
        %v1520 = vadd.f32 0.0, %v1519
        %1521 = vmatmul.bf16.gmra.mxu0 %v1429
        %v1522 = vpop.f32.mrf.mxu0
        %v1523 = vadd.f32 0.0, %v1522
        %v1524 = vpop.f32.mrf.mxu0
        %v1525 = vadd.f32 0.0, %v1524
        %1526 = vmatmul.bf16.gmra.mxu0 %v1430
        %v1527 = vpop.f32.mrf.mxu0
        %v1528 = vadd.f32 0.0, %v1527
        %v1529 = vpop.f32.mrf.mxu0
        %v1530 = vadd.f32 0.0, %v1529
        %1531 = vmatmul.bf16.gmra.mxu0 %v1431
        %v1532 = vpop.f32.mrf.mxu0
        %v1533 = vadd.f32 0.0, %v1532
        %v1534 = vpop.f32.mrf.mxu0
        %v1535 = vadd.f32 0.0, %v1534
        %1536 = vdwg.mxu0
        %v1537 = vld [vmem:[#allocation2] sm:$0xff]
        %v1538 = vld [vmem:[#allocation2 + $0x8] sm:$0xff]
        %v1539 = vld [vmem:[#allocation2 + $0x10] sm:$0xff]
        %v1540 = vld [vmem:[#allocation2 + $0x18] sm:$0xff]
        %v1541 = vld [vmem:[#allocation2 + $0x20] sm:$0xff]
        %v1542 = vld [vmem:[#allocation2 + $0x28] sm:$0xff]
        %v1543 = vld [vmem:[#allocation2 + $0x30] sm:$0xff]
        %v1544 = vld [vmem:[#allocation2 + $0x38] sm:$0xff]
        %v1545 = vld [vmem:[#allocation2 + $0x40] sm:$0xff]
        %v1546 = vld [vmem:[#allocation2 + $0x48] sm:$0xff]
        %v1547 = vld [vmem:[#allocation2 + $0x50] sm:$0xff]
        %v1548 = vld [vmem:[#allocation2 + $0x58] sm:$0xff]
        %v1549 = vld [vmem:[#allocation2 + $0x60] sm:$0xff]
        %v1550 = vld [vmem:[#allocation2 + $0x68] sm:$0xff]
        %v1551 = vld [vmem:[#allocation2 + $0x70] sm:$0xff]
        %v1552 = vld [vmem:[#allocation2 + $0x78] sm:$0xff]
        %v1553 = vadd.f32 %v1537, %v1498
        %v1554 = vadd.f32 %v1538, %v1500
        %v1555 = vadd.f32 %v1539, %v1503
        %v1556 = vadd.f32 %v1540, %v1505
        %v1557 = vadd.f32 %v1541, %v1508
        %v1558 = vadd.f32 %v1542, %v1510
        %v1559 = vadd.f32 %v1543, %v1513
        %v1560 = vadd.f32 %v1544, %v1515
        %v1561 = vadd.f32 %v1545, %v1518
        %v1562 = vadd.f32 %v1546, %v1520
        %v1563 = vadd.f32 %v1547, %v1523
        %v1564 = vadd.f32 %v1548, %v1525
        %v1565 = vadd.f32 %v1549, %v1528
        %v1566 = vadd.f32 %v1550, %v1530
        %v1567 = vadd.f32 %v1551, %v1533
        %v1568 = vadd.f32 %v1552, %v1535
        %1569 = vst [vmem:[#allocation2] sm:$0xff] %v1553
        %1570 = vst [vmem:[#allocation2 + $0x8] sm:$0xff] %v1554
        %1571 = vst [vmem:[#allocation2 + $0x10] sm:$0xff] %v1555
        %1572 = vst [vmem:[#allocation2 + $0x18] sm:$0xff] %v1556
        %1573 = vst [vmem:[#allocation2 + $0x20] sm:$0xff] %v1557
        %1574 = vst [vmem:[#allocation2 + $0x28] sm:$0xff] %v1558
        %1575 = vst [vmem:[#allocation2 + $0x30] sm:$0xff] %v1559
        %1576 = vst [vmem:[#allocation2 + $0x38] sm:$0xff] %v1560
        %1577 = vst [vmem:[#allocation2 + $0x40] sm:$0xff] %v1561
        %1578 = vst [vmem:[#allocation2 + $0x48] sm:$0xff] %v1562
        %1579 = vst [vmem:[#allocation2 + $0x50] sm:$0xff] %v1563
        %1580 = vst [vmem:[#allocation2 + $0x58] sm:$0xff] %v1564
        %1581 = vst [vmem:[#allocation2 + $0x60] sm:$0xff] %v1565
        %1582 = vst [vmem:[#allocation2 + $0x68] sm:$0xff] %v1566
        %1583 = vst [vmem:[#allocation2 + $0x70] sm:$0xff] %v1567
        %1584 = vst [vmem:[#allocation2 + $0x78] sm:$0xff] %v1568
        %s1585 = scalar_lea.vmem %s5, 192
        %v1586 = vld [vmem:[%s1585] sm:$0xf]
        %v1587 = vld [vmem:[%s1585 + $0x4] sm:$0xf]
        %v1588 = vld [vmem:[%s1585 + $0x8] sm:$0xf]
        %v1589 = vld [vmem:[%s1585 + $0xc] sm:$0xf]
        %v1590 = vld [vmem:[%s1585 + $0x10] sm:$0xf]
        %v1591 = vld [vmem:[%s1585 + $0x14] sm:$0xf]
        %v1592 = vld [vmem:[%s1585 + $0x18] sm:$0xf]
        %v1593 = vld [vmem:[%s1585 + $0x1c] sm:$0xf]
        %v1594 = vld [vmem:[%s1585 + $0x20] sm:$0xf]
        %v1595 = vld [vmem:[%s1585 + $0x24] sm:$0xf]
        %v1596 = vld [vmem:[%s1585 + $0x28] sm:$0xf]
        %v1597 = vld [vmem:[%s1585 + $0x2c] sm:$0xf]
        %v1598 = vld [vmem:[%s1585 + $0x30] sm:$0xf]
        %v1599 = vld [vmem:[%s1585 + $0x34] sm:$0xf]
        %v1600 = vld [vmem:[%s1585 + $0x38] sm:$0xf]
        %v1601 = vld [vmem:[%s1585 + $0x3c] sm:$0xf]
        %v1604 = vunpack.c.l.b16 %v944
        %v1605 = vunpack.c.l.b16 %v945
        %v1606 = vpack.c.b16 %v1605, %v1604
        %v1624 = vunpack.c.l.b16 %v1586
        %v1625 = vunpack.c.l.b16 %v1587
        %v1626 = vunpack.c.l.b16 %v1588
        %v1627 = vunpack.c.l.b16 %v1589
        %v1628 = vunpack.c.l.b16 %v1590
        %v1629 = vunpack.c.l.b16 %v1591
        %v1630 = vunpack.c.l.b16 %v1592
        %v1631 = vunpack.c.l.b16 %v1593
        %v1632 = vunpack.c.l.b16 %v1594
        %v1633 = vunpack.c.l.b16 %v1595
        %v1634 = vunpack.c.l.b16 %v1596
        %v1635 = vunpack.c.l.b16 %v1597
        %v1636 = vunpack.c.l.b16 %v1598
        %v1637 = vunpack.c.l.b16 %v1599
        %v1638 = vunpack.c.l.b16 %v1600
        %v1639 = vunpack.c.l.b16 %v1601
        %v1640 = vpack.c.b16 %v1625, %v1624
        %v1641 = vpack.c.b16 %v1627, %v1626
        %v1642 = vpack.c.b16 %v1629, %v1628
        %v1643 = vpack.c.b16 %v1631, %v1630
        %v1644 = vpack.c.b16 %v1633, %v1632
        %v1645 = vpack.c.b16 %v1635, %v1634
        %v1646 = vpack.c.b16 %v1637, %v1636
        %v1647 = vpack.c.b16 %v1639, %v1638
        %1656 = vmatpush.bf16.msra.mxu0 %v1647
        %1657 = vmatpush.bf16.msra.mxu0 %v1646
        %1658 = vmatpush.bf16.msra.mxu0 %v1645
        %1659 = vmatpush.bf16.msra.mxu0 %v1644
        %1660 = vmatpush.bf16.msra.mxu0 %v1643
        %1661 = vmatpush.bf16.msra.mxu0 %v1642
        %1662 = vmatpush.bf16.msra.mxu0 %v1641
        %1663 = vmatpush.bf16.msra.mxu0 %v1640
        %1664 = vmatmul.bf16.gmra.mxu0 %v1037
        %v1665 = vpop.f32.mrf.mxu0
        %v1666 = vadd.f32 0.0, %v1665
        %v1667 = vpop.f32.mrf.mxu0
        %v1668 = vadd.f32 0.0, %v1667
        %1669 = vmatmul.bf16.gmra.mxu0 %v1038
        %v1670 = vpop.f32.mrf.mxu0
        %v1671 = vadd.f32 0.0, %v1670
        %v1672 = vpop.f32.mrf.mxu0
        %v1673 = vadd.f32 0.0, %v1672
        %1674 = vmatmul.bf16.gmra.mxu0 %v1039
        %v1675 = vpop.f32.mrf.mxu0
        %v1676 = vadd.f32 0.0, %v1675
        %v1677 = vpop.f32.mrf.mxu0
        %v1678 = vadd.f32 0.0, %v1677
        %1679 = vmatmul.bf16.gmra.mxu0 %v1040
        %v1680 = vpop.f32.mrf.mxu0
        %v1681 = vadd.f32 0.0, %v1680
        %v1682 = vpop.f32.mrf.mxu0
        %v1683 = vadd.f32 0.0, %v1682
        %1684 = vmatmul.bf16.gmra.mxu0 %v1041
        %v1685 = vpop.f32.mrf.mxu0
        %v1686 = vadd.f32 0.0, %v1685
        %v1687 = vpop.f32.mrf.mxu0
        %v1688 = vadd.f32 0.0, %v1687
        %1689 = vmatmul.bf16.gmra.mxu0 %v1042
        %v1690 = vpop.f32.mrf.mxu0
        %v1691 = vadd.f32 0.0, %v1690
        %v1692 = vpop.f32.mrf.mxu0
        %v1693 = vadd.f32 0.0, %v1692
        %1694 = vmatmul.bf16.gmra.mxu0 %v1043
        %v1695 = vpop.f32.mrf.mxu0
        %v1696 = vadd.f32 0.0, %v1695
        %v1697 = vpop.f32.mrf.mxu0
        %v1698 = vadd.f32 0.0, %v1697
        %1699 = vmatmul.bf16.gmra.mxu0 %v1606
        %v1700 = vpop.f32.mrf.mxu0
        %v1701 = vadd.f32 0.0, %v1700
        %v1702 = vpop.f32.mrf.mxu0
        %v1703 = vadd.f32 0.0, %v1702
        %1704 = vdwg.mxu0
        %v1705 = vld [vmem:[#allocation2] sm:$0xff]
        %v1706 = vld [vmem:[#allocation2 + $0x8] sm:$0xff]
        %v1707 = vld [vmem:[#allocation2 + $0x10] sm:$0xff]
        %v1708 = vld [vmem:[#allocation2 + $0x18] sm:$0xff]
        %v1709 = vld [vmem:[#allocation2 + $0x20] sm:$0xff]
        %v1710 = vld [vmem:[#allocation2 + $0x28] sm:$0xff]
        %v1711 = vld [vmem:[#allocation2 + $0x30] sm:$0xff]
        %v1712 = vld [vmem:[#allocation2 + $0x38] sm:$0xff]
        %v1713 = vld [vmem:[#allocation2 + $0x40] sm:$0xff]
        %v1714 = vld [vmem:[#allocation2 + $0x48] sm:$0xff]
        %v1715 = vld [vmem:[#allocation2 + $0x50] sm:$0xff]
        %v1716 = vld [vmem:[#allocation2 + $0x58] sm:$0xff]
        %v1717 = vld [vmem:[#allocation2 + $0x60] sm:$0xff]
        %v1718 = vld [vmem:[#allocation2 + $0x68] sm:$0xff]
        %v1719 = vld [vmem:[#allocation2 + $0x70] sm:$0xff]
        %v1720 = vld [vmem:[#allocation2 + $0x78] sm:$0xff]
        %v1721 = vadd.f32 %v1705, %v1666
        %v1722 = vadd.f32 %v1706, %v1668
        %v1723 = vadd.f32 %v1707, %v1671
        %v1724 = vadd.f32 %v1708, %v1673
        %v1725 = vadd.f32 %v1709, %v1676
        %v1726 = vadd.f32 %v1710, %v1678
        %v1727 = vadd.f32 %v1711, %v1681
        %v1728 = vadd.f32 %v1712, %v1683
        %v1729 = vadd.f32 %v1713, %v1686
        %v1730 = vadd.f32 %v1714, %v1688
        %v1731 = vadd.f32 %v1715, %v1691
        %v1732 = vadd.f32 %v1716, %v1693
        %v1733 = vadd.f32 %v1717, %v1696
        %v1734 = vadd.f32 %v1718, %v1698
        %v1735 = vadd.f32 %v1719, %v1701
        %v1736 = vadd.f32 %v1720, %v1703
        %1737 = vst [vmem:[#allocation2] sm:$0xff] %v1721
        %1738 = vst [vmem:[#allocation2 + $0x8] sm:$0xff] %v1722
        %1739 = vst [vmem:[#allocation2 + $0x10] sm:$0xff] %v1723
        %1740 = vst [vmem:[#allocation2 + $0x18] sm:$0xff] %v1724
        %1741 = vst [vmem:[#allocation2 + $0x20] sm:$0xff] %v1725
        %1742 = vst [vmem:[#allocation2 + $0x28] sm:$0xff] %v1726
        %1743 = vst [vmem:[#allocation2 + $0x30] sm:$0xff] %v1727
        %1744 = vst [vmem:[#allocation2 + $0x38] sm:$0xff] %v1728
        %1745 = vst [vmem:[#allocation2 + $0x40] sm:$0xff] %v1729
        %1746 = vst [vmem:[#allocation2 + $0x48] sm:$0xff] %v1730
        %1747 = vst [vmem:[#allocation2 + $0x50] sm:$0xff] %v1731
        %1748 = vst [vmem:[#allocation2 + $0x58] sm:$0xff] %v1732
        %1749 = vst [vmem:[#allocation2 + $0x60] sm:$0xff] %v1733
        %1750 = vst [vmem:[#allocation2 + $0x68] sm:$0xff] %v1734
        %1751 = vst [vmem:[#allocation2 + $0x70] sm:$0xff] %v1735
        %1752 = vst [vmem:[#allocation2 + $0x78] sm:$0xff] %v1736
        %s1753 = scalar_lea.vmem %s5, 256
        %v1754 = vld [vmem:[%s1753] sm:$0xf]
        %v1755 = vld [vmem:[%s1753 + $0x4] sm:$0xf]
        %v1756 = vld [vmem:[%s1753 + $0x8] sm:$0xf]
        %v1757 = vld [vmem:[%s1753 + $0xc] sm:$0xf]
        %v1758 = vld [vmem:[%s1753 + $0x10] sm:$0xf]
        %v1759 = vld [vmem:[%s1753 + $0x14] sm:$0xf]
        %v1760 = vld [vmem:[%s1753 + $0x18] sm:$0xf]
        %v1761 = vld [vmem:[%s1753 + $0x1c] sm:$0xf]
        %v1762 = vld [vmem:[%s1753 + $0x20] sm:$0xf]
        %v1763 = vld [vmem:[%s1753 + $0x24] sm:$0xf]
        %v1764 = vld [vmem:[%s1753 + $0x28] sm:$0xf]
        %v1765 = vld [vmem:[%s1753 + $0x2c] sm:$0xf]
        %v1766 = vld [vmem:[%s1753 + $0x30] sm:$0xf]
        %v1767 = vld [vmem:[%s1753 + $0x34] sm:$0xf]
        %v1768 = vld [vmem:[%s1753 + $0x38] sm:$0xf]
        %v1769 = vld [vmem:[%s1753 + $0x3c] sm:$0xf]
        %v1772 = vunpack.c.l.b16 %v964
        %v1773 = vunpack.c.l.b16 %v965
        %v1774 = vpack.c.b16 %v1773, %v1772
        %v1792 = vunpack.c.l.b16 %v1754
        %v1793 = vunpack.c.l.b16 %v1755
        %v1794 = vunpack.c.l.b16 %v1756
        %v1795 = vunpack.c.l.b16 %v1757
        %v1796 = vunpack.c.l.b16 %v1758
        %v1797 = vunpack.c.l.b16 %v1759
        %v1798 = vunpack.c.l.b16 %v1760
        %v1799 = vunpack.c.l.b16 %v1761
        %v1800 = vunpack.c.l.b16 %v1762
        %v1801 = vunpack.c.l.b16 %v1763
        %v1802 = vunpack.c.l.b16 %v1764
        %v1803 = vunpack.c.l.b16 %v1765
        %v1804 = vunpack.c.l.b16 %v1766
        %v1805 = vunpack.c.l.b16 %v1767
        %v1806 = vunpack.c.l.b16 %v1768
        %v1807 = vunpack.c.l.b16 %v1769
        %v1808 = vpack.c.b16 %v1793, %v1792
        %v1809 = vpack.c.b16 %v1795, %v1794
        %v1810 = vpack.c.b16 %v1797, %v1796
        %v1811 = vpack.c.b16 %v1799, %v1798
        %v1812 = vpack.c.b16 %v1801, %v1800
        %v1813 = vpack.c.b16 %v1803, %v1802
        %v1814 = vpack.c.b16 %v1805, %v1804
        %v1815 = vpack.c.b16 %v1807, %v1806
        %1824 = vmatpush.bf16.msra.mxu0 %v1815
        %1825 = vmatpush.bf16.msra.mxu0 %v1814
        %1826 = vmatpush.bf16.msra.mxu0 %v1813
        %1827 = vmatpush.bf16.msra.mxu0 %v1812
        %1828 = vmatpush.bf16.msra.mxu0 %v1811
        %1829 = vmatpush.bf16.msra.mxu0 %v1810
        %1830 = vmatpush.bf16.msra.mxu0 %v1809
        %1831 = vmatpush.bf16.msra.mxu0 %v1808
        %1832 = vmatmul.bf16.gmra.mxu0 %v1215
        %v1833 = vpop.f32.mrf.mxu0
        %v1834 = vadd.f32 0.0, %v1833
        %v1835 = vpop.f32.mrf.mxu0
        %v1836 = vadd.f32 0.0, %v1835
        %1837 = vmatmul.bf16.gmra.mxu0 %v1216
        %v1838 = vpop.f32.mrf.mxu0
        %v1839 = vadd.f32 0.0, %v1838
        %v1840 = vpop.f32.mrf.mxu0
        %v1841 = vadd.f32 0.0, %v1840
        %1842 = vmatmul.bf16.gmra.mxu0 %v1217
        %v1843 = vpop.f32.mrf.mxu0
        %v1844 = vadd.f32 0.0, %v1843
        %v1845 = vpop.f32.mrf.mxu0
        %v1846 = vadd.f32 0.0, %v1845
        %1847 = vmatmul.bf16.gmra.mxu0 %v1218
        %v1848 = vpop.f32.mrf.mxu0
        %v1849 = vadd.f32 0.0, %v1848
        %v1850 = vpop.f32.mrf.mxu0
        %v1851 = vadd.f32 0.0, %v1850
        %1852 = vmatmul.bf16.gmra.mxu0 %v1219
        %v1853 = vpop.f32.mrf.mxu0
        %v1854 = vadd.f32 0.0, %v1853
        %v1855 = vpop.f32.mrf.mxu0
        %v1856 = vadd.f32 0.0, %v1855
        %1857 = vmatmul.bf16.gmra.mxu0 %v1220
        %v1858 = vpop.f32.mrf.mxu0
        %v1859 = vadd.f32 0.0, %v1858
        %v1860 = vpop.f32.mrf.mxu0
        %v1861 = vadd.f32 0.0, %v1860
        %1862 = vmatmul.bf16.gmra.mxu0 %v1221
        %v1863 = vpop.f32.mrf.mxu0
        %v1864 = vadd.f32 0.0, %v1863
        %v1865 = vpop.f32.mrf.mxu0
        %v1866 = vadd.f32 0.0, %v1865
        %1867 = vmatmul.bf16.gmra.mxu0 %v1774
        %v1868 = vpop.f32.mrf.mxu0
        %v1869 = vadd.f32 0.0, %v1868
        %v1870 = vpop.f32.mrf.mxu0
        %v1871 = vadd.f32 0.0, %v1870
        %1872 = vdwg.mxu0
        %v1873 = vld [vmem:[#allocation2] sm:$0xff]
        %v1874 = vld [vmem:[#allocation2 + $0x8] sm:$0xff]
        %v1875 = vld [vmem:[#allocation2 + $0x10] sm:$0xff]
        %v1876 = vld [vmem:[#allocation2 + $0x18] sm:$0xff]
        %v1877 = vld [vmem:[#allocation2 + $0x20] sm:$0xff]
        %v1878 = vld [vmem:[#allocation2 + $0x28] sm:$0xff]
        %v1879 = vld [vmem:[#allocation2 + $0x30] sm:$0xff]
        %v1880 = vld [vmem:[#allocation2 + $0x38] sm:$0xff]
        %v1881 = vld [vmem:[#allocation2 + $0x40] sm:$0xff]
        %v1882 = vld [vmem:[#allocation2 + $0x48] sm:$0xff]
        %v1883 = vld [vmem:[#allocation2 + $0x50] sm:$0xff]
        %v1884 = vld [vmem:[#allocation2 + $0x58] sm:$0xff]
        %v1885 = vld [vmem:[#allocation2 + $0x60] sm:$0xff]
        %v1886 = vld [vmem:[#allocation2 + $0x68] sm:$0xff]
        %v1887 = vld [vmem:[#allocation2 + $0x70] sm:$0xff]
        %v1888 = vld [vmem:[#allocation2 + $0x78] sm:$0xff]
        %v1889 = vadd.f32 %v1873, %v1834
        %v1890 = vadd.f32 %v1874, %v1836
        %v1891 = vadd.f32 %v1875, %v1839
        %v1892 = vadd.f32 %v1876, %v1841
        %v1893 = vadd.f32 %v1877, %v1844
        %v1894 = vadd.f32 %v1878, %v1846
        %v1895 = vadd.f32 %v1879, %v1849
        %v1896 = vadd.f32 %v1880, %v1851
        %v1897 = vadd.f32 %v1881, %v1854
        %v1898 = vadd.f32 %v1882, %v1856
        %v1899 = vadd.f32 %v1883, %v1859
        %v1900 = vadd.f32 %v1884, %v1861
        %v1901 = vadd.f32 %v1885, %v1864
        %v1902 = vadd.f32 %v1886, %v1866
        %v1903 = vadd.f32 %v1887, %v1869
        %v1904 = vadd.f32 %v1888, %v1871
        %1905 = vst [vmem:[#allocation2] sm:$0xff] %v1889
        %1906 = vst [vmem:[#allocation2 + $0x8] sm:$0xff] %v1890
        %1907 = vst [vmem:[#allocation2 + $0x10] sm:$0xff] %v1891
        %1908 = vst [vmem:[#allocation2 + $0x18] sm:$0xff] %v1892
        %1909 = vst [vmem:[#allocation2 + $0x20] sm:$0xff] %v1893
        %1910 = vst [vmem:[#allocation2 + $0x28] sm:$0xff] %v1894
        %1911 = vst [vmem:[#allocation2 + $0x30] sm:$0xff] %v1895
        %1912 = vst [vmem:[#allocation2 + $0x38] sm:$0xff] %v1896
        %1913 = vst [vmem:[#allocation2 + $0x40] sm:$0xff] %v1897
        %1914 = vst [vmem:[#allocation2 + $0x48] sm:$0xff] %v1898
        %1915 = vst [vmem:[#allocation2 + $0x50] sm:$0xff] %v1899
        %1916 = vst [vmem:[#allocation2 + $0x58] sm:$0xff] %v1900
        %1917 = vst [vmem:[#allocation2 + $0x60] sm:$0xff] %v1901
        %1918 = vst [vmem:[#allocation2 + $0x68] sm:$0xff] %v1902
        %1919 = vst [vmem:[#allocation2 + $0x70] sm:$0xff] %v1903
        %1920 = vst [vmem:[#allocation2 + $0x78] sm:$0xff] %v1904
        %s1921 = scalar_lea.vmem %s5, 320
        %v1922 = vld [vmem:[%s1921] sm:$0xf]
        %v1923 = vld [vmem:[%s1921 + $0x4] sm:$0xf]
        %v1924 = vld [vmem:[%s1921 + $0x8] sm:$0xf]
        %v1925 = vld [vmem:[%s1921 + $0xc] sm:$0xf]
        %v1926 = vld [vmem:[%s1921 + $0x10] sm:$0xf]
        %v1927 = vld [vmem:[%s1921 + $0x14] sm:$0xf]
        %v1928 = vld [vmem:[%s1921 + $0x18] sm:$0xf]
        %v1929 = vld [vmem:[%s1921 + $0x1c] sm:$0xf]
        %v1930 = vld [vmem:[%s1921 + $0x20] sm:$0xf]
        %v1931 = vld [vmem:[%s1921 + $0x24] sm:$0xf]
        %v1932 = vld [vmem:[%s1921 + $0x28] sm:$0xf]
        %v1933 = vld [vmem:[%s1921 + $0x2c] sm:$0xf]
        %v1934 = vld [vmem:[%s1921 + $0x30] sm:$0xf]
        %v1935 = vld [vmem:[%s1921 + $0x34] sm:$0xf]
        %v1936 = vld [vmem:[%s1921 + $0x38] sm:$0xf]
        %v1937 = vld [vmem:[%s1921 + $0x3c] sm:$0xf]
        %v1940 = vunpack.c.l.b16 %v984
        %v1941 = vunpack.c.l.b16 %v985
        %v1942 = vpack.c.b16 %v1941, %v1940
        %v1960 = vunpack.c.l.b16 %v1922
        %v1961 = vunpack.c.l.b16 %v1923
        %v1962 = vunpack.c.l.b16 %v1924
        %v1963 = vunpack.c.l.b16 %v1925
        %v1964 = vunpack.c.l.b16 %v1926
        %v1965 = vunpack.c.l.b16 %v1927
        %v1966 = vunpack.c.l.b16 %v1928
        %v1967 = vunpack.c.l.b16 %v1929
        %v1968 = vunpack.c.l.b16 %v1930
        %v1969 = vunpack.c.l.b16 %v1931
        %v1970 = vunpack.c.l.b16 %v1932
        %v1971 = vunpack.c.l.b16 %v1933
        %v1972 = vunpack.c.l.b16 %v1934
        %v1973 = vunpack.c.l.b16 %v1935
        %v1974 = vunpack.c.l.b16 %v1936
        %v1975 = vunpack.c.l.b16 %v1937
        %v1976 = vpack.c.b16 %v1961, %v1960
        %v1977 = vpack.c.b16 %v1963, %v1962
        %v1978 = vpack.c.b16 %v1965, %v1964
        %v1979 = vpack.c.b16 %v1967, %v1966
        %v1980 = vpack.c.b16 %v1969, %v1968
        %v1981 = vpack.c.b16 %v1971, %v1970
        %v1982 = vpack.c.b16 %v1973, %v1972
        %v1983 = vpack.c.b16 %v1975, %v1974
        %1992 = vmatpush.bf16.msra.mxu0 %v1983
        %1993 = vmatpush.bf16.msra.mxu0 %v1982
        %1994 = vmatpush.bf16.msra.mxu0 %v1981
        %1995 = vmatpush.bf16.msra.mxu0 %v1980
        %1996 = vmatpush.bf16.msra.mxu0 %v1979
        %1997 = vmatpush.bf16.msra.mxu0 %v1978
        %1998 = vmatpush.bf16.msra.mxu0 %v1977
        %1999 = vmatpush.bf16.msra.mxu0 %v1976
        %2000 = vmatmul.bf16.gmra.mxu0 %v1425
        %v2001 = vpop.f32.mrf.mxu0
        %v2002 = vadd.f32 0.0, %v2001
        %v2003 = vpop.f32.mrf.mxu0
        %v2004 = vadd.f32 0.0, %v2003
        %2005 = vmatmul.bf16.gmra.mxu0 %v1426
        %v2006 = vpop.f32.mrf.mxu0
        %v2007 = vadd.f32 0.0, %v2006
        %v2008 = vpop.f32.mrf.mxu0
        %v2009 = vadd.f32 0.0, %v2008
        %2010 = vmatmul.bf16.gmra.mxu0 %v1427
        %v2011 = vpop.f32.mrf.mxu0
        %v2012 = vadd.f32 0.0, %v2011
        %v2013 = vpop.f32.mrf.mxu0
        %v2014 = vadd.f32 0.0, %v2013
        %2015 = vmatmul.bf16.gmra.mxu0 %v1428
        %v2016 = vpop.f32.mrf.mxu0
        %v2017 = vadd.f32 0.0, %v2016
        %v2018 = vpop.f32.mrf.mxu0
        %v2019 = vadd.f32 0.0, %v2018
        %2020 = vmatmul.bf16.gmra.mxu0 %v1429
        %v2021 = vpop.f32.mrf.mxu0
        %v2022 = vadd.f32 0.0, %v2021
        %v2023 = vpop.f32.mrf.mxu0
        %v2024 = vadd.f32 0.0, %v2023
        %2025 = vmatmul.bf16.gmra.mxu0 %v1430
        %v2026 = vpop.f32.mrf.mxu0
        %v2027 = vadd.f32 0.0, %v2026
        %v2028 = vpop.f32.mrf.mxu0
        %v2029 = vadd.f32 0.0, %v2028
        %2030 = vmatmul.bf16.gmra.mxu0 %v1431
        %v2031 = vpop.f32.mrf.mxu0
        %v2032 = vadd.f32 0.0, %v2031
        %v2033 = vpop.f32.mrf.mxu0
        %v2034 = vadd.f32 0.0, %v2033
        %2035 = vmatmul.bf16.gmra.mxu0 %v1942
        %v2036 = vpop.f32.mrf.mxu0
        %v2037 = vadd.f32 0.0, %v2036
        %v2038 = vpop.f32.mrf.mxu0
        %v2039 = vadd.f32 0.0, %v2038
        %2040 = vdwg.mxu0
        %v2041 = vld [vmem:[#allocation2] sm:$0xff]
        %v2042 = vld [vmem:[#allocation2 + $0x8] sm:$0xff]
        %v2043 = vld [vmem:[#allocation2 + $0x10] sm:$0xff]
        %v2044 = vld [vmem:[#allocation2 + $0x18] sm:$0xff]
        %v2045 = vld [vmem:[#allocation2 + $0x20] sm:$0xff]
        %v2046 = vld [vmem:[#allocation2 + $0x28] sm:$0xff]
        %v2047 = vld [vmem:[#allocation2 + $0x30] sm:$0xff]
        %v2048 = vld [vmem:[#allocation2 + $0x38] sm:$0xff]
        %v2049 = vld [vmem:[#allocation2 + $0x40] sm:$0xff]
        %v2050 = vld [vmem:[#allocation2 + $0x48] sm:$0xff]
        %v2051 = vld [vmem:[#allocation2 + $0x50] sm:$0xff]
        %v2052 = vld [vmem:[#allocation2 + $0x58] sm:$0xff]
        %v2053 = vld [vmem:[#allocation2 + $0x60] sm:$0xff]
        %v2054 = vld [vmem:[#allocation2 + $0x68] sm:$0xff]
        %v2055 = vld [vmem:[#allocation2 + $0x70] sm:$0xff]
        %v2056 = vld [vmem:[#allocation2 + $0x78] sm:$0xff]
        %v2057 = vadd.f32 %v2041, %v2002
        %v2058 = vadd.f32 %v2042, %v2004
        %v2059 = vadd.f32 %v2043, %v2007
        %v2060 = vadd.f32 %v2044, %v2009
        %v2061 = vadd.f32 %v2045, %v2012
        %v2062 = vadd.f32 %v2046, %v2014
        %v2063 = vadd.f32 %v2047, %v2017
        %v2064 = vadd.f32 %v2048, %v2019
        %v2065 = vadd.f32 %v2049, %v2022
        %v2066 = vadd.f32 %v2050, %v2024
        %v2067 = vadd.f32 %v2051, %v2027
        %v2068 = vadd.f32 %v2052, %v2029
        %v2069 = vadd.f32 %v2053, %v2032
        %v2070 = vadd.f32 %v2054, %v2034
        %v2071 = vadd.f32 %v2055, %v2037
        %v2072 = vadd.f32 %v2056, %v2039
        %2073 = vst [vmem:[#allocation2] sm:$0xff] %v2057
        %2074 = vst [vmem:[#allocation2 + $0x8] sm:$0xff] %v2058
        %2075 = vst [vmem:[#allocation2 + $0x10] sm:$0xff] %v2059
        %2076 = vst [vmem:[#allocation2 + $0x18] sm:$0xff] %v2060
        %2077 = vst [vmem:[#allocation2 + $0x20] sm:$0xff] %v2061
        %2078 = vst [vmem:[#allocation2 + $0x28] sm:$0xff] %v2062
        %2079 = vst [vmem:[#allocation2 + $0x30] sm:$0xff] %v2063
        %2080 = vst [vmem:[#allocation2 + $0x38] sm:$0xff] %v2064
        %2081 = vst [vmem:[#allocation2 + $0x40] sm:$0xff] %v2065
        %2082 = vst [vmem:[#allocation2 + $0x48] sm:$0xff] %v2066
        %2083 = vst [vmem:[#allocation2 + $0x50] sm:$0xff] %v2067
        %2084 = vst [vmem:[#allocation2 + $0x58] sm:$0xff] %v2068
        %2085 = vst [vmem:[#allocation2 + $0x60] sm:$0xff] %v2069
        %2086 = vst [vmem:[#allocation2 + $0x68] sm:$0xff] %v2070
        %2087 = vst [vmem:[#allocation2 + $0x70] sm:$0xff] %v2071
        %2088 = vst [vmem:[#allocation2 + $0x78] sm:$0xff] %v2072
        %s2089 = scalar_lea.vmem %s5, 384
        %v2090 = vld [vmem:[%s2089] sm:$0xf]
        %v2091 = vld [vmem:[%s2089 + $0x4] sm:$0xf]
        %v2092 = vld [vmem:[%s2089 + $0x8] sm:$0xf]
        %v2093 = vld [vmem:[%s2089 + $0xc] sm:$0xf]
        %v2094 = vld [vmem:[%s2089 + $0x10] sm:$0xf]
        %v2095 = vld [vmem:[%s2089 + $0x14] sm:$0xf]
        %v2096 = vld [vmem:[%s2089 + $0x18] sm:$0xf]
        %v2097 = vld [vmem:[%s2089 + $0x1c] sm:$0xf]
        %v2098 = vld [vmem:[%s2089 + $0x20] sm:$0xf]
        %v2099 = vld [vmem:[%s2089 + $0x24] sm:$0xf]
        %v2100 = vld [vmem:[%s2089 + $0x28] sm:$0xf]
        %v2101 = vld [vmem:[%s2089 + $0x2c] sm:$0xf]
        %v2102 = vld [vmem:[%s2089 + $0x30] sm:$0xf]
        %v2103 = vld [vmem:[%s2089 + $0x34] sm:$0xf]
        %v2104 = vld [vmem:[%s2089 + $0x38] sm:$0xf]
        %v2105 = vld [vmem:[%s2089 + $0x3c] sm:$0xf]
        %v2108 = vunpack.c.l.b16 %v946
        %v2109 = vunpack.c.l.b16 %v947
        %v2110 = vpack.c.b16 %v2109, %v2108
        %v2128 = vunpack.c.l.b16 %v2090
        %v2129 = vunpack.c.l.b16 %v2091
        %v2130 = vunpack.c.l.b16 %v2092
        %v2131 = vunpack.c.l.b16 %v2093
        %v2132 = vunpack.c.l.b16 %v2094
        %v2133 = vunpack.c.l.b16 %v2095
        %v2134 = vunpack.c.l.b16 %v2096
        %v2135 = vunpack.c.l.b16 %v2097
        %v2136 = vunpack.c.l.b16 %v2098
        %v2137 = vunpack.c.l.b16 %v2099
        %v2138 = vunpack.c.l.b16 %v2100
        %v2139 = vunpack.c.l.b16 %v2101
        %v2140 = vunpack.c.l.b16 %v2102
        %v2141 = vunpack.c.l.b16 %v2103
        %v2142 = vunpack.c.l.b16 %v2104
        %v2143 = vunpack.c.l.b16 %v2105
        %v2144 = vpack.c.b16 %v2129, %v2128
        %v2145 = vpack.c.b16 %v2131, %v2130
        %v2146 = vpack.c.b16 %v2133, %v2132
        %v2147 = vpack.c.b16 %v2135, %v2134
        %v2148 = vpack.c.b16 %v2137, %v2136
        %v2149 = vpack.c.b16 %v2139, %v2138
        %v2150 = vpack.c.b16 %v2141, %v2140
        %v2151 = vpack.c.b16 %v2143, %v2142
        %2160 = vmatpush.bf16.msra.mxu0 %v2151
        %2161 = vmatpush.bf16.msra.mxu0 %v2150
        %2162 = vmatpush.bf16.msra.mxu0 %v2149
        %2163 = vmatpush.bf16.msra.mxu0 %v2148
        %2164 = vmatpush.bf16.msra.mxu0 %v2147
        %2165 = vmatpush.bf16.msra.mxu0 %v2146
        %2166 = vmatpush.bf16.msra.mxu0 %v2145
        %2167 = vmatpush.bf16.msra.mxu0 %v2144
        %2168 = vmatmul.bf16.gmra.mxu0 %v1038
        %v2169 = vpop.f32.mrf.mxu0
        %v2170 = vadd.f32 0.0, %v2169
        %v2171 = vpop.f32.mrf.mxu0
        %v2172 = vadd.f32 0.0, %v2171
        %2173 = vmatmul.bf16.gmra.mxu0 %v1039
        %v2174 = vpop.f32.mrf.mxu0
        %v2175 = vadd.f32 0.0, %v2174
        %v2176 = vpop.f32.mrf.mxu0
        %v2177 = vadd.f32 0.0, %v2176
        %2178 = vmatmul.bf16.gmra.mxu0 %v1040
        %v2179 = vpop.f32.mrf.mxu0
        %v2180 = vadd.f32 0.0, %v2179
        %v2181 = vpop.f32.mrf.mxu0
        %v2182 = vadd.f32 0.0, %v2181
        %2183 = vmatmul.bf16.gmra.mxu0 %v1041
        %v2184 = vpop.f32.mrf.mxu0
        %v2185 = vadd.f32 0.0, %v2184
        %v2186 = vpop.f32.mrf.mxu0
        %v2187 = vadd.f32 0.0, %v2186
        %2188 = vmatmul.bf16.gmra.mxu0 %v1042
        %v2189 = vpop.f32.mrf.mxu0
        %v2190 = vadd.f32 0.0, %v2189
        %v2191 = vpop.f32.mrf.mxu0
        %v2192 = vadd.f32 0.0, %v2191
        %2193 = vmatmul.bf16.gmra.mxu0 %v1043
        %v2194 = vpop.f32.mrf.mxu0
        %v2195 = vadd.f32 0.0, %v2194
        %v2196 = vpop.f32.mrf.mxu0
        %v2197 = vadd.f32 0.0, %v2196
        %2198 = vmatmul.bf16.gmra.mxu0 %v1606
        %v2199 = vpop.f32.mrf.mxu0
        %v2200 = vadd.f32 0.0, %v2199
        %v2201 = vpop.f32.mrf.mxu0
        %v2202 = vadd.f32 0.0, %v2201
        %2203 = vmatmul.bf16.gmra.mxu0 %v2110
        %v2204 = vpop.f32.mrf.mxu0
        %v2205 = vadd.f32 0.0, %v2204
        %v2206 = vpop.f32.mrf.mxu0
        %v2207 = vadd.f32 0.0, %v2206
        %2208 = vdwg.mxu0
        %v2209 = vld [vmem:[#allocation2] sm:$0xff]
        %v2210 = vld [vmem:[#allocation2 + $0x8] sm:$0xff]
        %v2211 = vld [vmem:[#allocation2 + $0x10] sm:$0xff]
        %v2212 = vld [vmem:[#allocation2 + $0x18] sm:$0xff]
        %v2213 = vld [vmem:[#allocation2 + $0x20] sm:$0xff]
        %v2214 = vld [vmem:[#allocation2 + $0x28] sm:$0xff]
        %v2215 = vld [vmem:[#allocation2 + $0x30] sm:$0xff]
        %v2216 = vld [vmem:[#allocation2 + $0x38] sm:$0xff]
        %v2217 = vld [vmem:[#allocation2 + $0x40] sm:$0xff]
        %v2218 = vld [vmem:[#allocation2 + $0x48] sm:$0xff]
        %v2219 = vld [vmem:[#allocation2 + $0x50] sm:$0xff]
        %v2220 = vld [vmem:[#allocation2 + $0x58] sm:$0xff]
        %v2221 = vld [vmem:[#allocation2 + $0x60] sm:$0xff]
        %v2222 = vld [vmem:[#allocation2 + $0x68] sm:$0xff]
        %v2223 = vld [vmem:[#allocation2 + $0x70] sm:$0xff]
        %v2224 = vld [vmem:[#allocation2 + $0x78] sm:$0xff]
        %v2225 = vadd.f32 %v2209, %v2170
        %v2226 = vadd.f32 %v2210, %v2172
        %v2227 = vadd.f32 %v2211, %v2175
        %v2228 = vadd.f32 %v2212, %v2177
        %v2229 = vadd.f32 %v2213, %v2180
        %v2230 = vadd.f32 %v2214, %v2182
        %v2231 = vadd.f32 %v2215, %v2185
        %v2232 = vadd.f32 %v2216, %v2187
        %v2233 = vadd.f32 %v2217, %v2190
        %v2234 = vadd.f32 %v2218, %v2192
        %v2235 = vadd.f32 %v2219, %v2195
        %v2236 = vadd.f32 %v2220, %v2197
        %v2237 = vadd.f32 %v2221, %v2200
        %v2238 = vadd.f32 %v2222, %v2202
        %v2239 = vadd.f32 %v2223, %v2205
        %v2240 = vadd.f32 %v2224, %v2207
        %2241 = vst [vmem:[#allocation2] sm:$0xff] %v2225
        %2242 = vst [vmem:[#allocation2 + $0x8] sm:$0xff] %v2226
        %2243 = vst [vmem:[#allocation2 + $0x10] sm:$0xff] %v2227
        %2244 = vst [vmem:[#allocation2 + $0x18] sm:$0xff] %v2228
        %2245 = vst [vmem:[#allocation2 + $0x20] sm:$0xff] %v2229
        %2246 = vst [vmem:[#allocation2 + $0x28] sm:$0xff] %v2230
        %2247 = vst [vmem:[#allocation2 + $0x30] sm:$0xff] %v2231
        %2248 = vst [vmem:[#allocation2 + $0x38] sm:$0xff] %v2232
        %2249 = vst [vmem:[#allocation2 + $0x40] sm:$0xff] %v2233
        %2250 = vst [vmem:[#allocation2 + $0x48] sm:$0xff] %v2234
        %2251 = vst [vmem:[#allocation2 + $0x50] sm:$0xff] %v2235
        %2252 = vst [vmem:[#allocation2 + $0x58] sm:$0xff] %v2236
        %2253 = vst [vmem:[#allocation2 + $0x60] sm:$0xff] %v2237
        %2254 = vst [vmem:[#allocation2 + $0x68] sm:$0xff] %v2238
        %2255 = vst [vmem:[#allocation2 + $0x70] sm:$0xff] %v2239
        %2256 = vst [vmem:[#allocation2 + $0x78] sm:$0xff] %v2240
        %s2257 = scalar_lea.vmem %s5, 448
        %v2258 = vld [vmem:[%s2257] sm:$0xf]
        %v2259 = vld [vmem:[%s2257 + $0x4] sm:$0xf]
        %v2260 = vld [vmem:[%s2257 + $0x8] sm:$0xf]
        %v2261 = vld [vmem:[%s2257 + $0xc] sm:$0xf]
        %v2262 = vld [vmem:[%s2257 + $0x10] sm:$0xf]
        %v2263 = vld [vmem:[%s2257 + $0x14] sm:$0xf]
        %v2264 = vld [vmem:[%s2257 + $0x18] sm:$0xf]
        %v2265 = vld [vmem:[%s2257 + $0x1c] sm:$0xf]
        %v2266 = vld [vmem:[%s2257 + $0x20] sm:$0xf]
        %v2267 = vld [vmem:[%s2257 + $0x24] sm:$0xf]
        %v2268 = vld [vmem:[%s2257 + $0x28] sm:$0xf]
        %v2269 = vld [vmem:[%s2257 + $0x2c] sm:$0xf]
        %v2270 = vld [vmem:[%s2257 + $0x30] sm:$0xf]
        %v2271 = vld [vmem:[%s2257 + $0x34] sm:$0xf]
        %v2272 = vld [vmem:[%s2257 + $0x38] sm:$0xf]
        %v2273 = vld [vmem:[%s2257 + $0x3c] sm:$0xf]
        %v2276 = vunpack.c.l.b16 %v966
        %v2277 = vunpack.c.l.b16 %v967
        %v2278 = vpack.c.b16 %v2277, %v2276
        %v2296 = vunpack.c.l.b16 %v2258
        %v2297 = vunpack.c.l.b16 %v2259
        %v2298 = vunpack.c.l.b16 %v2260
        %v2299 = vunpack.c.l.b16 %v2261
        %v2300 = vunpack.c.l.b16 %v2262
        %v2301 = vunpack.c.l.b16 %v2263
        %v2302 = vunpack.c.l.b16 %v2264
        %v2303 = vunpack.c.l.b16 %v2265
        %v2304 = vunpack.c.l.b16 %v2266
        %v2305 = vunpack.c.l.b16 %v2267
        %v2306 = vunpack.c.l.b16 %v2268
        %v2307 = vunpack.c.l.b16 %v2269
        %v2308 = vunpack.c.l.b16 %v2270
        %v2309 = vunpack.c.l.b16 %v2271
        %v2310 = vunpack.c.l.b16 %v2272
        %v2311 = vunpack.c.l.b16 %v2273
        %v2312 = vpack.c.b16 %v2297, %v2296
        %v2313 = vpack.c.b16 %v2299, %v2298
        %v2314 = vpack.c.b16 %v2301, %v2300
        %v2315 = vpack.c.b16 %v2303, %v2302
        %v2316 = vpack.c.b16 %v2305, %v2304
        %v2317 = vpack.c.b16 %v2307, %v2306
        %v2318 = vpack.c.b16 %v2309, %v2308
        %v2319 = vpack.c.b16 %v2311, %v2310
        %2328 = vmatpush.bf16.msra.mxu0 %v2319
        %2329 = vmatpush.bf16.msra.mxu0 %v2318
        %2330 = vmatpush.bf16.msra.mxu0 %v2317
        %2331 = vmatpush.bf16.msra.mxu0 %v2316
        %2332 = vmatpush.bf16.msra.mxu0 %v2315
        %2333 = vmatpush.bf16.msra.mxu0 %v2314
        %2334 = vmatpush.bf16.msra.mxu0 %v2313
        %2335 = vmatpush.bf16.msra.mxu0 %v2312
        %2336 = vmatmul.bf16.gmra.mxu0 %v1216
        %v2337 = vpop.f32.mrf.mxu0
        %v2338 = vadd.f32 0.0, %v2337
        %v2339 = vpop.f32.mrf.mxu0
        %v2340 = vadd.f32 0.0, %v2339
        %2341 = vmatmul.bf16.gmra.mxu0 %v1217
        %v2342 = vpop.f32.mrf.mxu0
        %v2343 = vadd.f32 0.0, %v2342
        %v2344 = vpop.f32.mrf.mxu0
        %v2345 = vadd.f32 0.0, %v2344
        %2346 = vmatmul.bf16.gmra.mxu0 %v1218
        %v2347 = vpop.f32.mrf.mxu0
        %v2348 = vadd.f32 0.0, %v2347
        %v2349 = vpop.f32.mrf.mxu0
        %v2350 = vadd.f32 0.0, %v2349
        %2351 = vmatmul.bf16.gmra.mxu0 %v1219
        %v2352 = vpop.f32.mrf.mxu0
        %v2353 = vadd.f32 0.0, %v2352
        %v2354 = vpop.f32.mrf.mxu0
        %v2355 = vadd.f32 0.0, %v2354
        %2356 = vmatmul.bf16.gmra.mxu0 %v1220
        %v2357 = vpop.f32.mrf.mxu0
        %v2358 = vadd.f32 0.0, %v2357
        %v2359 = vpop.f32.mrf.mxu0
        %v2360 = vadd.f32 0.0, %v2359
        %2361 = vmatmul.bf16.gmra.mxu0 %v1221
        %v2362 = vpop.f32.mrf.mxu0
        %v2363 = vadd.f32 0.0, %v2362
        %v2364 = vpop.f32.mrf.mxu0
        %v2365 = vadd.f32 0.0, %v2364
        %2366 = vmatmul.bf16.gmra.mxu0 %v1774
        %v2367 = vpop.f32.mrf.mxu0
        %v2368 = vadd.f32 0.0, %v2367
        %v2369 = vpop.f32.mrf.mxu0
        %v2370 = vadd.f32 0.0, %v2369
        %2371 = vmatmul.bf16.gmra.mxu0 %v2278
        %v2372 = vpop.f32.mrf.mxu0
        %v2373 = vadd.f32 0.0, %v2372
        %v2374 = vpop.f32.mrf.mxu0
        %v2375 = vadd.f32 0.0, %v2374
        %2376 = vdwg.mxu0
        %v2377 = vld [vmem:[#allocation2] sm:$0xff]
        %v2378 = vld [vmem:[#allocation2 + $0x8] sm:$0xff]
        %v2379 = vld [vmem:[#allocation2 + $0x10] sm:$0xff]
        %v2380 = vld [vmem:[#allocation2 + $0x18] sm:$0xff]
        %v2381 = vld [vmem:[#allocation2 + $0x20] sm:$0xff]
        %v2382 = vld [vmem:[#allocation2 + $0x28] sm:$0xff]
        %v2383 = vld [vmem:[#allocation2 + $0x30] sm:$0xff]
        %v2384 = vld [vmem:[#allocation2 + $0x38] sm:$0xff]
        %v2385 = vld [vmem:[#allocation2 + $0x40] sm:$0xff]
        %v2386 = vld [vmem:[#allocation2 + $0x48] sm:$0xff]
        %v2387 = vld [vmem:[#allocation2 + $0x50] sm:$0xff]
        %v2388 = vld [vmem:[#allocation2 + $0x58] sm:$0xff]
        %v2389 = vld [vmem:[#allocation2 + $0x60] sm:$0xff]
        %v2390 = vld [vmem:[#allocation2 + $0x68] sm:$0xff]
        %v2391 = vld [vmem:[#allocation2 + $0x70] sm:$0xff]
        %v2392 = vld [vmem:[#allocation2 + $0x78] sm:$0xff]
        %v2393 = vadd.f32 %v2377, %v2338
        %v2394 = vadd.f32 %v2378, %v2340
        %v2395 = vadd.f32 %v2379, %v2343
        %v2396 = vadd.f32 %v2380, %v2345
        %v2397 = vadd.f32 %v2381, %v2348
        %v2398 = vadd.f32 %v2382, %v2350
        %v2399 = vadd.f32 %v2383, %v2353
        %v2400 = vadd.f32 %v2384, %v2355
        %v2401 = vadd.f32 %v2385, %v2358
        %v2402 = vadd.f32 %v2386, %v2360
        %v2403 = vadd.f32 %v2387, %v2363
        %v2404 = vadd.f32 %v2388, %v2365
        %v2405 = vadd.f32 %v2389, %v2368
        %v2406 = vadd.f32 %v2390, %v2370
        %v2407 = vadd.f32 %v2391, %v2373
        %v2408 = vadd.f32 %v2392, %v2375
        %2409 = vst [vmem:[#allocation2] sm:$0xff] %v2393
        %2410 = vst [vmem:[#allocation2 + $0x8] sm:$0xff] %v2394
        %2411 = vst [vmem:[#allocation2 + $0x10] sm:$0xff] %v2395
        %2412 = vst [vmem:[#allocation2 + $0x18] sm:$0xff] %v2396
        %2413 = vst [vmem:[#allocation2 + $0x20] sm:$0xff] %v2397
        %2414 = vst [vmem:[#allocation2 + $0x28] sm:$0xff] %v2398
        %2415 = vst [vmem:[#allocation2 + $0x30] sm:$0xff] %v2399
        %2416 = vst [vmem:[#allocation2 + $0x38] sm:$0xff] %v2400
        %2417 = vst [vmem:[#allocation2 + $0x40] sm:$0xff] %v2401
        %2418 = vst [vmem:[#allocation2 + $0x48] sm:$0xff] %v2402
        %2419 = vst [vmem:[#allocation2 + $0x50] sm:$0xff] %v2403
        %2420 = vst [vmem:[#allocation2 + $0x58] sm:$0xff] %v2404
        %2421 = vst [vmem:[#allocation2 + $0x60] sm:$0xff] %v2405
        %2422 = vst [vmem:[#allocation2 + $0x68] sm:$0xff] %v2406
        %2423 = vst [vmem:[#allocation2 + $0x70] sm:$0xff] %v2407
        %2424 = vst [vmem:[#allocation2 + $0x78] sm:$0xff] %v2408
        %s2425 = scalar_lea.vmem %s5, 512
        %v2426 = vld [vmem:[%s2425] sm:$0xf]
        %v2427 = vld [vmem:[%s2425 + $0x4] sm:$0xf]
        %v2428 = vld [vmem:[%s2425 + $0x8] sm:$0xf]
        %v2429 = vld [vmem:[%s2425 + $0xc] sm:$0xf]
        %v2430 = vld [vmem:[%s2425 + $0x10] sm:$0xf]
        %v2431 = vld [vmem:[%s2425 + $0x14] sm:$0xf]
        %v2432 = vld [vmem:[%s2425 + $0x18] sm:$0xf]
        %v2433 = vld [vmem:[%s2425 + $0x1c] sm:$0xf]
        %v2434 = vld [vmem:[%s2425 + $0x20] sm:$0xf]
        %v2435 = vld [vmem:[%s2425 + $0x24] sm:$0xf]
        %v2436 = vld [vmem:[%s2425 + $0x28] sm:$0xf]
        %v2437 = vld [vmem:[%s2425 + $0x2c] sm:$0xf]
        %v2438 = vld [vmem:[%s2425 + $0x30] sm:$0xf]
        %v2439 = vld [vmem:[%s2425 + $0x34] sm:$0xf]
        %v2440 = vld [vmem:[%s2425 + $0x38] sm:$0xf]
        %v2441 = vld [vmem:[%s2425 + $0x3c] sm:$0xf]
        %v2444 = vunpack.c.l.b16 %v986
        %v2445 = vunpack.c.l.b16 %v987
        %v2446 = vpack.c.b16 %v2445, %v2444
        %v2464 = vunpack.c.l.b16 %v2426
        %v2465 = vunpack.c.l.b16 %v2427
        %v2466 = vunpack.c.l.b16 %v2428
        %v2467 = vunpack.c.l.b16 %v2429
        %v2468 = vunpack.c.l.b16 %v2430
        %v2469 = vunpack.c.l.b16 %v2431
        %v2470 = vunpack.c.l.b16 %v2432
        %v2471 = vunpack.c.l.b16 %v2433
        %v2472 = vunpack.c.l.b16 %v2434
        %v2473 = vunpack.c.l.b16 %v2435
        %v2474 = vunpack.c.l.b16 %v2436
        %v2475 = vunpack.c.l.b16 %v2437
        %v2476 = vunpack.c.l.b16 %v2438
        %v2477 = vunpack.c.l.b16 %v2439
        %v2478 = vunpack.c.l.b16 %v2440
        %v2479 = vunpack.c.l.b16 %v2441
        %v2480 = vpack.c.b16 %v2465, %v2464
        %v2481 = vpack.c.b16 %v2467, %v2466
        %v2482 = vpack.c.b16 %v2469, %v2468
        %v2483 = vpack.c.b16 %v2471, %v2470
        %v2484 = vpack.c.b16 %v2473, %v2472
        %v2485 = vpack.c.b16 %v2475, %v2474
        %v2486 = vpack.c.b16 %v2477, %v2476
        %v2487 = vpack.c.b16 %v2479, %v2478
        %2496 = vmatpush.bf16.msra.mxu0 %v2487
        %2497 = vmatpush.bf16.msra.mxu0 %v2486
        %2498 = vmatpush.bf16.msra.mxu0 %v2485
        %2499 = vmatpush.bf16.msra.mxu0 %v2484
        %2500 = vmatpush.bf16.msra.mxu0 %v2483
        %2501 = vmatpush.bf16.msra.mxu0 %v2482
        %2502 = vmatpush.bf16.msra.mxu0 %v2481
        %2503 = vmatpush.bf16.msra.mxu0 %v2480
        %2504 = vmatmul.bf16.gmra.mxu0 %v1426
        %v2505 = vpop.f32.mrf.mxu0
        %v2506 = vadd.f32 0.0, %v2505
        %v2507 = vpop.f32.mrf.mxu0
        %v2508 = vadd.f32 0.0, %v2507
        %2509 = vmatmul.bf16.gmra.mxu0 %v1427
        %v2510 = vpop.f32.mrf.mxu0
        %v2511 = vadd.f32 0.0, %v2510
        %v2512 = vpop.f32.mrf.mxu0
        %v2513 = vadd.f32 0.0, %v2512
        %2514 = vmatmul.bf16.gmra.mxu0 %v1428
        %v2515 = vpop.f32.mrf.mxu0
        %v2516 = vadd.f32 0.0, %v2515
        %v2517 = vpop.f32.mrf.mxu0
        %v2518 = vadd.f32 0.0, %v2517
        %2519 = vmatmul.bf16.gmra.mxu0 %v1429
        %v2520 = vpop.f32.mrf.mxu0
        %v2521 = vadd.f32 0.0, %v2520
        %v2522 = vpop.f32.mrf.mxu0
        %v2523 = vadd.f32 0.0, %v2522
        %2524 = vmatmul.bf16.gmra.mxu0 %v1430
        %v2525 = vpop.f32.mrf.mxu0
        %v2526 = vadd.f32 0.0, %v2525
        %v2527 = vpop.f32.mrf.mxu0
        %v2528 = vadd.f32 0.0, %v2527
        %2529 = vmatmul.bf16.gmra.mxu0 %v1431
        %v2530 = vpop.f32.mrf.mxu0
        %v2531 = vadd.f32 0.0, %v2530
        %v2532 = vpop.f32.mrf.mxu0
        %v2533 = vadd.f32 0.0, %v2532
        %2534 = vmatmul.bf16.gmra.mxu0 %v1942
        %v2535 = vpop.f32.mrf.mxu0
        %v2536 = vadd.f32 0.0, %v2535
        %v2537 = vpop.f32.mrf.mxu0
        %v2538 = vadd.f32 0.0, %v2537
        %2539 = vmatmul.bf16.gmra.mxu0 %v2446
        %v2540 = vpop.f32.mrf.mxu0
        %v2541 = vadd.f32 0.0, %v2540
        %v2542 = vpop.f32.mrf.mxu0
        %v2543 = vadd.f32 0.0, %v2542
        %2544 = vdwg.mxu0
        %v2545 = vld [vmem:[#allocation2] sm:$0xff]
        %v2546 = vld [vmem:[#allocation2 + $0x8] sm:$0xff]
        %v2547 = vld [vmem:[#allocation2 + $0x10] sm:$0xff]
        %v2548 = vld [vmem:[#allocation2 + $0x18] sm:$0xff]
        %v2549 = vld [vmem:[#allocation2 + $0x20] sm:$0xff]
        %v2550 = vld [vmem:[#allocation2 + $0x28] sm:$0xff]
        %v2551 = vld [vmem:[#allocation2 + $0x30] sm:$0xff]
        %v2552 = vld [vmem:[#allocation2 + $0x38] sm:$0xff]
        %v2553 = vld [vmem:[#allocation2 + $0x40] sm:$0xff]
        %v2554 = vld [vmem:[#allocation2 + $0x48] sm:$0xff]
        %v2555 = vld [vmem:[#allocation2 + $0x50] sm:$0xff]
        %v2556 = vld [vmem:[#allocation2 + $0x58] sm:$0xff]
        %v2557 = vld [vmem:[#allocation2 + $0x60] sm:$0xff]
        %v2558 = vld [vmem:[#allocation2 + $0x68] sm:$0xff]
        %v2559 = vld [vmem:[#allocation2 + $0x70] sm:$0xff]
        %v2560 = vld [vmem:[#allocation2 + $0x78] sm:$0xff]
        %v2561 = vadd.f32 %v2545, %v2506
        %v2562 = vadd.f32 %v2546, %v2508
        %v2563 = vadd.f32 %v2547, %v2511
        %v2564 = vadd.f32 %v2548, %v2513
        %v2565 = vadd.f32 %v2549, %v2516
        %v2566 = vadd.f32 %v2550, %v2518
        %v2567 = vadd.f32 %v2551, %v2521
        %v2568 = vadd.f32 %v2552, %v2523
        %v2569 = vadd.f32 %v2553, %v2526
        %v2570 = vadd.f32 %v2554, %v2528
        %v2571 = vadd.f32 %v2555, %v2531
        %v2572 = vadd.f32 %v2556, %v2533
        %v2573 = vadd.f32 %v2557, %v2536
        %v2574 = vadd.f32 %v2558, %v2538
        %v2575 = vadd.f32 %v2559, %v2541
        %v2576 = vadd.f32 %v2560, %v2543
        %2577 = vst [vmem:[#allocation2] sm:$0xff] %v2561
        %2578 = vst [vmem:[#allocation2 + $0x8] sm:$0xff] %v2562
        %2579 = vst [vmem:[#allocation2 + $0x10] sm:$0xff] %v2563
        %2580 = vst [vmem:[#allocation2 + $0x18] sm:$0xff] %v2564
        %2581 = vst [vmem:[#allocation2 + $0x20] sm:$0xff] %v2565
        %2582 = vst [vmem:[#allocation2 + $0x28] sm:$0xff] %v2566
        %2583 = vst [vmem:[#allocation2 + $0x30] sm:$0xff] %v2567
        %2584 = vst [vmem:[#allocation2 + $0x38] sm:$0xff] %v2568
        %2585 = vst [vmem:[#allocation2 + $0x40] sm:$0xff] %v2569
        %2586 = vst [vmem:[#allocation2 + $0x48] sm:$0xff] %v2570
        %2587 = vst [vmem:[#allocation2 + $0x50] sm:$0xff] %v2571
        %2588 = vst [vmem:[#allocation2 + $0x58] sm:$0xff] %v2572
        %2589 = vst [vmem:[#allocation2 + $0x60] sm:$0xff] %v2573
        %2590 = vst [vmem:[#allocation2 + $0x68] sm:$0xff] %v2574
        %2591 = vst [vmem:[#allocation2 + $0x70] sm:$0xff] %v2575
        %2592 = vst [vmem:[#allocation2 + $0x78] sm:$0xff] %v2576
        %v2593 = vld [vmem:[#allocation2] sm:$0xff]
        %v2594 = vld [vmem:[#allocation2 + $0x8] sm:$0xff]
        %v2595 = vld [vmem:[#allocation2 + $0x10] sm:$0xff]
        %v2596 = vld [vmem:[#allocation2 + $0x18] sm:$0xff]
        %v2597 = vld [vmem:[#allocation2 + $0x20] sm:$0xff]
        %v2598 = vld [vmem:[#allocation2 + $0x28] sm:$0xff]
        %v2599 = vld [vmem:[#allocation2 + $0x30] sm:$0xff]
        %v2600 = vld [vmem:[#allocation2 + $0x38] sm:$0xff]
        %v2601 = vld [vmem:[#allocation2 + $0x40] sm:$0xff]
        %v2602 = vld [vmem:[#allocation2 + $0x48] sm:$0xff]
        %v2603 = vld [vmem:[#allocation2 + $0x50] sm:$0xff]
        %v2604 = vld [vmem:[#allocation2 + $0x58] sm:$0xff]
        %v2605 = vld [vmem:[#allocation2 + $0x60] sm:$0xff]
        %v2606 = vld [vmem:[#allocation2 + $0x68] sm:$0xff]
        %v2607 = vld [vmem:[#allocation2 + $0x70] sm:$0xff]
        %v2608 = vld [vmem:[#allocation2 + $0x78] sm:$0xff]
        %v2609 = vld [vmem:[%s6] sm:$0x1]
        %v2611 = vperm.slane %v2609, 0
        %v2613 = vmul.f32 %v2593, %v2611
        %v2614 = vmul.f32 %v2594, %v2611
        %v2615 = vmul.f32 %v2595, %v2611
        %v2616 = vmul.f32 %v2596, %v2611
        %v2617 = vmul.f32 %v2597, %v2611
        %v2618 = vmul.f32 %v2598, %v2611
        %v2619 = vmul.f32 %v2599, %v2611
        %v2620 = vmul.f32 %v2600, %v2611
        %v2621 = vmul.f32 %v2601, %v2611
        %v2622 = vmul.f32 %v2602, %v2611
        %v2623 = vmul.f32 %v2603, %v2611
        %v2624 = vmul.f32 %v2604, %v2611
        %v2625 = vmul.f32 %v2605, %v2611
        %v2626 = vmul.f32 %v2606, %v2611
        %v2627 = vmul.f32 %v2607, %v2611
        %v2628 = vmul.f32 %v2608, %v2611
        %v2629 = vld [vmem:[%s7] sm:$0x1]
        %v2631 = vperm.slane %v2629, 0
        %v2633 = vadd.f32 %v2613, %v2631
        %v2634 = vadd.f32 %v2614, %v2631
        %v2635 = vadd.f32 %v2615, %v2631
        %v2636 = vadd.f32 %v2616, %v2631
        %v2637 = vadd.f32 %v2617, %v2631
        %v2638 = vadd.f32 %v2618, %v2631
        %v2639 = vadd.f32 %v2619, %v2631
        %v2640 = vadd.f32 %v2620, %v2631
        %v2641 = vadd.f32 %v2621, %v2631
        %v2642 = vadd.f32 %v2622, %v2631
        %v2643 = vadd.f32 %v2623, %v2631
        %v2644 = vadd.f32 %v2624, %v2631
        %v2645 = vadd.f32 %v2625, %v2631
        %v2646 = vadd.f32 %v2626, %v2631
        %v2647 = vadd.f32 %v2627, %v2631
        %v2648 = vadd.f32 %v2628, %v2631
        %v2649 = vmax.f32 %v2633, 0.0
        %v2650 = vmax.f32 %v2634, 0.0
        %v2651 = vmax.f32 %v2635, 0.0
        %v2652 = vmax.f32 %v2636, 0.0
        %v2653 = vmax.f32 %v2637, 0.0
        %v2654 = vmax.f32 %v2638, 0.0
        %v2655 = vmax.f32 %v2639, 0.0
        %v2656 = vmax.f32 %v2640, 0.0
        %v2657 = vmax.f32 %v2641, 0.0
        %v2658 = vmax.f32 %v2642, 0.0
        %v2659 = vmax.f32 %v2643, 0.0
        %v2660 = vmax.f32 %v2644, 0.0
        %v2661 = vmax.f32 %v2645, 0.0
        %v2662 = vmax.f32 %v2646, 0.0
        %v2663 = vmax.f32 %v2647, 0.0
        %v2664 = vmax.f32 %v2648, 0.0
        %v2665 = vld [vmem:[%s379] sm:$0xf]
        %v2666 = vld [vmem:[%s379 + $0x4] sm:$0xf]
        %v2667 = vld [vmem:[%s379 + $0x8] sm:$0xf]
        %v2668 = vld [vmem:[%s379 + $0xc] sm:$0xf]
        %v2669 = vld [vmem:[%s379 + $0x10] sm:$0xf]
        %v2670 = vld [vmem:[%s379 + $0x14] sm:$0xf]
        %v2671 = vld [vmem:[%s379 + $0x18] sm:$0xf]
        %v2672 = vld [vmem:[%s379 + $0x1c] sm:$0xf]
        %v2673 = vld [vmem:[%s379 + $0x20] sm:$0xf]
        %v2674 = vld [vmem:[%s379 + $0x24] sm:$0xf]
        %v2675 = vld [vmem:[%s379 + $0x28] sm:$0xf]
        %v2676 = vld [vmem:[%s379 + $0x2c] sm:$0xf]
        %v2677 = vld [vmem:[%s379 + $0x30] sm:$0xf]
        %v2678 = vld [vmem:[%s379 + $0x34] sm:$0xf]
        %v2679 = vld [vmem:[%s379 + $0x38] sm:$0xf]
        %v2680 = vld [vmem:[%s379 + $0x3c] sm:$0xf]
        %v2681 = vunpack.c.l.bf16 %v2665
        %v2682 = vunpack.c.l.bf16 %v2666
        %v2683 = vunpack.c.l.bf16 %v2667
        %v2684 = vunpack.c.l.bf16 %v2668
        %v2685 = vunpack.c.l.bf16 %v2669
        %v2686 = vunpack.c.l.bf16 %v2670
        %v2687 = vunpack.c.l.bf16 %v2671
        %v2688 = vunpack.c.l.bf16 %v2672
        %v2689 = vunpack.c.l.bf16 %v2673
        %v2690 = vunpack.c.l.bf16 %v2674
        %v2691 = vunpack.c.l.bf16 %v2675
        %v2692 = vunpack.c.l.bf16 %v2676
        %v2693 = vunpack.c.l.bf16 %v2677
        %v2694 = vunpack.c.l.bf16 %v2678
        %v2695 = vunpack.c.l.bf16 %v2679
        %v2696 = vunpack.c.l.bf16 %v2680
        %v2697 = vld [vmem:[%s3] sm:$0x1]
        %v2699 = vperm.slane %v2697, 0
        %v2701 = vmul.f32 %v2681, %v2699
        %v2702 = vmul.f32 %v2682, %v2699
        %v2703 = vmul.f32 %v2683, %v2699
        %v2704 = vmul.f32 %v2684, %v2699
        %v2705 = vmul.f32 %v2685, %v2699
        %v2706 = vmul.f32 %v2686, %v2699
        %v2707 = vmul.f32 %v2687, %v2699
        %v2708 = vmul.f32 %v2688, %v2699
        %v2709 = vmul.f32 %v2689, %v2699
        %v2710 = vmul.f32 %v2690, %v2699
        %v2711 = vmul.f32 %v2691, %v2699
        %v2712 = vmul.f32 %v2692, %v2699
        %v2713 = vmul.f32 %v2693, %v2699
        %v2714 = vmul.f32 %v2694, %v2699
        %v2715 = vmul.f32 %v2695, %v2699
        %v2716 = vmul.f32 %v2696, %v2699
        %2717 = vadd.xlane.f32.xlu0 %v2701
        %v2718 = vpop.xlane.xlu0 %2717
        %2719 = vadd.xlane.f32.xlu0 %v2702
        %v2720 = vpop.xlane.xlu0 %2719
        %2721 = vadd.xlane.f32.xlu0 %v2703
        %v2722 = vpop.xlane.xlu0 %2721
        %2723 = vadd.xlane.f32.xlu0 %v2704
        %v2724 = vpop.xlane.xlu0 %2723
        %2725 = vadd.xlane.f32.xlu0 %v2705
        %v2726 = vpop.xlane.xlu0 %2725
        %2727 = vadd.xlane.f32.xlu0 %v2706
        %v2728 = vpop.xlane.xlu0 %2727
        %2729 = vadd.xlane.f32.xlu0 %v2707
        %v2730 = vpop.xlane.xlu0 %2729
        %2731 = vadd.xlane.f32.xlu0 %v2708
        %v2732 = vpop.xlane.xlu0 %2731
        %2733 = vadd.xlane.f32.xlu0 %v2709
        %v2734 = vpop.xlane.xlu0 %2733
        %2735 = vadd.xlane.f32.xlu0 %v2710
        %v2736 = vpop.xlane.xlu0 %2735
        %2737 = vadd.xlane.f32.xlu0 %v2711
        %v2738 = vpop.xlane.xlu0 %2737
        %2739 = vadd.xlane.f32.xlu0 %v2712
        %v2740 = vpop.xlane.xlu0 %2739
        %2741 = vadd.xlane.f32.xlu0 %v2713
        %v2742 = vpop.xlane.xlu0 %2741
        %2743 = vadd.xlane.f32.xlu0 %v2714
        %v2744 = vpop.xlane.xlu0 %2743
        %2745 = vadd.xlane.f32.xlu0 %v2715
        %v2746 = vpop.xlane.xlu0 %2745
        %2747 = vadd.xlane.f32.xlu0 %v2716
        %v2748 = vpop.xlane.xlu0 %2747
        %v2749 = vld [vmem:[#allocation3] sm:$0x1]
        %v2751 = vperm.slane %v2749, 0
        %v2753 = vadd.f32 %v2718, %v2751
        %v2754 = vadd.f32 %v2720, %v2751
        %v2755 = vadd.f32 %v2722, %v2751
        %v2756 = vadd.f32 %v2724, %v2751
        %v2757 = vadd.f32 %v2726, %v2751
        %v2758 = vadd.f32 %v2728, %v2751
        %v2759 = vadd.f32 %v2730, %v2751
        %v2760 = vadd.f32 %v2732, %v2751
        %v2761 = vadd.f32 %v2734, %v2751
        %v2762 = vadd.f32 %v2736, %v2751
        %v2763 = vadd.f32 %v2738, %v2751
        %v2764 = vadd.f32 %v2740, %v2751
        %v2765 = vadd.f32 %v2742, %v2751
        %v2766 = vadd.f32 %v2744, %v2751
        %v2767 = vadd.f32 %v2746, %v2751
        %v2768 = vadd.f32 %v2748, %v2751
        %v2769 = vxor.u32 %v2753, 2147483648
        %v2770 = vxor.u32 %v2754, 2147483648
        %v2771 = vxor.u32 %v2755, 2147483648
        %v2772 = vxor.u32 %v2756, 2147483648
        %v2773 = vxor.u32 %v2757, 2147483648
        %v2774 = vxor.u32 %v2758, 2147483648
        %v2775 = vxor.u32 %v2759, 2147483648
        %v2776 = vxor.u32 %v2760, 2147483648
        %v2777 = vxor.u32 %v2761, 2147483648
        %v2778 = vxor.u32 %v2762, 2147483648
        %v2779 = vxor.u32 %v2763, 2147483648
        %v2780 = vxor.u32 %v2764, 2147483648
        %v2781 = vxor.u32 %v2765, 2147483648
        %v2782 = vxor.u32 %v2766, 2147483648
        %v2783 = vxor.u32 %v2767, 2147483648
        %v2784 = vxor.u32 %v2768, 2147483648
        %v2785 = vmul.f32 %v2769, 1.442695
        %v2786 = vpow.pop %v2785
        %v2787 = vmul.f32 %v2770, 1.442695
        %v2788 = vpow.pop %v2787
        %v2789 = vmul.f32 %v2771, 1.442695
        %v2790 = vpow.pop %v2789
        %v2791 = vmul.f32 %v2772, 1.442695
        %v2792 = vpow.pop %v2791
        %v2793 = vmul.f32 %v2773, 1.442695
        %v2794 = vpow.pop %v2793
        %v2795 = vmul.f32 %v2774, 1.442695
        %v2796 = vpow.pop %v2795
        %v2797 = vmul.f32 %v2775, 1.442695
        %v2798 = vpow.pop %v2797
        %v2799 = vmul.f32 %v2776, 1.442695
        %v2800 = vpow.pop %v2799
        %v2801 = vmul.f32 %v2777, 1.442695
        %v2802 = vpow.pop %v2801
        %v2803 = vmul.f32 %v2778, 1.442695
        %v2804 = vpow.pop %v2803
        %v2805 = vmul.f32 %v2779, 1.442695
        %v2806 = vpow.pop %v2805
        %v2807 = vmul.f32 %v2780, 1.442695
        %v2808 = vpow.pop %v2807
        %v2809 = vmul.f32 %v2781, 1.442695
        %v2810 = vpow.pop %v2809
        %v2811 = vmul.f32 %v2782, 1.442695
        %v2812 = vpow.pop %v2811
        %v2813 = vmul.f32 %v2783, 1.442695
        %v2814 = vpow.pop %v2813
        %v2815 = vmul.f32 %v2784, 1.442695
        %v2816 = vpow.pop %v2815
        %v2817 = vadd.f32 %v2786, 1.0
        %v2818 = vadd.f32 %v2788, 1.0
        %v2819 = vadd.f32 %v2790, 1.0
        %v2820 = vadd.f32 %v2792, 1.0
        %v2821 = vadd.f32 %v2794, 1.0
        %v2822 = vadd.f32 %v2796, 1.0
        %v2823 = vadd.f32 %v2798, 1.0
        %v2824 = vadd.f32 %v2800, 1.0
        %v2825 = vadd.f32 %v2802, 1.0
        %v2826 = vadd.f32 %v2804, 1.0
        %v2827 = vadd.f32 %v2806, 1.0
        %v2828 = vadd.f32 %v2808, 1.0
        %v2829 = vadd.f32 %v2810, 1.0
        %v2830 = vadd.f32 %v2812, 1.0
        %v2831 = vadd.f32 %v2814, 1.0
        %v2832 = vadd.f32 %v2816, 1.0
        %v2833 = vrcp.pop %v2817
        %v2834 = vmul.f32 %v2817, %v2833
        %v2835 = vsub.f32 1.0, %v2834
        %v2836 = vmul.f32 %v2833, %v2835
        %v2837 = vadd.f32 %v2833, %v2836
        %vm2838 = vweird.f32 %v2817
        %vm2839 = vweird.f32 %v2833
        %vm2840 = vmor %vm2838, %vm2839
        %v2841 = vsel %vm2840, %v2833, %v2837
        %v2842 = vand.u32 2147483647, %v2817
        %vm2843 = vcmp.eq.f32.partialorder %v2842, 8.507059e+37
        %v2844 = vand.u32 %v2817, 2147483648
        %v2845 = vor.u32 1.1754944e-38, %v2844
        %v2846 = vsel %vm2843, %v2845, %v2841
        %v2847 = vmul.f32 1.0, %v2846
        %v2848 = vrcp.pop %v2818
        %v2849 = vmul.f32 %v2818, %v2848
        %v2850 = vsub.f32 1.0, %v2849
        %v2851 = vmul.f32 %v2848, %v2850
        %v2852 = vadd.f32 %v2848, %v2851
        %vm2853 = vweird.f32 %v2818
        %vm2854 = vweird.f32 %v2848
        %vm2855 = vmor %vm2853, %vm2854
        %v2856 = vsel %vm2855, %v2848, %v2852
        %v2857 = vand.u32 2147483647, %v2818
        %vm2858 = vcmp.eq.f32.partialorder %v2857, 8.507059e+37
        %v2859 = vand.u32 %v2818, 2147483648
        %v2860 = vor.u32 1.1754944e-38, %v2859
        %v2861 = vsel %vm2858, %v2860, %v2856
        %v2862 = vmul.f32 1.0, %v2861
        %v2863 = vrcp.pop %v2819
        %v2864 = vmul.f32 %v2819, %v2863
        %v2865 = vsub.f32 1.0, %v2864
        %v2866 = vmul.f32 %v2863, %v2865
        %v2867 = vadd.f32 %v2863, %v2866
        %vm2868 = vweird.f32 %v2819
        %vm2869 = vweird.f32 %v2863
        %vm2870 = vmor %vm2868, %vm2869
        %v2871 = vsel %vm2870, %v2863, %v2867
        %v2872 = vand.u32 2147483647, %v2819
        %vm2873 = vcmp.eq.f32.partialorder %v2872, 8.507059e+37
        %v2874 = vand.u32 %v2819, 2147483648
        %v2875 = vor.u32 1.1754944e-38, %v2874
        %v2876 = vsel %vm2873, %v2875, %v2871
        %v2877 = vmul.f32 1.0, %v2876
        %v2878 = vrcp.pop %v2820
        %v2879 = vmul.f32 %v2820, %v2878
        %v2880 = vsub.f32 1.0, %v2879
        %v2881 = vmul.f32 %v2878, %v2880
        %v2882 = vadd.f32 %v2878, %v2881
        %vm2883 = vweird.f32 %v2820
        %vm2884 = vweird.f32 %v2878
        %vm2885 = vmor %vm2883, %vm2884
        %v2886 = vsel %vm2885, %v2878, %v2882
        %v2887 = vand.u32 2147483647, %v2820
        %vm2888 = vcmp.eq.f32.partialorder %v2887, 8.507059e+37
        %v2889 = vand.u32 %v2820, 2147483648
        %v2890 = vor.u32 1.1754944e-38, %v2889
        %v2891 = vsel %vm2888, %v2890, %v2886
        %v2892 = vmul.f32 1.0, %v2891
        %v2893 = vrcp.pop %v2821
        %v2894 = vmul.f32 %v2821, %v2893
        %v2895 = vsub.f32 1.0, %v2894
        %v2896 = vmul.f32 %v2893, %v2895
        %v2897 = vadd.f32 %v2893, %v2896
        %vm2898 = vweird.f32 %v2821
        %vm2899 = vweird.f32 %v2893
        %vm2900 = vmor %vm2898, %vm2899
        %v2901 = vsel %vm2900, %v2893, %v2897
        %v2902 = vand.u32 2147483647, %v2821
        %vm2903 = vcmp.eq.f32.partialorder %v2902, 8.507059e+37
        %v2904 = vand.u32 %v2821, 2147483648
        %v2905 = vor.u32 1.1754944e-38, %v2904
        %v2906 = vsel %vm2903, %v2905, %v2901
        %v2907 = vmul.f32 1.0, %v2906
        %v2908 = vrcp.pop %v2822
        %v2909 = vmul.f32 %v2822, %v2908
        %v2910 = vsub.f32 1.0, %v2909
        %v2911 = vmul.f32 %v2908, %v2910
        %v2912 = vadd.f32 %v2908, %v2911
        %vm2913 = vweird.f32 %v2822
        %vm2914 = vweird.f32 %v2908
        %vm2915 = vmor %vm2913, %vm2914
        %v2916 = vsel %vm2915, %v2908, %v2912
        %v2917 = vand.u32 2147483647, %v2822
        %vm2918 = vcmp.eq.f32.partialorder %v2917, 8.507059e+37
        %v2919 = vand.u32 %v2822, 2147483648
        %v2920 = vor.u32 1.1754944e-38, %v2919
        %v2921 = vsel %vm2918, %v2920, %v2916
        %v2922 = vmul.f32 1.0, %v2921
        %v2923 = vrcp.pop %v2823
        %v2924 = vmul.f32 %v2823, %v2923
        %v2925 = vsub.f32 1.0, %v2924
        %v2926 = vmul.f32 %v2923, %v2925
        %v2927 = vadd.f32 %v2923, %v2926
        %vm2928 = vweird.f32 %v2823
        %vm2929 = vweird.f32 %v2923
        %vm2930 = vmor %vm2928, %vm2929
        %v2931 = vsel %vm2930, %v2923, %v2927
        %v2932 = vand.u32 2147483647, %v2823
        %vm2933 = vcmp.eq.f32.partialorder %v2932, 8.507059e+37
        %v2934 = vand.u32 %v2823, 2147483648
        %v2935 = vor.u32 1.1754944e-38, %v2934
        %v2936 = vsel %vm2933, %v2935, %v2931
        %v2937 = vmul.f32 1.0, %v2936
        %v2938 = vrcp.pop %v2824
        %v2939 = vmul.f32 %v2824, %v2938
        %v2940 = vsub.f32 1.0, %v2939
        %v2941 = vmul.f32 %v2938, %v2940
        %v2942 = vadd.f32 %v2938, %v2941
        %vm2943 = vweird.f32 %v2824
        %vm2944 = vweird.f32 %v2938
        %vm2945 = vmor %vm2943, %vm2944
        %v2946 = vsel %vm2945, %v2938, %v2942
        %v2947 = vand.u32 2147483647, %v2824
        %vm2948 = vcmp.eq.f32.partialorder %v2947, 8.507059e+37
        %v2949 = vand.u32 %v2824, 2147483648
        %v2950 = vor.u32 1.1754944e-38, %v2949
        %v2951 = vsel %vm2948, %v2950, %v2946
        %v2952 = vmul.f32 1.0, %v2951
        %v2953 = vrcp.pop %v2825
        %v2954 = vmul.f32 %v2825, %v2953
        %v2955 = vsub.f32 1.0, %v2954
        %v2956 = vmul.f32 %v2953, %v2955
        %v2957 = vadd.f32 %v2953, %v2956
        %vm2958 = vweird.f32 %v2825
        %vm2959 = vweird.f32 %v2953
        %vm2960 = vmor %vm2958, %vm2959
        %v2961 = vsel %vm2960, %v2953, %v2957
        %v2962 = vand.u32 2147483647, %v2825
        %vm2963 = vcmp.eq.f32.partialorder %v2962, 8.507059e+37
        %v2964 = vand.u32 %v2825, 2147483648
        %v2965 = vor.u32 1.1754944e-38, %v2964
        %v2966 = vsel %vm2963, %v2965, %v2961
        %v2967 = vmul.f32 1.0, %v2966
        %v2968 = vrcp.pop %v2826
        %v2969 = vmul.f32 %v2826, %v2968
        %v2970 = vsub.f32 1.0, %v2969
        %v2971 = vmul.f32 %v2968, %v2970
        %v2972 = vadd.f32 %v2968, %v2971
        %vm2973 = vweird.f32 %v2826
        %vm2974 = vweird.f32 %v2968
        %vm2975 = vmor %vm2973, %vm2974
        %v2976 = vsel %vm2975, %v2968, %v2972
        %v2977 = vand.u32 2147483647, %v2826
        %vm2978 = vcmp.eq.f32.partialorder %v2977, 8.507059e+37
        %v2979 = vand.u32 %v2826, 2147483648
        %v2980 = vor.u32 1.1754944e-38, %v2979
        %v2981 = vsel %vm2978, %v2980, %v2976
        %v2982 = vmul.f32 1.0, %v2981
        %v2983 = vrcp.pop %v2827
        %v2984 = vmul.f32 %v2827, %v2983
        %v2985 = vsub.f32 1.0, %v2984
        %v2986 = vmul.f32 %v2983, %v2985
        %v2987 = vadd.f32 %v2983, %v2986
        %vm2988 = vweird.f32 %v2827
        %vm2989 = vweird.f32 %v2983
        %vm2990 = vmor %vm2988, %vm2989
        %v2991 = vsel %vm2990, %v2983, %v2987
        %v2992 = vand.u32 2147483647, %v2827
        %vm2993 = vcmp.eq.f32.partialorder %v2992, 8.507059e+37
        %v2994 = vand.u32 %v2827, 2147483648
        %v2995 = vor.u32 1.1754944e-38, %v2994
        %v2996 = vsel %vm2993, %v2995, %v2991
        %v2997 = vmul.f32 1.0, %v2996
        %v2998 = vrcp.pop %v2828
        %v2999 = vmul.f32 %v2828, %v2998
        %v3000 = vsub.f32 1.0, %v2999
        %v3001 = vmul.f32 %v2998, %v3000
        %v3002 = vadd.f32 %v2998, %v3001
        %vm3003 = vweird.f32 %v2828
        %vm3004 = vweird.f32 %v2998
        %vm3005 = vmor %vm3003, %vm3004
        %v3006 = vsel %vm3005, %v2998, %v3002
        %v3007 = vand.u32 2147483647, %v2828
        %vm3008 = vcmp.eq.f32.partialorder %v3007, 8.507059e+37
        %v3009 = vand.u32 %v2828, 2147483648
        %v3010 = vor.u32 1.1754944e-38, %v3009
        %v3011 = vsel %vm3008, %v3010, %v3006
        %v3012 = vmul.f32 1.0, %v3011
        %v3013 = vrcp.pop %v2829
        %v3014 = vmul.f32 %v2829, %v3013
        %v3015 = vsub.f32 1.0, %v3014
        %v3016 = vmul.f32 %v3013, %v3015
        %v3017 = vadd.f32 %v3013, %v3016
        %vm3018 = vweird.f32 %v2829
        %vm3019 = vweird.f32 %v3013
        %vm3020 = vmor %vm3018, %vm3019
        %v3021 = vsel %vm3020, %v3013, %v3017
        %v3022 = vand.u32 2147483647, %v2829
        %vm3023 = vcmp.eq.f32.partialorder %v3022, 8.507059e+37
        %v3024 = vand.u32 %v2829, 2147483648
        %v3025 = vor.u32 1.1754944e-38, %v3024
        %v3026 = vsel %vm3023, %v3025, %v3021
        %v3027 = vmul.f32 1.0, %v3026
        %v3028 = vrcp.pop %v2830
        %v3029 = vmul.f32 %v2830, %v3028
        %v3030 = vsub.f32 1.0, %v3029
        %v3031 = vmul.f32 %v3028, %v3030
        %v3032 = vadd.f32 %v3028, %v3031
        %vm3033 = vweird.f32 %v2830
        %vm3034 = vweird.f32 %v3028
        %vm3035 = vmor %vm3033, %vm3034
        %v3036 = vsel %vm3035, %v3028, %v3032
        %v3037 = vand.u32 2147483647, %v2830
        %vm3038 = vcmp.eq.f32.partialorder %v3037, 8.507059e+37
        %v3039 = vand.u32 %v2830, 2147483648
        %v3040 = vor.u32 1.1754944e-38, %v3039
        %v3041 = vsel %vm3038, %v3040, %v3036
        %v3042 = vmul.f32 1.0, %v3041
        %v3043 = vrcp.pop %v2831
        %v3044 = vmul.f32 %v2831, %v3043
        %v3045 = vsub.f32 1.0, %v3044
        %v3046 = vmul.f32 %v3043, %v3045
        %v3047 = vadd.f32 %v3043, %v3046
        %vm3048 = vweird.f32 %v2831
        %vm3049 = vweird.f32 %v3043
        %vm3050 = vmor %vm3048, %vm3049
        %v3051 = vsel %vm3050, %v3043, %v3047
        %v3052 = vand.u32 2147483647, %v2831
        %vm3053 = vcmp.eq.f32.partialorder %v3052, 8.507059e+37
        %v3054 = vand.u32 %v2831, 2147483648
        %v3055 = vor.u32 1.1754944e-38, %v3054
        %v3056 = vsel %vm3053, %v3055, %v3051
        %v3057 = vmul.f32 1.0, %v3056
        %v3058 = vrcp.pop %v2832
        %v3059 = vmul.f32 %v2832, %v3058
        %v3060 = vsub.f32 1.0, %v3059
        %v3061 = vmul.f32 %v3058, %v3060
        %v3062 = vadd.f32 %v3058, %v3061
        %vm3063 = vweird.f32 %v2832
        %vm3064 = vweird.f32 %v3058
        %vm3065 = vmor %vm3063, %vm3064
        %v3066 = vsel %vm3065, %v3058, %v3062
        %v3067 = vand.u32 2147483647, %v2832
        %vm3068 = vcmp.eq.f32.partialorder %v3067, 8.507059e+37
        %v3069 = vand.u32 %v2832, 2147483648
        %v3070 = vor.u32 1.1754944e-38, %v3069
        %v3071 = vsel %vm3068, %v3070, %v3066
        %v3072 = vmul.f32 1.0, %v3071
        %v3073 = vld [vmem:[%s383] sm:$0x1]
        %v3075 = vperm.slane %v3073, 0
        %3078 = vset.pattern.permute.xlu0 0
        %3079 = vperm.xlu0 %3078, %v2847
        %v3080 = vpop.permute.xlu0 %3079
        %3083 = vset.pattern.permute.xlu0 0
        %3084 = vperm.xlu0 %3083, %v2862
        %v3085 = vpop.permute.xlu0 %3084
        %3088 = vset.pattern.permute.xlu0 0
        %3089 = vperm.xlu0 %3088, %v2877
        %v3090 = vpop.permute.xlu0 %3089
        %3093 = vset.pattern.permute.xlu0 0
        %3094 = vperm.xlu0 %3093, %v2892
        %v3095 = vpop.permute.xlu0 %3094
        %3098 = vset.pattern.permute.xlu0 0
        %3099 = vperm.xlu0 %3098, %v2907
        %v3100 = vpop.permute.xlu0 %3099
        %3103 = vset.pattern.permute.xlu0 0
        %3104 = vperm.xlu0 %3103, %v2922
        %v3105 = vpop.permute.xlu0 %3104
        %3108 = vset.pattern.permute.xlu0 0
        %3109 = vperm.xlu0 %3108, %v2937
        %v3110 = vpop.permute.xlu0 %3109
        %3113 = vset.pattern.permute.xlu0 0
        %3114 = vperm.xlu0 %3113, %v2952
        %v3115 = vpop.permute.xlu0 %3114
        %3118 = vset.pattern.permute.xlu0 0
        %3119 = vperm.xlu0 %3118, %v2967
        %v3120 = vpop.permute.xlu0 %3119
        %3123 = vset.pattern.permute.xlu0 0
        %3124 = vperm.xlu0 %3123, %v2982
        %v3125 = vpop.permute.xlu0 %3124
        %3128 = vset.pattern.permute.xlu0 0
        %3129 = vperm.xlu0 %3128, %v2997
        %v3130 = vpop.permute.xlu0 %3129
        %3133 = vset.pattern.permute.xlu0 0
        %3134 = vperm.xlu0 %3133, %v3012
        %v3135 = vpop.permute.xlu0 %3134
        %3138 = vset.pattern.permute.xlu0 0
        %3139 = vperm.xlu0 %3138, %v3027
        %v3140 = vpop.permute.xlu0 %3139
        %3143 = vset.pattern.permute.xlu0 0
        %3144 = vperm.xlu0 %3143, %v3042
        %v3145 = vpop.permute.xlu0 %3144
        %3148 = vset.pattern.permute.xlu0 0
        %3149 = vperm.xlu0 %3148, %v3057
        %v3150 = vpop.permute.xlu0 %3149
        %3153 = vset.pattern.permute.xlu0 0
        %3154 = vperm.xlu0 %3153, %v3072
        %v3155 = vpop.permute.xlu0 %3154
        %v3157 = vadd.f32 %v3075, %v3080
        %v3158 = vadd.f32 %v3075, %v3085
        %v3159 = vadd.f32 %v3075, %v3090
        %v3160 = vadd.f32 %v3075, %v3095
        %v3161 = vadd.f32 %v3075, %v3100
        %v3162 = vadd.f32 %v3075, %v3105
        %v3163 = vadd.f32 %v3075, %v3110
        %v3164 = vadd.f32 %v3075, %v3115
        %v3165 = vadd.f32 %v3075, %v3120
        %v3166 = vadd.f32 %v3075, %v3125
        %v3167 = vadd.f32 %v3075, %v3130
        %v3168 = vadd.f32 %v3075, %v3135
        %v3169 = vadd.f32 %v3075, %v3140
        %v3170 = vadd.f32 %v3075, %v3145
        %v3171 = vadd.f32 %v3075, %v3150
        %v3172 = vadd.f32 %v3075, %v3155
        %v3173 = vmul.f32 %v407, %v3157
        %v3174 = vmul.f32 %v408, %v3158
        %v3175 = vmul.f32 %v409, %v3159
        %v3176 = vmul.f32 %v410, %v3160
        %v3177 = vmul.f32 %v411, %v3161
        %v3178 = vmul.f32 %v412, %v3162
        %v3179 = vmul.f32 %v413, %v3163
        %v3180 = vmul.f32 %v414, %v3164
        %v3181 = vmul.f32 %v415, %v3165
        %v3182 = vmul.f32 %v416, %v3166
        %v3183 = vmul.f32 %v417, %v3167
        %v3184 = vmul.f32 %v418, %v3168
        %v3185 = vmul.f32 %v419, %v3169
        %v3186 = vmul.f32 %v420, %v3170
        %v3187 = vmul.f32 %v421, %v3171
        %v3188 = vmul.f32 %v422, %v3172
        %v3189 = vadd.f32 %v3173, %v2649
        %v3190 = vadd.f32 %v3174, %v2650
        %v3191 = vadd.f32 %v3175, %v2651
        %v3192 = vadd.f32 %v3176, %v2652
        %v3193 = vadd.f32 %v3177, %v2653
        %v3194 = vadd.f32 %v3178, %v2654
        %v3195 = vadd.f32 %v3179, %v2655
        %v3196 = vadd.f32 %v3180, %v2656
        %v3197 = vadd.f32 %v3181, %v2657
        %v3198 = vadd.f32 %v3182, %v2658
        %v3199 = vadd.f32 %v3183, %v2659
        %v3200 = vadd.f32 %v3184, %v2660
        %v3201 = vadd.f32 %v3185, %v2661
        %v3202 = vadd.f32 %v3186, %v2662
        %v3203 = vadd.f32 %v3187, %v2663
        %v3204 = vadd.f32 %v3188, %v2664
        %3205 = vst [vmem:[%s361] sm:$0xff] %v3189
        %3206 = vst [vmem:[%s361 + $0x8] sm:$0xff] %v3190
        %3207 = vst [vmem:[%s361 + $0x10] sm:$0xff] %v3191
        %3208 = vst [vmem:[%s361 + $0x18] sm:$0xff] %v3192
        %3209 = vst [vmem:[%s361 + $0x20] sm:$0xff] %v3193
        %3210 = vst [vmem:[%s361 + $0x28] sm:$0xff] %v3194
        %3211 = vst [vmem:[%s361 + $0x30] sm:$0xff] %v3195
        %3212 = vst [vmem:[%s361 + $0x38] sm:$0xff] %v3196
        %3213 = vst [vmem:[%s361 + $0x40] sm:$0xff] %v3197
        %3214 = vst [vmem:[%s361 + $0x48] sm:$0xff] %v3198
        %3215 = vst [vmem:[%s361 + $0x50] sm:$0xff] %v3199
        %3216 = vst [vmem:[%s361 + $0x58] sm:$0xff] %v3200
        %3217 = vst [vmem:[%s361 + $0x60] sm:$0xff] %v3201
        %3218 = vst [vmem:[%s361 + $0x68] sm:$0xff] %v3202
        %3219 = vst [vmem:[%s361 + $0x70] sm:$0xff] %v3203
        %3220 = vst [vmem:[%s361 + $0x78] sm:$0xff] %v3204
        %s3221 = sand.u32 %s235, 1
        %s3222 = scalar_lea.sflag [#allocation5], %s3221
        %s3223 = sand.u32 %s235, 1
        %s3224 = smul.addr %s3223, 128
        %s3225 = scalar_lea.vmem [#allocation4], %s3224
        // Predicated region
        $region53: #{tem_scse_module3.1} parent=51 // pred_check
          %p3226 = pneg %p245
        $region54: #{tem_scse_module3.1} parent=51 // pred_check_branch
          %3228 = sbr.rel (%p3226) target = $region56
        $region55: #{tem_scse_module3.1} parent=51 // pred_region
          %s3229 = smul.u32 16, %s29
          %3231 = vsyncadd %s3222, 0
          %s3232 = smul.addr %s28, 32
          %s3233 = sadd.s32 %s3229, %s3232
          %s3234 = smul.addr %s3233, 8
          %s3235 = scalar_lea.hbm %s8, %s3234
          %s3236 = sshll.u32 %s3225, 4
          %s3237 = int_to_ptr.vmem [resolvable:$true] %s3236
          %s3238 = sshll.u32 %s3235, 4
          %s3239 = int_to_ptr.hbm [resolvable:$true] %s3238
          %3244 = dma.vmem_to_hbm [thread:$0]  %s3237, 2048, %s3239, %s3222, 128, 128, 8
        $region56: #{tem_scse_module3.1} parent=51 // pred_fallthru
          _
      $region52: #{tem_scse_module3.1} parent=5 // pred_fallthru
        _
      %p3245 = scmp.le.s32.totalorder 2, %s19
      // Predicated region
      $region57: #{tem_scse_module3.1} parent=5 // pred_check
        %p3246 = pneg %p3245
      $region58: #{tem_scse_module3.1} parent=5 // pred_check_branch
        %3248 = sbr.rel (%p3246) target = $region60
      $region59: #{tem_scse_module3.1} parent=5 // pred_region
        %s3249 = ssub.s32 %s19, 2
        // Predicated region
        $region61: #{tem_scse_module3.1} parent=59 // pred_check
          %p3250 = pneg %p251
        $region62: #{tem_scse_module3.1} parent=59 // pred_check_branch
          %3252 = sbr.rel (%p3250) target = $region64
        $region63: #{tem_scse_module3.1} parent=59 // pred_region
          %s3253 = sand.u32 %s236, 1
          %s3254 = scalar_lea.sflag [#allocation5], %s3253
          %s3255 = sand.u32 %s236, 1
          %s3256 = smul.addr %s3255, 128
          %s3257 = scalar_lea.vmem [#allocation4], %s3256
          %3259 = dma.done %s3254, 2048
        $region64: #{tem_scse_module3.1} parent=59 // pred_fallthru
          _
      $region60: #{tem_scse_module3.1} parent=5 // pred_fallthru
        _
    $region6: #{tem_scse_module3.1} parent=1 // loop_footer
      %s23 = sadd.s32 1, %s19
    $region7: #{tem_scse_module3.1} parent=1 // loop_footer_branch
      %18 = sbr.rel target = $region3
    $region8: #{tem_scse_module3.1} parent=1 // loop_exit
      _
    %3260 = vsyncpa [#allocation5], 1
    %s3261 = scalar_lea.sflag [#allocation5], 1
    %3262 = vsyncpa %s3261, 1

</llo_original>
